<compile_context>
chip_gen: v5e
topology: v5e:2x2
jax: 0.10.0
libtpu: 0.0.40
codegen_flags: <defaults>
</compile_context>

<pallas_src>
import functools

import jax
import jax.numpy as jnp
from jax import lax
from jax.experimental import pallas as pl
from jax.experimental.pallas import tpu as pltpu

_LANE = 128
_SUBLANE = 16          # bf16 sublane packing: keep flattened-row offsets 16-aligned
_MAX_TILE_ROWS = 512   # ~85% of HBM roofline in measured tiled sweeps


def _leaky(x, slope=0.1):
    return jnp.where(x > 0, x, slope * x)


def _round_up(v, m):
    return (v + m - 1) // m * m


def _vmem_limit_bytes():
    """Per-generation scoped-VMEM target (v5e/v6e: 128 MiB phys, v7x: 64 MiB)."""
    phys = 64 * 1024 * 1024
    try:
        info = pltpu.get_tpu_info()
        phys = int(getattr(info, "vmem_capacity_bytes", phys))
    except Exception:
        pass
    return int(min(phys * 3 // 4, 100 * 1024 * 1024))


def _pick_tile_rows(H, w_p, n_batch, cin_p, c_p, cout_p, vmem_limit):
    """Largest row tile that fits the VMEM budget (capped at the 512-row sweet spot)."""
    # Fixed cost: double-buffered weights / scales + generic headroom.
    fixed = 2 * 2 * (cin_p * c_p + 9 * c_p * cout_p) + 4 * 8 * (c_p + cout_p)
    fixed += 4 * 1024 * 1024
    # Per flattened (h, w) row: double-buffered x band + out band, plus the
    # in-kernel f32/bf16 temporaries (x_ext, y1, left/right, opnd, acc/y2).
    per_row = (2 * 4 * cin_p + 2 * 4 * cout_p
               + 4 * cin_p + 3 * 4 * c_p + 2 * 3 * c_p + 2 * 4 * cout_p)
    budget_rows = max((vmem_limit - fixed) // per_row, 8)
    max_rows = int(min(budget_rows, _MAX_TILE_ROWS))
    tile_h = max(1, min(H, max_rows // w_p))
    # Keep at least two grid steps so pipelining / megacore sharding has work.
    if n_batch * (-(-H // tile_h)) < 2 and H > 1:
        tile_h = -(-H // 2)
    return int(tile_h)


def _dnb_kernel(x_mid_ref, x_top_ref, x_bot_ref,
                w1_ref, s1_ref, b1_ref, w2_ref, s2_ref, b2_ref,
                edge_l_ref, edge_r_ref, keep_ref,
                out_ref, *, tile_h, width):
    f32 = jnp.float32
    bf16 = jnp.bfloat16
    thw = tile_h * width
    ext = (tile_h + 2) * width

    # ---- conv1 (1x1) on the row band + its 1-row halos: one MXU matmul ----
    x_ext = jnp.concatenate([x_top_ref[0], x_mid_ref[0], x_bot_ref[0]], axis=0)
    x_flat = x_ext.reshape(ext, x_ext.shape[-1])               # (ext, Cin_p) f32
    y1 = jnp.dot(x_flat.astype(bf16), w1_ref[...],
                 preferred_element_type=f32)                   # (ext, C_p)  f32
    y1 = _leaky(y1 * s1_ref[...] + b1_ref[...])
    # Zero every y1 row that falls outside the real image (first/last halo rows
    # and any H-padding rows) -> exactly conv2's zero padding on y1.
    y1 = y1 * keep_ref[0]                                      # (ext, 1) mask

    # ---- conv2 (3x3, pad=1): hoisted operand build, then 3 matmuls K=3*C_p --
    left = pltpu.roll(y1, 1, axis=0) * edge_l_ref[...]         # tap at w-1
    right = pltpu.roll(y1, ext - 1, axis=0) * edge_r_ref[...]  # tap at w+1
    opnd = jnp.concatenate([left, y1, right], axis=1).astype(bf16)  # (ext, 3*C_p)

    acc = jnp.dot(opnd[0:thw], w2_ref[0], preferred_element_type=f32)
    acc = acc + jnp.dot(opnd[width:width + thw], w2_ref[1],
                        preferred_element_type=f32)
    acc = acc + jnp.dot(opnd[2 * width:2 * width + thw], w2_ref[2],
                        preferred_element_type=f32)
    y2 = _leaky(acc * s2_ref[...] + b2_ref[...])               # (thw, Cout_p)

    # ---- residual add with the original f32 x ----
    x_res = x_flat[width:width + thw, :]                       # Cin_p == Cout_p
    out_ref[0] = (y2 + x_res).reshape(tile_h, width, -1).astype(out_ref.dtype)


def darknet_block_nhwc(x, params, *, out_dtype=jnp.float32):
    """NHWC-native entry point (preferred: avoids NCHW<->NHWC HBM round trips).

    Pass lane-aligned NHWC (Cin % 128 == 0, W % 16 == 0) to skip the padding
    copy entirely.  out_dtype=jnp.bfloat16 halves output store traffic (the
    residual add still happens in f32)."""
    w1, s1, b1, w2, s2, b2 = params
    N, H, W, Cin = x.shape
    C = w1.shape[1]
    Cout = w2.shape[3]
    assert Cout == Cin, "residual add requires in_channels == expansion * channels"

    cin_p = _round_up(Cin, _LANE)
    c_p = _round_up(C, _LANE)
    cout_p = _round_up(Cout, _LANE)
    w_p = _round_up(W, _SUBLANE)

    vmem_limit = _vmem_limit_bytes()
    tile_h = _pick_tile_rows(H, w_p, N, cin_p, c_p, cout_p, vmem_limit)
    h_p = _round_up(H, tile_h)
    nh = h_p // tile_h
    thw = tile_h * w_p
    ext = (tile_h + 2) * w_p

    # Lane/sublane-dense padding (padded channels / columns / rows stay zero in
    # x; their conv2 contributions are killed by the keep / edge masks).
    xp = jnp.pad(x.astype(jnp.float32),
                 ((0, 0), (0, h_p - H), (0, w_p - W), (0, cin_p - Cin)))
    w1p = jnp.pad(w1, ((0, cin_p - Cin), (0, c_p - C))).astype(jnp.bfloat16)
    s1p = jnp.pad(s1, ((0, 0), (0, c_p - C)))
    b1p = jnp.pad(b1, ((0, 0), (0, c_p - C)))
    # (3,3,C,Cout) -> pad -> (3, 3*C_p, Cout_p): K laid out dx-major, channel-minor.
    w2p = jnp.pad(w2, ((0, 0), (0, 0), (0, c_p - C), (0, cout_p - Cout)))
    w2r = w2p.reshape(3, 3 * c_p, cout_p).astype(jnp.bfloat16)
    s2p = jnp.pad(s2, ((0, 0), (0, cout_p - Cout)))
    b2p = jnp.pad(b2, ((0, 0), (0, cout_p - Cout)))

    # Precomputed masks -> simple f32 multiplies in the kernel (no iota / mod).
    col = jnp.arange(ext, dtype=jnp.int32) % w_p
    edge_l = (col > 0).astype(jnp.float32).reshape(ext, 1)       # image w == 0
    edge_r = (col < W - 1).astype(jnp.float32).reshape(ext, 1)   # image w >= W-1
    # keep[h, j] == 1 iff ext-row j of h-tile h maps to a real image row.
    img_row = (jnp.arange(nh, dtype=jnp.int32)[:, None] * tile_h - 1
               + (jnp.arange(ext, dtype=jnp.int32) // w_p)[None, :])
    keep = ((img_row >= 0) & (img_row < H)).astype(jnp.float32).reshape(nh, ext, 1)

    out_bytes = jnp.dtype(out_dtype).itemsize
    cost = pl.CostEstimate(
        flops=int(N * nh * (2 * ext * cin_p * c_p + 18 * thw * c_p * cout_p)),
        transcendentals=0,
        bytes_accessed=int(N * h_p * w_p * (cin_p * 4 + cout_p * out_bytes)
                           + 2 * (cin_p * c_p + 9 * c_p * cout_p)),
    )

    kernel = functools.partial(_dnb_kernel, tile_h=tile_h, width=w_p)
    out_p = pl.pallas_call(
        kernel,
        out_shape=jax.ShapeDtypeStruct((N, h_p, w_p, cout_p), out_dtype),
        grid_spec=pltpu.PrefetchScalarGridSpec(
            num_scalar_prefetch=0,
            grid=(N, nh),
            in_specs=[
                # row band of x
                pl.BlockSpec((1, tile_h, w_p, cin_p), lambda n, h: (n, h, 0, 0)),
                # 1-row halos (clamped at the border; zeroed via the keep mask)
                pl.BlockSpec((1, 1, w_p, cin_p),
                             lambda n, h: (n, jnp.maximum(h * tile_h - 1, 0), 0, 0)),
                pl.BlockSpec((1, 1, w_p, cin_p),
                             lambda n, h: (n, jnp.minimum((h + 1) * tile_h, h_p - 1),
                                           0, 0)),
                pl.BlockSpec((cin_p, c_p), lambda n, h: (0, 0)),            # w1 bf16
                pl.BlockSpec((1, c_p), lambda n, h: (0, 0)),                # s1
                pl.BlockSpec((1, c_p), lambda n, h: (0, 0)),                # b1
                pl.BlockSpec((3, 3 * c_p, cout_p), lambda n, h: (0, 0, 0)),  # w2 bf16
                pl.BlockSpec((1, cout_p), lambda n, h: (0, 0)),             # s2
                pl.BlockSpec((1, cout_p), lambda n, h: (0, 0)),             # b2
                pl.BlockSpec((ext, 1), lambda n, h: (0, 0)),                # edge_l
                pl.BlockSpec((ext, 1), lambda n, h: (0, 0)),                # edge_r
                pl.BlockSpec((1, ext, 1), lambda n, h: (h, 0, 0)),          # keep
            ],
            out_specs=pl.BlockSpec((1, tile_h, w_p, cout_p),
                                   lambda n, h: (n, h, 0, 0)),
        ),
        compiler_params=pltpu.CompilerParams(
            dimension_semantics=("parallel", "parallel"),
            vmem_limit_bytes=int(vmem_limit)),
        cost_estimate=cost,
    )(xp, xp, xp, w1p, s1p, b1p, w2r, s2p, b2p, edge_l, edge_r, keep)

    return out_p[:, :H, :W, :Cout]


@jax.jit
def darknet_block(x_nchw, params):
    """PyTorch-facing wrapper: NCHW in / NCHW out. (Transposes fuse under jit;
    prefer darknet_block_nhwc end-to-end to avoid the extra HBM round trips.)"""
    x_nhwc = jnp.transpose(x_nchw, (0, 2, 3, 1))
    out = darknet_block_nhwc(x_nhwc, params)
    return jnp.transpose(out, (0, 3, 1, 2))


def reference_block(x_nchw, params):
    """Pure-JAX reference (eval-mode BN folded, same bf16 conv inputs)."""
    w1, s1, b1, w2, s2, b2 = params
    x = jnp.transpose(x_nchw, (0, 2, 3, 1)).astype(jnp.float32)   # NHWC
    Cin, C = w1.shape
    Cout = w2.shape[3]
    y1 = lax.conv_general_dilated(
        x.astype(jnp.bfloat16), w1.reshape(1, 1, Cin, C).astype(jnp.bfloat16),
        (1, 1), "VALID", dimension_numbers=("NHWC", "HWIO", "NHWC"),
        preferred_element_type=jnp.float32)
    y1 = _leaky(y1 * s1.reshape(1, 1, 1, C) + b1.reshape(1, 1, 1, C))
    y2 = lax.conv_general_dilated(
        y1.astype(jnp.bfloat16), w2.astype(jnp.bfloat16), (1, 1),
        ((1, 1), (1, 1)), dimension_numbers=("NHWC", "HWIO", "NHWC"),
        preferred_element_type=jnp.float32)
    y2 = _leaky(y2 * s2.reshape(1, 1, 1, Cout) + b2.reshape(1, 1, 1, Cout))
    return jnp.transpose(y2 + x, (0, 3, 1, 2))


def make_params(key, in_channels, channels, expansion=2):
    """Deterministic synthetic params (conv weights + folded eval-mode BN)."""
    cout = channels * expansion
    assert cout == in_channels
    ks = jax.random.split(key, 10)
    eps = 1e-5
    # conv1 (1x1): PyTorch weight (C, Cin, 1, 1) -> stored as (Cin, C)
    w1 = 0.1 * jax.random.normal(ks[0], (in_channels, channels), jnp.float32)
    g1 = 1.0 + 0.1 * jax.random.normal(ks[1], (channels,), jnp.float32)
    be1 = 0.1 * jax.random.normal(ks[2], (channels,), jnp.float32)
    rm1 = 0.1 * jax.random.normal(ks[3], (channels,), jnp.float32)
    rv1 = jnp.abs(jax.random.normal(ks[4], (channels,), jnp.float32)) + 0.5
    s1 = g1 / jnp.sqrt(rv1 + eps)
    b1 = be1 - rm1 * s1
    # conv2 (3x3): PyTorch weight (Cout, C, 3, 3) -> stored HWIO (3, 3, C, Cout)
    w2 = 0.1 * jax.random.normal(ks[5], (3, 3, channels, cout), jnp.float32)
    g2 = 1.0 + 0.1 * jax.random.normal(ks[6], (cout,), jnp.float32)
    be2 = 0.1 * jax.random.normal(ks[7], (cout,), jnp.float32)
    rm2 = 0.1 * jax.random.normal(ks[8], (cout,), jnp.float32)
    rv2 = jnp.abs(jax.random.normal(ks[9], (cout,), jnp.float32)) + 0.5
    s2 = g2 / jnp.sqrt(rv2 + eps)
    b2 = be2 - rm2 * s2
    return (w1, s1.reshape(1, -1), b1.reshape(1, -1),
            w2, s2.reshape(1, -1), b2.reshape(1, -1))


if __name__ == "__main__":
    key = jax.random.PRNGKey(0)
    kx, kp = jax.random.split(key)

    expansion = 2
    batch, channels, H, W = 2, 4, 16, 16
    in_channels = channels * expansion
    x = jax.random.normal(kx, (batch, in_channels, H, W), jnp.float32)  # NCHW
    params = make_params(kp, in_channels, channels, expansion)

    out = jax.block_until_ready(darknet_block(x, params))
    ref = jax.block_until_ready(reference_block(x, params))

    assert out.shape == (batch, in_channels, H, W), out.shape
    err = float(jnp.max(jnp.abs(out - ref)))
    assert err < 1e-2, f"max abs err {err}"
    print("KERNEL_OK")
</pallas_src>

<mosaic_0001>
module attributes {stable_mosaic.version = 11 : i64} {
  func.func @_dnb_kernel(%arg0: i32, %arg1: i32, %arg2: memref<1x16x16x128xf32, #tpu.memory_space<vmem>>, %arg3: memref<1x1x16x128xf32, #tpu.memory_space<vmem>>, %arg4: memref<1x1x16x128xf32, #tpu.memory_space<vmem>>, %arg5: memref<128x128xbf16, #tpu.memory_space<vmem>>, %arg6: memref<1x128xf32, #tpu.memory_space<vmem>>, %arg7: memref<1x128xf32, #tpu.memory_space<vmem>>, %arg8: memref<3x384x128xbf16, #tpu.memory_space<vmem>>, %arg9: memref<1x128xf32, #tpu.memory_space<vmem>>, %arg10: memref<1x128xf32, #tpu.memory_space<vmem>>, %arg11: memref<288x1xf32, #tpu.memory_space<vmem>>, %arg12: memref<288x1xf32, #tpu.memory_space<vmem>>, %arg13: memref<1x288x1xf32, #tpu.memory_space<vmem>>, %arg14: memref<1x16x16x128xf32, #tpu.memory_space<vmem>>) attributes {dimension_semantics = [#tpu.dimension_semantics<parallel>, #tpu.dimension_semantics<parallel>], iteration_bounds = array<i64: 2, 1>, scalar_prefetch = 0 : i64, scratch_operands = 0 : i64, tpu.core_type = #tpu.core_type<tc>, window_params = [{transform_indices = @transform_0, window_bounds = array<i64: 1, 16, 16, 128>}, {transform_indices = @transform_1, window_bounds = array<i64: 1, 1, 16, 128>}, {transform_indices = @transform_2, window_bounds = array<i64: 1, 1, 16, 128>}, {pipeline_mode = #tpu.pipeline_mode<synchronous>, transform_indices = @transform_3, window_bounds = array<i64: 128, 128>}, {pipeline_mode = #tpu.pipeline_mode<synchronous>, transform_indices = @transform_4, window_bounds = array<i64: 1, 128>}, {pipeline_mode = #tpu.pipeline_mode<synchronous>, transform_indices = @transform_5, window_bounds = array<i64: 1, 128>}, {pipeline_mode = #tpu.pipeline_mode<synchronous>, transform_indices = @transform_6, window_bounds = array<i64: 3, 384, 128>}, {pipeline_mode = #tpu.pipeline_mode<synchronous>, transform_indices = @transform_7, window_bounds = array<i64: 1, 128>}, {pipeline_mode = #tpu.pipeline_mode<synchronous>, transform_indices = @transform_8, window_bounds = array<i64: 1, 128>}, {pipeline_mode = #tpu.pipeline_mode<synchronous>, transform_indices = @transform_9, window_bounds = array<i64: 288, 1>}, {pipeline_mode = #tpu.pipeline_mode<synchronous>, transform_indices = @transform_10, window_bounds = array<i64: 288, 1>}, {transform_indices = @transform_11, window_bounds = array<i64: 1, 288, 1>}, {transform_indices = @transform_12, window_bounds = array<i64: 1, 16, 16, 128>}]} {
    %c0 = arith.constant 0 : index
    %c0_0 = arith.constant 0 : index
    %c0_1 = arith.constant 0 : index
    %c0_2 = arith.constant 0 : index
    %0 = vector.load %arg3[%c0, %c0_0, %c0_1, %c0_2] : memref<1x1x16x128xf32, #tpu.memory_space<vmem>>, vector<1x1x16x128xf32>
    %1 = vector.shape_cast %0 : vector<1x1x16x128xf32> to vector<1x16x128xf32>
    %c0_3 = arith.constant 0 : index
    %c0_4 = arith.constant 0 : index
    %c0_5 = arith.constant 0 : index
    %c0_6 = arith.constant 0 : index
    %2 = vector.load %arg2[%c0_3, %c0_4, %c0_5, %c0_6] : memref<1x16x16x128xf32, #tpu.memory_space<vmem>>, vector<1x16x16x128xf32>
    %3 = vector.shape_cast %2 : vector<1x16x16x128xf32> to vector<16x16x128xf32>
    %c0_7 = arith.constant 0 : index
    %c0_8 = arith.constant 0 : index
    %c0_9 = arith.constant 0 : index
    %c0_10 = arith.constant 0 : index
    %4 = vector.load %arg4[%c0_7, %c0_8, %c0_9, %c0_10] : memref<1x1x16x128xf32, #tpu.memory_space<vmem>>, vector<1x1x16x128xf32>
    %5 = vector.shape_cast %4 : vector<1x1x16x128xf32> to vector<1x16x128xf32>
    %6 = tpu.concatenate %1, %3, %5 in 0 : vector<1x16x128xf32>, vector<16x16x128xf32>, vector<1x16x128xf32> -> vector<18x16x128xf32>
    %7 = vector.shape_cast %6 : vector<18x16x128xf32> to vector<288x128xf32>
    %8 = arith.truncf %7 : vector<288x128xf32> to vector<288x128xbf16>
    %c0_11 = arith.constant 0 : index
    %c0_12 = arith.constant 0 : index
    %9 = vector.load %arg5[%c0_11, %c0_12] : memref<128x128xbf16, #tpu.memory_space<vmem>>, vector<128x128xbf16>
    %cst = arith.constant dense<0.000000e+00> : vector<288x128xf32>
    %10 = tpu.matmul %8, %9, %cst {dimension_numbers = #tpu.dot_dimension_numbers<[1], [0], [0], [1], [0, 0, 1, 1], [], []>} : vector<288x128xbf16>, vector<128x128xbf16>, vector<288x128xf32> -> vector<288x128xf32>
    %c0_13 = arith.constant 0 : index
    %c0_14 = arith.constant 0 : index
    %11 = vector.load %arg6[%c0_13, %c0_14] : memref<1x128xf32, #tpu.memory_space<vmem>>, vector<1x128xf32>
    %12 = vector.broadcast %11 : vector<1x128xf32> to vector<288x128xf32>
    %13 = arith.mulf %10, %12 : vector<288x128xf32>
    %c0_15 = arith.constant 0 : index
    %c0_16 = arith.constant 0 : index
    %14 = vector.load %arg7[%c0_15, %c0_16] : memref<1x128xf32, #tpu.memory_space<vmem>>, vector<1x128xf32>
    %15 = vector.broadcast %14 : vector<1x128xf32> to vector<288x128xf32>
    %16 = arith.addf %13, %15 : vector<288x128xf32>
    %cst_17 = arith.constant 0.000000e+00 : f32
    %17 = vector.broadcast %cst_17 : f32 to vector<288x128xf32>
    %18 = arith.cmpf ogt, %16, %17 : vector<288x128xf32>
    %cst_18 = arith.constant 1.000000e-01 : f32
    %19 = vector.broadcast %cst_18 : f32 to vector<288x128xf32>
    %20 = arith.mulf %19, %16 : vector<288x128xf32>
    %21 = arith.select %18, %16, %20 : vector<288x128xi1>, vector<288x128xf32>
    %c0_19 = arith.constant 0 : index
    %c0_20 = arith.constant 0 : index
    %c0_21 = arith.constant 0 : index
    %22 = vector.load %arg13[%c0_19, %c0_20, %c0_21] : memref<1x288x1xf32, #tpu.memory_space<vmem>>, vector<1x288x1xf32>
    %23 = vector.shape_cast %22 : vector<1x288x1xf32> to vector<288x1xf32>
    %24 = vector.broadcast %23 : vector<288x1xf32> to vector<288x128xf32>
    %25 = arith.mulf %21, %24 : vector<288x128xf32>
    %c1_i32 = arith.constant 1 : i32
    %26 = tpu.dynamic_rotate %25 by %c1_i32 dim 0 : vector<288x128xf32>, i32 -> vector<288x128xf32>
    %c0_22 = arith.constant 0 : index
    %c0_23 = arith.constant 0 : index
    %27 = vector.load %arg11[%c0_22, %c0_23] : memref<288x1xf32, #tpu.memory_space<vmem>>, vector<288x1xf32>
    %28 = vector.broadcast %27 : vector<288x1xf32> to vector<288x128xf32>
    %29 = arith.mulf %26, %28 : vector<288x128xf32>
    %c287_i32 = arith.constant 287 : i32
    %30 = tpu.dynamic_rotate %25 by %c287_i32 dim 0 : vector<288x128xf32>, i32 -> vector<288x128xf32>
    %c0_24 = arith.constant 0 : index
    %c0_25 = arith.constant 0 : index
    %31 = vector.load %arg12[%c0_24, %c0_25] : memref<288x1xf32, #tpu.memory_space<vmem>>, vector<288x1xf32>
    %32 = vector.broadcast %31 : vector<288x1xf32> to vector<288x128xf32>
    %33 = arith.mulf %30, %32 : vector<288x128xf32>
    %34 = tpu.concatenate %29, %25, %33 in 1 : vector<288x128xf32>, vector<288x128xf32>, vector<288x128xf32> -> vector<288x384xf32>
    %35 = arith.truncf %34 : vector<288x384xf32> to vector<288x384xbf16>
    %36 = vector.extract_strided_slice %35 {offsets = [0, 0], sizes = [256, 384], strides = [1, 1]} : vector<288x384xbf16> to vector<256x384xbf16>
    %c0_26 = arith.constant 0 : index
    %c0_27 = arith.constant 0 : index
    %c0_28 = arith.constant 0 : index
    %37 = vector.load %arg8[%c0_26, %c0_27, %c0_28] : memref<3x384x128xbf16, #tpu.memory_space<vmem>>, vector<1x384x128xbf16>
    %38 = vector.shape_cast %37 : vector<1x384x128xbf16> to vector<384x128xbf16>
    %cst_29 = arith.constant dense<0.000000e+00> : vector<256x128xf32>
    %39 = tpu.matmul %36, %38, %cst_29 {dimension_numbers = #tpu.dot_dimension_numbers<[1], [0], [0], [1], [0, 0, 1, 1], [], []>} : vector<256x384xbf16>, vector<384x128xbf16>, vector<256x128xf32> -> vector<256x128xf32>
    %40 = vector.extract_strided_slice %35 {offsets = [16, 0], sizes = [256, 384], strides = [1, 1]} : vector<288x384xbf16> to vector<256x384xbf16>
    %c1 = arith.constant 1 : index
    %c0_30 = arith.constant 0 : index
    %c0_31 = arith.constant 0 : index
    %41 = vector.load %arg8[%c1, %c0_30, %c0_31] : memref<3x384x128xbf16, #tpu.memory_space<vmem>>, vector<1x384x128xbf16>
    %42 = vector.shape_cast %41 : vector<1x384x128xbf16> to vector<384x128xbf16>
    %cst_32 = arith.constant dense<0.000000e+00> : vector<256x128xf32>
    %43 = tpu.matmul %40, %42, %cst_32 {dimension_numbers = #tpu.dot_dimension_numbers<[1], [0], [0], [1], [0, 0, 1, 1], [], []>} : vector<256x384xbf16>, vector<384x128xbf16>, vector<256x128xf32> -> vector<256x128xf32>
    %44 = arith.addf %39, %43 : vector<256x128xf32>
    %45 = vector.extract_strided_slice %35 {offsets = [32, 0], sizes = [256, 384], strides = [1, 1]} : vector<288x384xbf16> to vector<256x384xbf16>
    %c2 = arith.constant 2 : index
    %c0_33 = arith.constant 0 : index
    %c0_34 = arith.constant 0 : index
    %46 = vector.load %arg8[%c2, %c0_33, %c0_34] : memref<3x384x128xbf16, #tpu.memory_space<vmem>>, vector<1x384x128xbf16>
    %47 = vector.shape_cast %46 : vector<1x384x128xbf16> to vector<384x128xbf16>
    %cst_35 = arith.constant dense<0.000000e+00> : vector<256x128xf32>
    %48 = tpu.matmul %45, %47, %cst_35 {dimension_numbers = #tpu.dot_dimension_numbers<[1], [0], [0], [1], [0, 0, 1, 1], [], []>} : vector<256x384xbf16>, vector<384x128xbf16>, vector<256x128xf32> -> vector<256x128xf32>
    %49 = arith.addf %44, %48 : vector<256x128xf32>
    %c0_36 = arith.constant 0 : index
    %c0_37 = arith.constant 0 : index
    %50 = vector.load %arg9[%c0_36, %c0_37] : memref<1x128xf32, #tpu.memory_space<vmem>>, vector<1x128xf32>
    %51 = vector.broadcast %50 : vector<1x128xf32> to vector<256x128xf32>
    %52 = arith.mulf %49, %51 : vector<256x128xf32>
    %c0_38 = arith.constant 0 : index
    %c0_39 = arith.constant 0 : index
    %53 = vector.load %arg10[%c0_38, %c0_39] : memref<1x128xf32, #tpu.memory_space<vmem>>, vector<1x128xf32>
    %54 = vector.broadcast %53 : vector<1x128xf32> to vector<256x128xf32>
    %55 = arith.addf %52, %54 : vector<256x128xf32>
    %cst_40 = arith.constant 0.000000e+00 : f32
    %56 = vector.broadcast %cst_40 : f32 to vector<256x128xf32>
    %57 = arith.cmpf ogt, %55, %56 : vector<256x128xf32>
    %cst_41 = arith.constant 1.000000e-01 : f32
    %58 = vector.broadcast %cst_41 : f32 to vector<256x128xf32>
    %59 = arith.mulf %58, %55 : vector<256x128xf32>
    %60 = arith.select %57, %55, %59 : vector<256x128xi1>, vector<256x128xf32>
    %61 = vector.extract_strided_slice %7 {offsets = [16, 0], sizes = [256, 128], strides = [1, 1]} : vector<288x128xf32> to vector<256x128xf32>
    %62 = arith.addf %60, %61 : vector<256x128xf32>
    %63 = vector.shape_cast %62 : vector<256x128xf32> to vector<16x16x128xf32>
    %c0_42 = arith.constant 0 : index
    %c0_43 = arith.constant 0 : index
    %c0_44 = arith.constant 0 : index
    %c0_45 = arith.constant 0 : index
    %64 = vector.load %arg14[%c0_42, %c0_43, %c0_44, %c0_45] : memref<1x16x16x128xf32, #tpu.memory_space<vmem>>, vector<1x16x16x128xf32>
    %65 = vector.shape_cast %64 : vector<1x16x16x128xf32> to vector<16x16x128xf32>
    %66 = vector.shape_cast %63 : vector<16x16x128xf32> to vector<1x16x16x128xf32>
    tpu.vector_store %arg14[%c0_42, %c0_43, %c0_44, %c0_45], %66 {strides = array<i32>} : memref<1x16x16x128xf32, #tpu.memory_space<vmem>>, vector<1x16x16x128xf32>,
    return
  }
  func.func @transform_0(%arg0: i32, %arg1: i32) -> (i32, i32, i32, i32) {
    %c0_i32 = arith.constant 0 : i32
    %c0_i32_0 = arith.constant 0 : i32
    %c0_i32_1 = arith.constant 0 : i32
    return %arg0, %arg1, %c0_i32, %c0_i32_0 : i32, i32, i32, i32
  }
  func.func @transform_1(%arg0: i32, %arg1: i32) -> (i32, i32, i32, i32) {
    %c16_i32 = arith.constant 16 : i32
    %0 = arith.muli %arg1, %c16_i32 : i32
    %c1_i32 = arith.constant 1 : i32
    %1 = arith.subi %0, %c1_i32 : i32
    %c0_i32 = arith.constant 0 : i32
    %2 = arith.maxsi %1, %c0_i32 : i32
    %c0_i32_0 = arith.constant 0 : i32
    %c0_i32_1 = arith.constant 0 : i32
    %c0_i32_2 = arith.constant 0 : i32
    return %arg0, %2, %c0_i32_0, %c0_i32_1 : i32, i32, i32, i32
  }
  func.func @transform_2(%arg0: i32, %arg1: i32) -> (i32, i32, i32, i32) {
    %c1_i32 = arith.constant 1 : i32
    %0 = arith.addi %arg1, %c1_i32 : i32
    %c16_i32 = arith.constant 16 : i32
    %1 = arith.muli %0, %c16_i32 : i32
    %c15_i32 = arith.constant 15 : i32
    %2 = arith.minsi %1, %c15_i32 : i32
    %c0_i32 = arith.constant 0 : i32
    %c0_i32_0 = arith.constant 0 : i32
    %c0_i32_1 = arith.constant 0 : i32
    return %arg0, %2, %c0_i32, %c0_i32_0 : i32, i32, i32, i32
  }
  func.func @transform_3(%arg0: i32, %arg1: i32) -> (i32, i32) {
    %c0_i32 = arith.constant 0 : i32
    %c0_i32_0 = arith.constant 0 : i32
    %c0_i32_1 = arith.constant 0 : i32
    return %c0_i32, %c0_i32_0 : i32, i32
  }
  func.func @transform_4(%arg0: i32, %arg1: i32) -> (i32, i32) {
    %c0_i32 = arith.constant 0 : i32
    %c0_i32_0 = arith.constant 0 : i32
    %c0_i32_1 = arith.constant 0 : i32
    return %c0_i32, %c0_i32_0 : i32, i32
  }
  func.func @transform_5(%arg0: i32, %arg1: i32) -> (i32, i32) {
    %c0_i32 = arith.constant 0 : i32
    %c0_i32_0 = arith.constant 0 : i32
    %c0_i32_1 = arith.constant 0 : i32
    return %c0_i32, %c0_i32_0 : i32, i32
  }
  func.func @transform_6(%arg0: i32, %arg1: i32) -> (i32, i32, i32) {
    %c0_i32 = arith.constant 0 : i32
    %c0_i32_0 = arith.constant 0 : i32
    %c0_i32_1 = arith.constant 0 : i32
    %c0_i32_2 = arith.constant 0 : i32
    return %c0_i32, %c0_i32_0, %c0_i32_1 : i32, i32, i32
  }
  func.func @transform_7(%arg0: i32, %arg1: i32) -> (i32, i32) {
    %c0_i32 = arith.constant 0 : i32
    %c0_i32_0 = arith.constant 0 : i32
    %c0_i32_1 = arith.constant 0 : i32
    return %c0_i32, %c0_i32_0 : i32, i32
  }
  func.func @transform_8(%arg0: i32, %arg1: i32) -> (i32, i32) {
    %c0_i32 = arith.constant 0 : i32
    %c0_i32_0 = arith.constant 0 : i32
    %c0_i32_1 = arith.constant 0 : i32
    return %c0_i32, %c0_i32_0 : i32, i32
  }
  func.func @transform_9(%arg0: i32, %arg1: i32) -> (i32, i32) {
    %c0_i32 = arith.constant 0 : i32
    %c0_i32_0 = arith.constant 0 : i32
    %c0_i32_1 = arith.constant 0 : i32
    return %c0_i32, %c0_i32_0 : i32, i32
  }
  func.func @transform_10(%arg0: i32, %arg1: i32) -> (i32, i32) {
    %c0_i32 = arith.constant 0 : i32
    %c0_i32_0 = arith.constant 0 : i32
    %c0_i32_1 = arith.constant 0 : i32
    return %c0_i32, %c0_i32_0 : i32, i32
  }
  func.func @transform_11(%arg0: i32, %arg1: i32) -> (i32, i32, i32) {
    %c0_i32 = arith.constant 0 : i32
    %c0_i32_0 = arith.constant 0 : i32
    %c0_i32_1 = arith.constant 0 : i32
    return %arg1, %c0_i32, %c0_i32_0 : i32, i32, i32
  }
  func.func @transform_12(%arg0: i32, %arg1: i32) -> (i32, i32, i32, i32) {
    %c0_i32 = arith.constant 0 : i32
    %c0_i32_0 = arith.constant 0 : i32
    %c0_i32_1 = arith.constant 0 : i32
    return %arg0, %arg1, %c0_i32, %c0_i32_0 : i32, i32, i32, i32
  }
}

</mosaic_0001>

<llo_original>
// kernel: darknet_block.1
$region0: #{darknet_block.1}
  #allocation0 [shape = 'u32[]', space=smem, size = 0x4, offset = 0x4, fixed_abs, tag = 'smem constant byte address 0x4 - core index']
  #allocation1 [shape = 'u32[72,128]{1,0:T(1,128)}', space=vmem, size = 0x9000, scoped, tag = 'internal scratch']
  %s0 = inlined_call_operand.vmem [shape: f32[2,16,16,128], index: 0, kind: input, shape index: {}, may-alias: {0,1,2}]
  %s1 = inlined_call_operand.vmem [shape: f32[2,16,16,128], index: 1, kind: input, shape index: {}, may-alias: {0,1,2}]
  %s2 = inlined_call_operand.vmem [shape: f32[2,16,16,128], index: 2, kind: input, shape index: {}, may-alias: {0,1,2}]
  %s3 = inlined_call_operand.vmem [shape: bf16[128,128], index: 3, kind: input, shape index: {}]
  %s4 = inlined_call_operand.vmem [shape: f32[1,128], index: 4, kind: input, shape index: {}]
  %s5 = inlined_call_operand.vmem [shape: f32[1,128], index: 5, kind: input, shape index: {}]
  %s6 = inlined_call_operand.vmem [shape: bf16[3,384,128], index: 6, kind: input, shape index: {}]
  %s7 = inlined_call_operand.vmem [shape: f32[1,128], index: 7, kind: input, shape index: {}]
  %s8 = inlined_call_operand.vmem [shape: f32[1,128], index: 8, kind: input, shape index: {}]
  %s9 = inlined_call_operand.vmem [shape: f32[288,1], index: 9, kind: input, shape index: {}]
  %s10 = inlined_call_operand.vmem [shape: f32[288,1], index: 10, kind: input, shape index: {}]
  %s11 = inlined_call_operand.vmem [shape: f32[1,288,1], index: 11, kind: input, shape index: {}]
  %s12 = inlined_call_operand.vmem [shape: f32[2,16,16,128], index: 12, kind: output, shape index: {}]
  %s13 = sld [smem:[#allocation0]]
  $region81: #{darknet_block.1} parent=0
    _
  %s15 = ssub.s32 1, %s13
  %s16 = scalar_select 0, %s15, %s13
  loop: start=0, step=1, limit=4
  $region2: #{darknet_block.1} parent=0 // loop_pre_header
    _
  $region3: #{darknet_block.1} parent=0 // loop_header
    %s18 = sphi 0, %s22
    %p19 = scmp.ge.s32.totalorder %s18, 4
    %s25 = sphi 0, %s37
    %s26 = sphi 0, %s33
    %s27 = sphi 0, %s25
    %s28 = sphi 0, %s26
    %s29 = sphi 0, %s27
    %s30 = sphi 0, %s28
    %s42 = sphi 0, %s44
    %s45 = sphi 0, %s42
    %s46 = sphi 0, %s45
    %s62 = sphi 0, %s46
    %s78 = sphi 0, %s80
    %s81 = sphi 0, %s78
    %s82 = sphi 0, %s81
    %s98 = sphi 0, %s82
    %s114 = sphi 0, %s116
    %s117 = sphi 0, %s114
    %s118 = sphi 0, %s117
    %s134 = sphi 0, %s118
    %s138 = sphi 0, %s138
    %s140 = sphi 0, %s138
    %s141 = sphi 0, %s140
    %s155 = sphi 0, %s141
    %s159 = sphi 0, %s159
    %s161 = sphi 0, %s159
    %s162 = sphi 0, %s161
    %s176 = sphi 0, %s162
    %s180 = sphi 0, %s180
    %s182 = sphi 0, %s180
    %s183 = sphi 0, %s182
    %s197 = sphi 0, %s183
    %s201 = sphi 0, %s201
    %s203 = sphi 0, %s201
    %s204 = sphi 0, %s203
    %s218 = sphi 0, %s204
    %s222 = sphi 0, %s222
    %s224 = sphi 0, %s222
    %s225 = sphi 0, %s224
    %s239 = sphi 0, %s225
    %s243 = sphi 0, %s243
    %s245 = sphi 0, %s243
    %s246 = sphi 0, %s245
    %s260 = sphi 0, %s246
    %s264 = sphi 0, %s264
    %s266 = sphi 0, %s264
    %s267 = sphi 0, %s266
    %s281 = sphi 0, %s267
    %s285 = sphi 0, %s285
    %s287 = sphi 0, %s285
    %s288 = sphi 0, %s287
    %s302 = sphi 0, %s288
    %s308 = sphi 0, %s310
    %s311 = sphi 0, %s308
    %s312 = sphi 0, %s311
    %s328 = sphi 0, %s312
    %s336 = sphi 0, %s338
    %s339 = sphi 0, %s336
    %s340 = sphi 0, %s339
    %s356 = sphi 0, %s340
  $region4: #{darknet_block.1} parent=0 // loop_header_branch
    %21 = sbr.rel (%p19) target = $region8
  $region5: #{darknet_block.1} parent=0 // loop_body
    %s23 = ssub.s32 %s18, 1
    %s24 = ssub.s32 %s18, 2
    %s31 = sadd.s32 1, %s26
    %p32 = scmp.ge.s32.totalorder %s31, 1
    %s33 = scalar_select %p32, 0, %s31
    %s34 = sadd.s32 1, %s25
    %s35 = scalar_select %p32, %s34, %s25
    %p36 = scmp.ge.s32.totalorder %s35, 2
    %s37 = scalar_select %p36, 0, %s35
    %s38 = ssub.s32 %s25, %s37
    %s39 = ssub.s32 %s26, %s33
    %s40 = sor.u32 %s38, %s39
    %p41 = scmp.eq.s32.totalorder %s40, 0
    %s43 = sadd.s32 %s42, 1
    %s44 = scalar_select %p41, %s42, %s43
    %p47 = pneg %p41
    %p48 = scmp.eq.s32.totalorder %s18, 1
    %p49 = por %p47, %p48
    %p50 = scmp.ne.s32.totalorder %s42, %s45
    %p51 = scmp.eq.s32.totalorder %s18, 0
    %p52 = por %p50, %p51
    %p53 = scmp.ne.s32.totalorder %s42, %s45
    %p54 = scmp.eq.s32.totalorder %s23, 1
    %p55 = por %p53, %p54
    %p56 = scmp.ne.s32.totalorder %s45, %s46
    %p57 = scmp.eq.s32.totalorder %s23, 0
    %p58 = por %p56, %p57
    %p59 = scmp.ne.s32.totalorder %s45, %s46
    %p60 = scmp.eq.s32.totalorder %s24, 1
    %p61 = por %p59, %p60
    %p63 = scmp.ne.s32.totalorder %s46, %s62
    %p64 = scmp.eq.s32.totalorder %s24, 0
    %p65 = por %p63, %p64
    %s66 = smul.u32 %s26, 16
    %s67 = ssub.s32 %s66, 1
    %p68 = scmp.gt.s32.totalorder %s67, 0
    %s69 = scalar_select %p68, %s67, 0
    %s70 = smul.u32 %s33, 16
    %s71 = ssub.s32 %s70, 1
    %p72 = scmp.gt.s32.totalorder %s71, 0
    %s73 = scalar_select %p72, %s71, 0
    %s74 = ssub.s32 %s25, %s37
    %s75 = ssub.s32 %s69, %s73
    %s76 = sor.u32 %s74, %s75
    %p77 = scmp.eq.s32.totalorder %s76, 0
    %s79 = sadd.s32 %s78, 1
    %s80 = scalar_select %p77, %s78, %s79
    %p83 = pneg %p77
    %p84 = scmp.eq.s32.totalorder %s18, 1
    %p85 = por %p83, %p84
    %p86 = scmp.ne.s32.totalorder %s78, %s81
    %p87 = scmp.eq.s32.totalorder %s18, 0
    %p88 = por %p86, %p87
    %p89 = scmp.ne.s32.totalorder %s78, %s81
    %p90 = scmp.eq.s32.totalorder %s23, 1
    %p91 = por %p89, %p90
    %p92 = scmp.ne.s32.totalorder %s81, %s82
    %p93 = scmp.eq.s32.totalorder %s23, 0
    %p94 = por %p92, %p93
    %p95 = scmp.ne.s32.totalorder %s81, %s82
    %p96 = scmp.eq.s32.totalorder %s24, 1
    %p97 = por %p95, %p96
    %p99 = scmp.ne.s32.totalorder %s82, %s98
    %p100 = scmp.eq.s32.totalorder %s24, 0
    %p101 = por %p99, %p100
    %s102 = sadd.s32 %s26, 1
    %s103 = smul.u32 %s102, 16
    %p104 = scmp.lt.s32.totalorder %s103, 15
    %s105 = scalar_select %p104, %s103, 15
    %s106 = sadd.s32 %s33, 1
    %s107 = smul.u32 %s106, 16
    %p108 = scmp.lt.s32.totalorder %s107, 15
    %s109 = scalar_select %p108, %s107, 15
    %s110 = ssub.s32 %s25, %s37
    %s111 = ssub.s32 %s105, %s109
    %s112 = sor.u32 %s110, %s111
    %p113 = scmp.eq.s32.totalorder %s112, 0
    %s115 = sadd.s32 %s114, 1
    %s116 = scalar_select %p113, %s114, %s115
    %p119 = pneg %p113
    %p120 = scmp.eq.s32.totalorder %s18, 1
    %p121 = por %p119, %p120
    %p122 = scmp.ne.s32.totalorder %s114, %s117
    %p123 = scmp.eq.s32.totalorder %s18, 0
    %p124 = por %p122, %p123
    %p125 = scmp.ne.s32.totalorder %s114, %s117
    %p126 = scmp.eq.s32.totalorder %s23, 1
    %p127 = por %p125, %p126
    %p128 = scmp.ne.s32.totalorder %s117, %s118
    %p129 = scmp.eq.s32.totalorder %s23, 0
    %p130 = por %p128, %p129
    %p131 = scmp.ne.s32.totalorder %s117, %s118
    %p132 = scmp.eq.s32.totalorder %s24, 1
    %p133 = por %p131, %p132
    %p135 = scmp.ne.s32.totalorder %s118, %s134
    %p136 = scmp.eq.s32.totalorder %s24, 0
    %p137 = por %p135, %p136
    %s139 = sadd.s32 %s138, 1
    %p142 = scmp.eq.s32.totalorder %s18, 1
    %p143 = scmp.ne.s32.totalorder %s138, %s140
    %p144 = scmp.eq.s32.totalorder %s18, 0
    %p145 = por %p143, %p144
    %p146 = scmp.ne.s32.totalorder %s138, %s140
    %p147 = scmp.eq.s32.totalorder %s23, 1
    %p148 = por %p146, %p147
    %p149 = scmp.ne.s32.totalorder %s140, %s141
    %p150 = scmp.eq.s32.totalorder %s23, 0
    %p151 = por %p149, %p150
    %p152 = scmp.ne.s32.totalorder %s140, %s141
    %p153 = scmp.eq.s32.totalorder %s24, 1
    %p154 = por %p152, %p153
    %p156 = scmp.ne.s32.totalorder %s141, %s155
    %p157 = scmp.eq.s32.totalorder %s24, 0
    %p158 = por %p156, %p157
    %s160 = sadd.s32 %s159, 1
    %p163 = scmp.eq.s32.totalorder %s18, 1
    %p164 = scmp.ne.s32.totalorder %s159, %s161
    %p165 = scmp.eq.s32.totalorder %s18, 0
    %p166 = por %p164, %p165
    %p167 = scmp.ne.s32.totalorder %s159, %s161
    %p168 = scmp.eq.s32.totalorder %s23, 1
    %p169 = por %p167, %p168
    %p170 = scmp.ne.s32.totalorder %s161, %s162
    %p171 = scmp.eq.s32.totalorder %s23, 0
    %p172 = por %p170, %p171
    %p173 = scmp.ne.s32.totalorder %s161, %s162
    %p174 = scmp.eq.s32.totalorder %s24, 1
    %p175 = por %p173, %p174
    %p177 = scmp.ne.s32.totalorder %s162, %s176
    %p178 = scmp.eq.s32.totalorder %s24, 0
    %p179 = por %p177, %p178
    %s181 = sadd.s32 %s180, 1
    %p184 = scmp.eq.s32.totalorder %s18, 1
    %p185 = scmp.ne.s32.totalorder %s180, %s182
    %p186 = scmp.eq.s32.totalorder %s18, 0
    %p187 = por %p185, %p186
    %p188 = scmp.ne.s32.totalorder %s180, %s182
    %p189 = scmp.eq.s32.totalorder %s23, 1
    %p190 = por %p188, %p189
    %p191 = scmp.ne.s32.totalorder %s182, %s183
    %p192 = scmp.eq.s32.totalorder %s23, 0
    %p193 = por %p191, %p192
    %p194 = scmp.ne.s32.totalorder %s182, %s183
    %p195 = scmp.eq.s32.totalorder %s24, 1
    %p196 = por %p194, %p195
    %p198 = scmp.ne.s32.totalorder %s183, %s197
    %p199 = scmp.eq.s32.totalorder %s24, 0
    %p200 = por %p198, %p199
    %s202 = sadd.s32 %s201, 1
    %p205 = scmp.eq.s32.totalorder %s18, 1
    %p206 = scmp.ne.s32.totalorder %s201, %s203
    %p207 = scmp.eq.s32.totalorder %s18, 0
    %p208 = por %p206, %p207
    %p209 = scmp.ne.s32.totalorder %s201, %s203
    %p210 = scmp.eq.s32.totalorder %s23, 1
    %p211 = por %p209, %p210
    %p212 = scmp.ne.s32.totalorder %s203, %s204
    %p213 = scmp.eq.s32.totalorder %s23, 0
    %p214 = por %p212, %p213
    %p215 = scmp.ne.s32.totalorder %s203, %s204
    %p216 = scmp.eq.s32.totalorder %s24, 1
    %p217 = por %p215, %p216
    %p219 = scmp.ne.s32.totalorder %s204, %s218
    %p220 = scmp.eq.s32.totalorder %s24, 0
    %p221 = por %p219, %p220
    %s223 = sadd.s32 %s222, 1
    %p226 = scmp.eq.s32.totalorder %s18, 1
    %p227 = scmp.ne.s32.totalorder %s222, %s224
    %p228 = scmp.eq.s32.totalorder %s18, 0
    %p229 = por %p227, %p228
    %p230 = scmp.ne.s32.totalorder %s222, %s224
    %p231 = scmp.eq.s32.totalorder %s23, 1
    %p232 = por %p230, %p231
    %p233 = scmp.ne.s32.totalorder %s224, %s225
    %p234 = scmp.eq.s32.totalorder %s23, 0
    %p235 = por %p233, %p234
    %p236 = scmp.ne.s32.totalorder %s224, %s225
    %p237 = scmp.eq.s32.totalorder %s24, 1
    %p238 = por %p236, %p237
    %p240 = scmp.ne.s32.totalorder %s225, %s239
    %p241 = scmp.eq.s32.totalorder %s24, 0
    %p242 = por %p240, %p241
    %s244 = sadd.s32 %s243, 1
    %p247 = scmp.eq.s32.totalorder %s18, 1
    %p248 = scmp.ne.s32.totalorder %s243, %s245
    %p249 = scmp.eq.s32.totalorder %s18, 0
    %p250 = por %p248, %p249
    %p251 = scmp.ne.s32.totalorder %s243, %s245
    %p252 = scmp.eq.s32.totalorder %s23, 1
    %p253 = por %p251, %p252
    %p254 = scmp.ne.s32.totalorder %s245, %s246
    %p255 = scmp.eq.s32.totalorder %s23, 0
    %p256 = por %p254, %p255
    %p257 = scmp.ne.s32.totalorder %s245, %s246
    %p258 = scmp.eq.s32.totalorder %s24, 1
    %p259 = por %p257, %p258
    %p261 = scmp.ne.s32.totalorder %s246, %s260
    %p262 = scmp.eq.s32.totalorder %s24, 0
    %p263 = por %p261, %p262
    %s265 = sadd.s32 %s264, 1
    %p268 = scmp.eq.s32.totalorder %s18, 1
    %p269 = scmp.ne.s32.totalorder %s264, %s266
    %p270 = scmp.eq.s32.totalorder %s18, 0
    %p271 = por %p269, %p270
    %p272 = scmp.ne.s32.totalorder %s264, %s266
    %p273 = scmp.eq.s32.totalorder %s23, 1
    %p274 = por %p272, %p273
    %p275 = scmp.ne.s32.totalorder %s266, %s267
    %p276 = scmp.eq.s32.totalorder %s23, 0
    %p277 = por %p275, %p276
    %p278 = scmp.ne.s32.totalorder %s266, %s267
    %p279 = scmp.eq.s32.totalorder %s24, 1
    %p280 = por %p278, %p279
    %p282 = scmp.ne.s32.totalorder %s267, %s281
    %p283 = scmp.eq.s32.totalorder %s24, 0
    %p284 = por %p282, %p283
    %s286 = sadd.s32 %s285, 1
    %p289 = scmp.eq.s32.totalorder %s18, 1
    %p290 = scmp.ne.s32.totalorder %s285, %s287
    %p291 = scmp.eq.s32.totalorder %s18, 0
    %p292 = por %p290, %p291
    %p293 = scmp.ne.s32.totalorder %s285, %s287
    %p294 = scmp.eq.s32.totalorder %s23, 1
    %p295 = por %p293, %p294
    %p296 = scmp.ne.s32.totalorder %s287, %s288
    %p297 = scmp.eq.s32.totalorder %s23, 0
    %p298 = por %p296, %p297
    %p299 = scmp.ne.s32.totalorder %s287, %s288
    %p300 = scmp.eq.s32.totalorder %s24, 1
    %p301 = por %p299, %p300
    %p303 = scmp.ne.s32.totalorder %s288, %s302
    %p304 = scmp.eq.s32.totalorder %s24, 0
    %p305 = por %p303, %p304
    %s306 = ssub.s32 %s26, %s33
    %p307 = scmp.eq.s32.totalorder %s306, 0
    %s309 = sadd.s32 %s308, 1
    %s310 = scalar_select %p307, %s308, %s309
    %p313 = pneg %p307
    %p314 = scmp.eq.s32.totalorder %s18, 1
    %p315 = por %p313, %p314
    %p316 = scmp.ne.s32.totalorder %s308, %s311
    %p317 = scmp.eq.s32.totalorder %s18, 0
    %p318 = por %p316, %p317
    %p319 = scmp.ne.s32.totalorder %s308, %s311
    %p320 = scmp.eq.s32.totalorder %s23, 1
    %p321 = por %p319, %p320
    %p322 = scmp.ne.s32.totalorder %s311, %s312
    %p323 = scmp.eq.s32.totalorder %s23, 0
    %p324 = por %p322, %p323
    %p325 = scmp.ne.s32.totalorder %s311, %s312
    %p326 = scmp.eq.s32.totalorder %s24, 1
    %p327 = por %p325, %p326
    %p329 = scmp.ne.s32.totalorder %s312, %s328
    %p330 = scmp.eq.s32.totalorder %s24, 0
    %p331 = por %p329, %p330
    %s332 = ssub.s32 %s25, %s37
    %s333 = ssub.s32 %s26, %s33
    %s334 = sor.u32 %s332, %s333
    %p335 = scmp.eq.s32.totalorder %s334, 0
    %s337 = sadd.s32 %s336, 1
    %s338 = scalar_select %p335, %s336, %s337
    %p341 = pneg %p335
    %p342 = scmp.eq.s32.totalorder %s18, 1
    %p343 = por %p341, %p342
    %p344 = scmp.ne.s32.totalorder %s336, %s339
    %p345 = scmp.eq.s32.totalorder %s18, 0
    %p346 = por %p344, %p345
    %p347 = scmp.ne.s32.totalorder %s336, %s339
    %p348 = scmp.eq.s32.totalorder %s23, 1
    %p349 = por %p347, %p348
    %p350 = scmp.ne.s32.totalorder %s339, %s340
    %p351 = scmp.eq.s32.totalorder %s23, 0
    %p352 = por %p350, %p351
    %p353 = scmp.ne.s32.totalorder %s339, %s340
    %p354 = scmp.eq.s32.totalorder %s24, 1
    %p355 = por %p353, %p354
    %p357 = scmp.ne.s32.totalorder %s340, %s356
    %p358 = scmp.eq.s32.totalorder %s24, 0
    %p359 = por %p357, %p358
    %p360 = scmp.le.s32.totalorder 1, %s18
    %p361 = scmp.lt.s32.totalorder %s18, 3
    %p362 = pnand %p360, %p361
    %p363 = pneg %p362
    // Predicated region
    $region9: #{darknet_block.1} parent=5 // pred_check
      _
    $region10: #{darknet_block.1} parent=5 // pred_check_branch
      %365 = sbr.rel (%p362) target = $region12
    $region11: #{darknet_block.1} parent=5 // pred_region
      %s366 = ssub.s32 %s18, 1
      // Predicated region
      $region13: #{darknet_block.1} parent=11 // pred_check
        %p367 = pneg %p151
      $region14: #{darknet_block.1} parent=11 // pred_check_branch
        %369 = sbr.rel (%p367) target = $region16
      $region15: #{darknet_block.1} parent=11 // pred_region
        _
      $region16: #{darknet_block.1} parent=11 // pred_fallthru
        _
      // Predicated region
      $region17: #{darknet_block.1} parent=11 // pred_check
        %p370 = pneg %p172
      $region18: #{darknet_block.1} parent=11 // pred_check_branch
        %372 = sbr.rel (%p370) target = $region20
      $region19: #{darknet_block.1} parent=11 // pred_region
        _
      $region20: #{darknet_block.1} parent=11 // pred_fallthru
        _
      // Predicated region
      $region21: #{darknet_block.1} parent=11 // pred_check
        %p373 = pneg %p193
      $region22: #{darknet_block.1} parent=11 // pred_check_branch
        %375 = sbr.rel (%p373) target = $region24
      $region23: #{darknet_block.1} parent=11 // pred_region
        _
      $region24: #{darknet_block.1} parent=11 // pred_fallthru
        _
      // Predicated region
      $region25: #{darknet_block.1} parent=11 // pred_check
        %p376 = pneg %p214
      $region26: #{darknet_block.1} parent=11 // pred_check_branch
        %378 = sbr.rel (%p376) target = $region28
      $region27: #{darknet_block.1} parent=11 // pred_region
        _
      $region28: #{darknet_block.1} parent=11 // pred_fallthru
        _
      // Predicated region
      $region29: #{darknet_block.1} parent=11 // pred_check
        %p379 = pneg %p235
      $region30: #{darknet_block.1} parent=11 // pred_check_branch
        %381 = sbr.rel (%p379) target = $region32
      $region31: #{darknet_block.1} parent=11 // pred_region
        _
      $region32: #{darknet_block.1} parent=11 // pred_fallthru
        _
      // Predicated region
      $region33: #{darknet_block.1} parent=11 // pred_check
        %p382 = pneg %p256
      $region34: #{darknet_block.1} parent=11 // pred_check_branch
        %384 = sbr.rel (%p382) target = $region36
      $region35: #{darknet_block.1} parent=11 // pred_region
        _
      $region36: #{darknet_block.1} parent=11 // pred_fallthru
        _
      // Predicated region
      $region37: #{darknet_block.1} parent=11 // pred_check
        %p385 = pneg %p277
      $region38: #{darknet_block.1} parent=11 // pred_check_branch
        %387 = sbr.rel (%p385) target = $region40
      $region39: #{darknet_block.1} parent=11 // pred_region
        _
      $region40: #{darknet_block.1} parent=11 // pred_fallthru
        _
      // Predicated region
      $region41: #{darknet_block.1} parent=11 // pred_check
        %p388 = pneg %p298
      $region42: #{darknet_block.1} parent=11 // pred_check_branch
        %390 = sbr.rel (%p388) target = $region44
      $region43: #{darknet_block.1} parent=11 // pred_region
        _
      $region44: #{darknet_block.1} parent=11 // pred_fallthru
        _
      // Predicated region
      $region45: #{darknet_block.1} parent=11 // pred_check
        %p391 = pneg %p324
      $region46: #{darknet_block.1} parent=11 // pred_check_branch
        %393 = sbr.rel (%p391) target = $region48
      $region47: #{darknet_block.1} parent=11 // pred_region
        %p394 = scmp.lt.s32.totalorder %s28, 0
        %s395 = scalar_select %p394, %s28, 0
        %s396 = smul.addr %s395, 36
        %s397 = smul.addr %s396, 8
        %s398 = scalar_lea.vmem %s11, %s397
      $region48: #{darknet_block.1} parent=11 // pred_fallthru
        _
    $region12: #{darknet_block.1} parent=5 // pred_fallthru
      _
    %p399 = scmp.lt.s32.totalorder %s18, 2
    // Predicated region
    $region49: #{darknet_block.1} parent=5 // pred_check
      %p400 = pneg %p399
    $region50: #{darknet_block.1} parent=5 // pred_check_branch
      %402 = sbr.rel (%p400) target = $region52
    $region51: #{darknet_block.1} parent=5 // pred_region
      // Predicated region
      $region53: #{darknet_block.1} parent=51 // pred_check
        %p403 = pneg %p52
      $region54: #{darknet_block.1} parent=51 // pred_check_branch
        %405 = sbr.rel (%p403) target = $region56
      $region55: #{darknet_block.1} parent=51 // pred_region
        %s406 = smul.u32 16, %s26
        %p407 = scmp.lt.s32.totalorder %s25, 1
        %s408 = scalar_select %p407, %s25, 1
        %p409 = scmp.lt.s32.totalorder %s406, 15
        %s410 = scalar_select %p409, %s406, 15
        %s411 = smul.addr %s410, 2
        %s412 = smul.addr %s408, 32
        %s413 = sadd.s32 %s411, %s412
        %s414 = smul.addr %s413, 8
        %s415 = scalar_lea.vmem %s0, %s414
        %s416 = smul.u32 16, %s26
      $region56: #{darknet_block.1} parent=51 // pred_fallthru
        _
      // Predicated region
      $region57: #{darknet_block.1} parent=51 // pred_check
        %p417 = pneg %p88
      $region58: #{darknet_block.1} parent=51 // pred_check_branch
        %419 = sbr.rel (%p417) target = $region60
      $region59: #{darknet_block.1} parent=51 // pred_region
        %s420 = smul.u32 %s26, 16
        %s421 = ssub.s32 %s420, 1
        %p422 = scmp.gt.s32.totalorder %s421, 0
        %s423 = scalar_select %p422, %s421, 0
        %p424 = scmp.lt.s32.totalorder %s25, 1
        %s425 = scalar_select %p424, %s25, 1
        %p426 = scmp.lt.s32.totalorder %s423, 15
        %s427 = scalar_select %p426, %s423, 15
        %s428 = smul.addr %s427, 2
        %s429 = smul.addr %s425, 32
        %s430 = sadd.s32 %s428, %s429
        %s431 = smul.addr %s430, 8
        %s432 = scalar_lea.vmem %s1, %s431
        %s433 = smul.u32 %s26, 16
        %s434 = ssub.s32 %s433, 1
        %p435 = scmp.gt.s32.totalorder %s434, 0
        %s436 = scalar_select %p435, %s434, 0
      $region60: #{darknet_block.1} parent=51 // pred_fallthru
        _
      // Predicated region
      $region61: #{darknet_block.1} parent=51 // pred_check
        %p437 = pneg %p124
      $region62: #{darknet_block.1} parent=51 // pred_check_branch
        %439 = sbr.rel (%p437) target = $region64
      $region63: #{darknet_block.1} parent=51 // pred_region
        %s440 = sadd.s32 %s26, 1
        %s441 = smul.u32 %s440, 16
        %p442 = scmp.lt.s32.totalorder %s441, 15
        %s443 = scalar_select %p442, %s441, 15
        %p444 = scmp.lt.s32.totalorder %s25, 1
        %s445 = scalar_select %p444, %s25, 1
        %p446 = scmp.lt.s32.totalorder %s443, 15
        %s447 = scalar_select %p446, %s443, 15
        %s448 = smul.addr %s447, 2
        %s449 = smul.addr %s445, 32
        %s450 = sadd.s32 %s448, %s449
        %s451 = smul.addr %s450, 8
        %s452 = scalar_lea.vmem %s2, %s451
        %s453 = sadd.s32 %s26, 1
        %s454 = smul.u32 %s453, 16
        %p455 = scmp.lt.s32.totalorder %s454, 15
        %s456 = scalar_select %p455, %s454, 15
      $region64: #{darknet_block.1} parent=51 // pred_fallthru
        _
    $region52: #{darknet_block.1} parent=5 // pred_fallthru
      _
    %p457 = scmp.le.s32.totalorder 1, %s18
    %p458 = scmp.lt.s32.totalorder %s18, 3
    %p459 = pnand %p457, %p458
    %p460 = pneg %p459
    // Predicated region
    $region65: #{darknet_block.1} parent=5 // pred_check
      _
    $region66: #{darknet_block.1} parent=5 // pred_check_branch
      %462 = sbr.rel (%p459) target = $region68
    $region67: #{darknet_block.1} parent=5 // pred_region
      %s463 = ssub.s32 %s18, 1
      %s464 = smul.u32 16, %s28
      %p465 = scmp.lt.s32.totalorder %s27, 1
      %s466 = scalar_select %p465, %s27, 1
      %p467 = scmp.lt.s32.totalorder %s464, 15
      %s468 = scalar_select %p467, %s464, 15
      %s469 = smul.addr %s468, 2
      %s470 = smul.addr %s466, 32
      %s471 = sadd.s32 %s469, %s470
      %s472 = smul.addr %s471, 8
      %s473 = scalar_lea.vmem %s0, %s472
      %p474 = pneg %p58
      %p475 = pneg %p55
      %s476 = smul.u32 %s28, 16
      %s477 = ssub.s32 %s476, 1
      %p478 = scmp.gt.s32.totalorder %s477, 0
      %s479 = scalar_select %p478, %s477, 0
      %p480 = scmp.lt.s32.totalorder %s27, 1
      %s481 = scalar_select %p480, %s27, 1
      %p482 = scmp.lt.s32.totalorder %s479, 15
      %s483 = scalar_select %p482, %s479, 15
      %s484 = smul.addr %s483, 2
      %s485 = smul.addr %s481, 32
      %s486 = sadd.s32 %s484, %s485
      %s487 = smul.addr %s486, 8
      %s488 = scalar_lea.vmem %s1, %s487
      %p489 = pneg %p94
      %p490 = pneg %p91
      %s491 = sadd.s32 %s28, 1
      %s492 = smul.u32 %s491, 16
      %p493 = scmp.lt.s32.totalorder %s492, 15
      %s494 = scalar_select %p493, %s492, 15
      %p495 = scmp.lt.s32.totalorder %s27, 1
      %s496 = scalar_select %p495, %s27, 1
      %p497 = scmp.lt.s32.totalorder %s494, 15
      %s498 = scalar_select %p497, %s494, 15
      %s499 = smul.addr %s498, 2
      %s500 = smul.addr %s496, 32
      %s501 = sadd.s32 %s499, %s500
      %s502 = smul.addr %s501, 8
      %s503 = scalar_lea.vmem %s2, %s502
      %p504 = pneg %p130
      %p505 = pneg %p127
      %p506 = pneg %p151
      %p507 = pneg %p148
      %p508 = pneg %p172
      %p509 = pneg %p169
      %p510 = pneg %p193
      %p511 = pneg %p190
      %p512 = pneg %p214
      %p513 = pneg %p211
      %p514 = pneg %p235
      %p515 = pneg %p232
      %p516 = pneg %p256
      %p517 = pneg %p253
      %p518 = pneg %p277
      %p519 = pneg %p274
      %p520 = pneg %p298
      %p521 = pneg %p295
      %p522 = scmp.lt.s32.totalorder %s28, 0
      %s523 = scalar_select %p522, %s28, 0
      %s524 = smul.addr %s523, 36
      %s525 = smul.addr %s524, 8
      %s526 = scalar_lea.vmem %s11, %s525
      %p527 = pneg %p324
      %p528 = pneg %p321
      %p529 = pneg %p352
      %p530 = pneg %p349
      %s531 = smul.u32 16, %s28
      %p532 = scmp.lt.s32.totalorder %s27, 1
      %s533 = scalar_select %p532, %s27, 1
      %p534 = scmp.lt.s32.totalorder %s531, 15
      %s535 = scalar_select %p534, %s531, 15
      %s536 = smul.addr %s535, 2
      %s537 = smul.addr %s533, 32
      %s538 = sadd.s32 %s536, %s537
      %s539 = smul.addr %s538, 8
      %s540 = scalar_lea.vmem %s12, %s539
      %s541 = smul.u32 16, %s28
      %p542 = scmp.lt.s32.totalorder %s27, 1
      %s543 = scalar_select %p542, %s27, 1
      %p544 = scmp.lt.s32.totalorder %s541, 15
      %s545 = scalar_select %p544, %s541, 15
      %s546 = smul.addr %s545, 2
      %s547 = smul.addr %s543, 32
      %s548 = sadd.s32 %s546, %s547
      %s549 = smul.addr %s548, 8
      %s550 = scalar_lea.vmem %s0, %s549
      %s551 = smul.u32 16, %s28
      %s552 = smul.u32 %s28, 16
      %s553 = ssub.s32 %s552, 1
      %p554 = scmp.gt.s32.totalorder %s553, 0
      %s555 = scalar_select %p554, %s553, 0
      %p556 = scmp.lt.s32.totalorder %s27, 1
      %s557 = scalar_select %p556, %s27, 1
      %p558 = scmp.lt.s32.totalorder %s555, 15
      %s559 = scalar_select %p558, %s555, 15
      %s560 = smul.addr %s559, 2
      %s561 = smul.addr %s557, 32
      %s562 = sadd.s32 %s560, %s561
      %s563 = smul.addr %s562, 8
      %s564 = scalar_lea.vmem %s1, %s563
      %s565 = smul.u32 %s28, 16
      %s566 = ssub.s32 %s565, 1
      %p567 = scmp.gt.s32.totalorder %s566, 0
      %s568 = scalar_select %p567, %s566, 0
      %s569 = sadd.s32 %s28, 1
      %s570 = smul.u32 %s569, 16
      %p571 = scmp.lt.s32.totalorder %s570, 15
      %s572 = scalar_select %p571, %s570, 15
      %p573 = scmp.lt.s32.totalorder %s27, 1
      %s574 = scalar_select %p573, %s27, 1
      %p575 = scmp.lt.s32.totalorder %s572, 15
      %s576 = scalar_select %p575, %s572, 15
      %s577 = smul.addr %s576, 2
      %s578 = smul.addr %s574, 32
      %s579 = sadd.s32 %s577, %s578
      %s580 = smul.addr %s579, 8
      %s581 = scalar_lea.vmem %s2, %s580
      %s582 = sadd.s32 %s28, 1
      %s583 = smul.u32 %s582, 16
      %p584 = scmp.lt.s32.totalorder %s583, 15
      %s585 = scalar_select %p584, %s583, 15
      %p586 = scmp.lt.s32.totalorder %s28, 0
      %s587 = scalar_select %p586, %s28, 0
      %s588 = smul.addr %s587, 36
      %s589 = smul.addr %s588, 8
      %s590 = scalar_lea.vmem %s11, %s589
      %s591 = smul.u32 16, %s28
      %p592 = scmp.lt.s32.totalorder %s27, 1
      %s593 = scalar_select %p592, %s27, 1
      %p594 = scmp.lt.s32.totalorder %s591, 15
      %s595 = scalar_select %p594, %s591, 15
      %s596 = smul.addr %s595, 2
      %s597 = smul.addr %s593, 32
      %s598 = sadd.s32 %s596, %s597
      %s599 = smul.addr %s598, 8
      %s600 = scalar_lea.vmem %s12, %s599
      %s601 = smul.u32 16, %s28
      %v602 = vld [vmem:[%s564] sm:$0xff]
      %v603 = vld [vmem:[%s564 + $0x8] sm:$0xff]
      %v604 = vld [vmem:[%s550] sm:$0xff]
      %v605 = vld [vmem:[%s550 + $0x8] sm:$0xff]
      %v606 = vld [vmem:[%s550 + $0x10] sm:$0xff]
      %v607 = vld [vmem:[%s550 + $0x18] sm:$0xff]
      %v608 = vld [vmem:[%s550 + $0x20] sm:$0xff]
      %v609 = vld [vmem:[%s550 + $0x28] sm:$0xff]
      %v610 = vld [vmem:[%s550 + $0x30] sm:$0xff]
      %v611 = vld [vmem:[%s550 + $0x38] sm:$0xff]
      %v612 = vld [vmem:[%s550 + $0x40] sm:$0xff]
      %v613 = vld [vmem:[%s550 + $0x48] sm:$0xff]
      %v614 = vld [vmem:[%s550 + $0x50] sm:$0xff]
      %v615 = vld [vmem:[%s550 + $0x58] sm:$0xff]
      %v616 = vld [vmem:[%s550 + $0x60] sm:$0xff]
      %v617 = vld [vmem:[%s550 + $0x68] sm:$0xff]
      %v618 = vld [vmem:[%s550 + $0x70] sm:$0xff]
      %v619 = vld [vmem:[%s550 + $0x78] sm:$0xff]
      %v620 = vld [vmem:[%s550 + $0x80] sm:$0xff]
      %v621 = vld [vmem:[%s550 + $0x88] sm:$0xff]
      %v622 = vld [vmem:[%s550 + $0x90] sm:$0xff]
      %v623 = vld [vmem:[%s550 + $0x98] sm:$0xff]
      %v624 = vld [vmem:[%s550 + $0xa0] sm:$0xff]
      %v625 = vld [vmem:[%s550 + $0xa8] sm:$0xff]
      %v626 = vld [vmem:[%s550 + $0xb0] sm:$0xff]
      %v627 = vld [vmem:[%s550 + $0xb8] sm:$0xff]
      %v628 = vld [vmem:[%s550 + $0xc0] sm:$0xff]
      %v629 = vld [vmem:[%s550 + $0xc8] sm:$0xff]
      %v630 = vld [vmem:[%s550 + $0xd0] sm:$0xff]
      %v631 = vld [vmem:[%s550 + $0xd8] sm:$0xff]
      %v632 = vld [vmem:[%s550 + $0xe0] sm:$0xff]
      %v633 = vld [vmem:[%s550 + $0xe8] sm:$0xff]
      %v634 = vld [vmem:[%s550 + $0xf0] sm:$0xff]
      %v635 = vld [vmem:[%s550 + $0xf8] sm:$0xff]
      %v636 = vld [vmem:[%s581] sm:$0xff]
      %v637 = vld [vmem:[%s581 + $0x8] sm:$0xff]
      %v638 = vpack.c.bf16 %v603, %v602
      %v639 = vpack.c.bf16 %v605, %v604
      %v640 = vpack.c.bf16 %v607, %v606
      %v641 = vpack.c.bf16 %v609, %v608
      %v642 = vpack.c.bf16 %v611, %v610
      %v643 = vpack.c.bf16 %v613, %v612
      %v644 = vpack.c.bf16 %v615, %v614
      %v645 = vpack.c.bf16 %v617, %v616
      %v646 = vpack.c.bf16 %v619, %v618
      %v647 = vpack.c.bf16 %v621, %v620
      %v648 = vpack.c.bf16 %v623, %v622
      %v649 = vpack.c.bf16 %v625, %v624
      %v650 = vpack.c.bf16 %v627, %v626
      %v651 = vpack.c.bf16 %v629, %v628
      %v652 = vpack.c.bf16 %v631, %v630
      %v653 = vpack.c.bf16 %v633, %v632
      %v654 = vpack.c.bf16 %v635, %v634
      %v655 = vpack.c.bf16 %v637, %v636
      %v656 = vld [vmem:[%s3] sm:$0xf]
      %v657 = vld [vmem:[%s3 + $0x4] sm:$0xf]
      %v658 = vld [vmem:[%s3 + $0x8] sm:$0xf]
      %v659 = vld [vmem:[%s3 + $0xc] sm:$0xf]
      %v660 = vld [vmem:[%s3 + $0x10] sm:$0xf]
      %v661 = vld [vmem:[%s3 + $0x14] sm:$0xf]
      %v662 = vld [vmem:[%s3 + $0x18] sm:$0xf]
      %v663 = vld [vmem:[%s3 + $0x1c] sm:$0xf]
      %v664 = vld [vmem:[%s3 + $0x20] sm:$0xf]
      %v665 = vld [vmem:[%s3 + $0x24] sm:$0xf]
      %v666 = vld [vmem:[%s3 + $0x28] sm:$0xf]
      %v667 = vld [vmem:[%s3 + $0x2c] sm:$0xf]
      %v668 = vld [vmem:[%s3 + $0x30] sm:$0xf]
      %v669 = vld [vmem:[%s3 + $0x34] sm:$0xf]
      %v670 = vld [vmem:[%s3 + $0x38] sm:$0xf]
      %v671 = vld [vmem:[%s3 + $0x3c] sm:$0xf]
      %v688 = vunpack.c.l.b16 %v656
      %v689 = vunpack.c.l.b16 %v657
      %v690 = vunpack.c.l.b16 %v658
      %v691 = vunpack.c.l.b16 %v659
      %v692 = vunpack.c.l.b16 %v660
      %v693 = vunpack.c.l.b16 %v661
      %v694 = vunpack.c.l.b16 %v662
      %v695 = vunpack.c.l.b16 %v663
      %v696 = vunpack.c.l.b16 %v664
      %v697 = vunpack.c.l.b16 %v665
      %v698 = vunpack.c.l.b16 %v666
      %v699 = vunpack.c.l.b16 %v667
      %v700 = vunpack.c.l.b16 %v668
      %v701 = vunpack.c.l.b16 %v669
      %v702 = vunpack.c.l.b16 %v670
      %v703 = vunpack.c.l.b16 %v671
      %v704 = vpack.c.b16 %v689, %v688
      %v705 = vpack.c.b16 %v691, %v690
      %v706 = vpack.c.b16 %v693, %v692
      %v707 = vpack.c.b16 %v695, %v694
      %v708 = vpack.c.b16 %v697, %v696
      %v709 = vpack.c.b16 %v699, %v698
      %v710 = vpack.c.b16 %v701, %v700
      %v711 = vpack.c.b16 %v703, %v702
      %720 = vmatpush.bf16.msra.mxu0 %v711
      %721 = vmatpush.bf16.msra.mxu0 %v710
      %722 = vmatpush.bf16.msra.mxu0 %v709
      %723 = vmatpush.bf16.msra.mxu0 %v708
      %724 = vmatpush.bf16.msra.mxu0 %v707
      %725 = vmatpush.bf16.msra.mxu0 %v706
      %726 = vmatpush.bf16.msra.mxu0 %v705
      %727 = vmatpush.bf16.msra.mxu0 %v704
      %728 = vmatmul.bf16.gmra.mxu0 %v638
      %v729 = vpop.f32.mrf.mxu0
      %v730 = vadd.f32 0.0, %v729
      %v731 = vpop.f32.mrf.mxu0
      %v732 = vadd.f32 0.0, %v731
      %733 = vmatmul.bf16.gmra.mxu0 %v639
      %v734 = vpop.f32.mrf.mxu0
      %v735 = vadd.f32 0.0, %v734
      %v736 = vpop.f32.mrf.mxu0
      %v737 = vadd.f32 0.0, %v736
      %738 = vmatmul.bf16.gmra.mxu0 %v640
      %v739 = vpop.f32.mrf.mxu0
      %v740 = vadd.f32 0.0, %v739
      %v741 = vpop.f32.mrf.mxu0
      %v742 = vadd.f32 0.0, %v741
      %743 = vmatmul.bf16.gmra.mxu0 %v641
      %v744 = vpop.f32.mrf.mxu0
      %v745 = vadd.f32 0.0, %v744
      %v746 = vpop.f32.mrf.mxu0
      %v747 = vadd.f32 0.0, %v746
      %748 = vmatmul.bf16.gmra.mxu0 %v642
      %v749 = vpop.f32.mrf.mxu0
      %v750 = vadd.f32 0.0, %v749
      %v751 = vpop.f32.mrf.mxu0
      %v752 = vadd.f32 0.0, %v751
      %753 = vmatmul.bf16.gmra.mxu0 %v643
      %v754 = vpop.f32.mrf.mxu0
      %v755 = vadd.f32 0.0, %v754
      %v756 = vpop.f32.mrf.mxu0
      %v757 = vadd.f32 0.0, %v756
      %758 = vmatmul.bf16.gmra.mxu0 %v644
      %v759 = vpop.f32.mrf.mxu0
      %v760 = vadd.f32 0.0, %v759
      %v761 = vpop.f32.mrf.mxu0
      %v762 = vadd.f32 0.0, %v761
      %763 = vmatmul.bf16.gmra.mxu0 %v645
      %v764 = vpop.f32.mrf.mxu0
      %v765 = vadd.f32 0.0, %v764
      %v766 = vpop.f32.mrf.mxu0
      %v767 = vadd.f32 0.0, %v766
      %768 = vmatmul.bf16.gmra.mxu0 %v646
      %v769 = vpop.f32.mrf.mxu0
      %v770 = vadd.f32 0.0, %v769
      %v771 = vpop.f32.mrf.mxu0
      %v772 = vadd.f32 0.0, %v771
      %773 = vmatmul.bf16.gmra.mxu0 %v647
      %v774 = vpop.f32.mrf.mxu0
      %v775 = vadd.f32 0.0, %v774
      %v776 = vpop.f32.mrf.mxu0
      %v777 = vadd.f32 0.0, %v776
      %778 = vmatmul.bf16.gmra.mxu0 %v648
      %v779 = vpop.f32.mrf.mxu0
      %v780 = vadd.f32 0.0, %v779
      %v781 = vpop.f32.mrf.mxu0
      %v782 = vadd.f32 0.0, %v781
      %783 = vmatmul.bf16.gmra.mxu0 %v649
      %v784 = vpop.f32.mrf.mxu0
      %v785 = vadd.f32 0.0, %v784
      %v786 = vpop.f32.mrf.mxu0
      %v787 = vadd.f32 0.0, %v786
      %788 = vmatmul.bf16.gmra.mxu0 %v650
      %v789 = vpop.f32.mrf.mxu0
      %v790 = vadd.f32 0.0, %v789
      %v791 = vpop.f32.mrf.mxu0
      %v792 = vadd.f32 0.0, %v791
      %793 = vmatmul.bf16.gmra.mxu0 %v651
      %v794 = vpop.f32.mrf.mxu0
      %v795 = vadd.f32 0.0, %v794
      %v796 = vpop.f32.mrf.mxu0
      %v797 = vadd.f32 0.0, %v796
      %798 = vmatmul.bf16.gmra.mxu0 %v652
      %v799 = vpop.f32.mrf.mxu0
      %v800 = vadd.f32 0.0, %v799
      %v801 = vpop.f32.mrf.mxu0
      %v802 = vadd.f32 0.0, %v801
      %803 = vmatmul.bf16.gmra.mxu0 %v653
      %v804 = vpop.f32.mrf.mxu0
      %v805 = vadd.f32 0.0, %v804
      %v806 = vpop.f32.mrf.mxu0
      %v807 = vadd.f32 0.0, %v806
      %808 = vmatmul.bf16.gmra.mxu0 %v654
      %v809 = vpop.f32.mrf.mxu0
      %v810 = vadd.f32 0.0, %v809
      %v811 = vpop.f32.mrf.mxu0
      %v812 = vadd.f32 0.0, %v811
      %813 = vmatmul.bf16.gmra.mxu0 %v655
      %v814 = vpop.f32.mrf.mxu0
      %v815 = vadd.f32 0.0, %v814
      %v816 = vpop.f32.mrf.mxu0
      %v817 = vadd.f32 0.0, %v816
      %818 = vdwg.mxu0
      %v819 = vld [vmem:[%s4] sm:$0x1]
      %v821 = vperm.slane %v819, 0
      %v823 = vmul.f32 %v730, %v821
      %v824 = vmul.f32 %v732, %v821
      %v825 = vmul.f32 %v735, %v821
      %v826 = vmul.f32 %v737, %v821
      %v827 = vmul.f32 %v740, %v821
      %v828 = vmul.f32 %v742, %v821
      %v829 = vmul.f32 %v745, %v821
      %v830 = vmul.f32 %v747, %v821
      %v831 = vmul.f32 %v750, %v821
      %v832 = vmul.f32 %v752, %v821
      %v833 = vmul.f32 %v755, %v821
      %v834 = vmul.f32 %v757, %v821
      %v835 = vmul.f32 %v760, %v821
      %v836 = vmul.f32 %v762, %v821
      %v837 = vmul.f32 %v765, %v821
      %v838 = vmul.f32 %v767, %v821
      %v839 = vmul.f32 %v770, %v821
      %v840 = vmul.f32 %v772, %v821
      %v841 = vmul.f32 %v775, %v821
      %v842 = vmul.f32 %v777, %v821
      %v843 = vmul.f32 %v780, %v821
      %v844 = vmul.f32 %v782, %v821
      %v845 = vmul.f32 %v785, %v821
      %v846 = vmul.f32 %v787, %v821
      %v847 = vmul.f32 %v790, %v821
      %v848 = vmul.f32 %v792, %v821
      %v849 = vmul.f32 %v795, %v821
      %v850 = vmul.f32 %v797, %v821
      %v851 = vmul.f32 %v800, %v821
      %v852 = vmul.f32 %v802, %v821
      %v853 = vmul.f32 %v805, %v821
      %v854 = vmul.f32 %v807, %v821
      %v855 = vmul.f32 %v810, %v821
      %v856 = vmul.f32 %v812, %v821
      %v857 = vmul.f32 %v815, %v821
      %v858 = vmul.f32 %v817, %v821
      %v859 = vld [vmem:[%s5] sm:$0x1]
      %v861 = vperm.slane %v859, 0
      %v863 = vadd.f32 %v823, %v861
      %v864 = vadd.f32 %v824, %v861
      %v865 = vadd.f32 %v825, %v861
      %v866 = vadd.f32 %v826, %v861
      %v867 = vadd.f32 %v827, %v861
      %v868 = vadd.f32 %v828, %v861
      %v869 = vadd.f32 %v829, %v861
      %v870 = vadd.f32 %v830, %v861
      %v871 = vadd.f32 %v831, %v861
      %v872 = vadd.f32 %v832, %v861
      %v873 = vadd.f32 %v833, %v861
      %v874 = vadd.f32 %v834, %v861
      %v875 = vadd.f32 %v835, %v861
      %v876 = vadd.f32 %v836, %v861
      %v877 = vadd.f32 %v837, %v861
      %v878 = vadd.f32 %v838, %v861
      %v879 = vadd.f32 %v839, %v861
      %v880 = vadd.f32 %v840, %v861
      %v881 = vadd.f32 %v841, %v861
      %v882 = vadd.f32 %v842, %v861
      %v883 = vadd.f32 %v843, %v861
      %v884 = vadd.f32 %v844, %v861
      %v885 = vadd.f32 %v845, %v861
      %v886 = vadd.f32 %v846, %v861
      %v887 = vadd.f32 %v847, %v861
      %v888 = vadd.f32 %v848, %v861
      %v889 = vadd.f32 %v849, %v861
      %v890 = vadd.f32 %v850, %v861
      %v891 = vadd.f32 %v851, %v861
      %v892 = vadd.f32 %v852, %v861
      %v893 = vadd.f32 %v853, %v861
      %v894 = vadd.f32 %v854, %v861
      %v895 = vadd.f32 %v855, %v861
      %v896 = vadd.f32 %v856, %v861
      %v897 = vadd.f32 %v857, %v861
      %v898 = vadd.f32 %v858, %v861
      %vm899 = vcmp.gt.f32.partialorder %v863, 0.0
      %vm900 = vcmp.gt.f32.partialorder %v864, 0.0
      %vm901 = vcmp.gt.f32.partialorder %v865, 0.0
      %vm902 = vcmp.gt.f32.partialorder %v866, 0.0
      %vm903 = vcmp.gt.f32.partialorder %v867, 0.0
      %vm904 = vcmp.gt.f32.partialorder %v868, 0.0
      %vm905 = vcmp.gt.f32.partialorder %v869, 0.0
      %vm906 = vcmp.gt.f32.partialorder %v870, 0.0
      %vm907 = vcmp.gt.f32.partialorder %v871, 0.0
      %vm908 = vcmp.gt.f32.partialorder %v872, 0.0
      %vm909 = vcmp.gt.f32.partialorder %v873, 0.0
      %vm910 = vcmp.gt.f32.partialorder %v874, 0.0
      %vm911 = vcmp.gt.f32.partialorder %v875, 0.0
      %vm912 = vcmp.gt.f32.partialorder %v876, 0.0
      %vm913 = vcmp.gt.f32.partialorder %v877, 0.0
      %vm914 = vcmp.gt.f32.partialorder %v878, 0.0
      %vm915 = vcmp.gt.f32.partialorder %v879, 0.0
      %vm916 = vcmp.gt.f32.partialorder %v880, 0.0
      %vm917 = vcmp.gt.f32.partialorder %v881, 0.0
      %vm918 = vcmp.gt.f32.partialorder %v882, 0.0
      %vm919 = vcmp.gt.f32.partialorder %v883, 0.0
      %vm920 = vcmp.gt.f32.partialorder %v884, 0.0
      %vm921 = vcmp.gt.f32.partialorder %v885, 0.0
      %vm922 = vcmp.gt.f32.partialorder %v886, 0.0
      %vm923 = vcmp.gt.f32.partialorder %v887, 0.0
      %vm924 = vcmp.gt.f32.partialorder %v888, 0.0
      %vm925 = vcmp.gt.f32.partialorder %v889, 0.0
      %vm926 = vcmp.gt.f32.partialorder %v890, 0.0
      %vm927 = vcmp.gt.f32.partialorder %v891, 0.0
      %vm928 = vcmp.gt.f32.partialorder %v892, 0.0
      %vm929 = vcmp.gt.f32.partialorder %v893, 0.0
      %vm930 = vcmp.gt.f32.partialorder %v894, 0.0
      %vm931 = vcmp.gt.f32.partialorder %v895, 0.0
      %vm932 = vcmp.gt.f32.partialorder %v896, 0.0
      %vm933 = vcmp.gt.f32.partialorder %v897, 0.0
      %vm934 = vcmp.gt.f32.partialorder %v898, 0.0
      %v935 = vmul.f32 %v863, 0.1
      %v936 = vmul.f32 %v864, 0.1
      %v937 = vmul.f32 %v865, 0.1
      %v938 = vmul.f32 %v866, 0.1
      %v939 = vmul.f32 %v867, 0.1
      %v940 = vmul.f32 %v868, 0.1
      %v941 = vmul.f32 %v869, 0.1
      %v942 = vmul.f32 %v870, 0.1
      %v943 = vmul.f32 %v871, 0.1
      %v944 = vmul.f32 %v872, 0.1
      %v945 = vmul.f32 %v873, 0.1
      %v946 = vmul.f32 %v874, 0.1
      %v947 = vmul.f32 %v875, 0.1
      %v948 = vmul.f32 %v876, 0.1
      %v949 = vmul.f32 %v877, 0.1
      %v950 = vmul.f32 %v878, 0.1
      %v951 = vmul.f32 %v879, 0.1
      %v952 = vmul.f32 %v880, 0.1
      %v953 = vmul.f32 %v881, 0.1
      %v954 = vmul.f32 %v882, 0.1
      %v955 = vmul.f32 %v883, 0.1
      %v956 = vmul.f32 %v884, 0.1
      %v957 = vmul.f32 %v885, 0.1
      %v958 = vmul.f32 %v886, 0.1
      %v959 = vmul.f32 %v887, 0.1
      %v960 = vmul.f32 %v888, 0.1
      %v961 = vmul.f32 %v889, 0.1
      %v962 = vmul.f32 %v890, 0.1
      %v963 = vmul.f32 %v891, 0.1
      %v964 = vmul.f32 %v892, 0.1
      %v965 = vmul.f32 %v893, 0.1
      %v966 = vmul.f32 %v894, 0.1
      %v967 = vmul.f32 %v895, 0.1
      %v968 = vmul.f32 %v896, 0.1
      %v969 = vmul.f32 %v897, 0.1
      %v970 = vmul.f32 %v898, 0.1
      %v971 = vsel %vm899, %v863, %v935
      %v972 = vsel %vm900, %v864, %v936
      %v973 = vsel %vm901, %v865, %v937
      %v974 = vsel %vm902, %v866, %v938
      %v975 = vsel %vm903, %v867, %v939
      %v976 = vsel %vm904, %v868, %v940
      %v977 = vsel %vm905, %v869, %v941
      %v978 = vsel %vm906, %v870, %v942
      %v979 = vsel %vm907, %v871, %v943
      %v980 = vsel %vm908, %v872, %v944
      %v981 = vsel %vm909, %v873, %v945
      %v982 = vsel %vm910, %v874, %v946
      %v983 = vsel %vm911, %v875, %v947
      %v984 = vsel %vm912, %v876, %v948
      %v985 = vsel %vm913, %v877, %v949
      %v986 = vsel %vm914, %v878, %v950
      %v987 = vsel %vm915, %v879, %v951
      %v988 = vsel %vm916, %v880, %v952
      %v989 = vsel %vm917, %v881, %v953
      %v990 = vsel %vm918, %v882, %v954
      %v991 = vsel %vm919, %v883, %v955
      %v992 = vsel %vm920, %v884, %v956
      %v993 = vsel %vm921, %v885, %v957
      %v994 = vsel %vm922, %v886, %v958
      %v995 = vsel %vm923, %v887, %v959
      %v996 = vsel %vm924, %v888, %v960
      %v997 = vsel %vm925, %v889, %v961
      %v998 = vsel %vm926, %v890, %v962
      %v999 = vsel %vm927, %v891, %v963
      %v1000 = vsel %vm928, %v892, %v964
      %v1001 = vsel %vm929, %v893, %v965
      %v1002 = vsel %vm930, %v894, %v966
      %v1003 = vsel %vm931, %v895, %v967
      %v1004 = vsel %vm932, %v896, %v968
      %v1005 = vsel %vm933, %v897, %v969
      %v1006 = vsel %vm934, %v898, %v970
      %v1007 = vld [vmem:[%s590] sm:$0xff]
      %v1008 = vld [vmem:[%s590 + $0x8] sm:$0xff]
      %v1009 = vld [vmem:[%s590 + $0x10] sm:$0xff]
      %v1010 = vld [vmem:[%s590 + $0x18] sm:$0xff]
      %v1011 = vld [vmem:[%s590 + $0x20] sm:$0xff]
      %v1012 = vld [vmem:[%s590 + $0x28] sm:$0xff]
      %v1013 = vld [vmem:[%s590 + $0x30] sm:$0xff]
      %v1014 = vld [vmem:[%s590 + $0x38] sm:$0xff]
      %v1015 = vld [vmem:[%s590 + $0x40] sm:$0xff]
      %v1016 = vld [vmem:[%s590 + $0x48] sm:$0xff]
      %v1017 = vld [vmem:[%s590 + $0x50] sm:$0xff]
      %v1018 = vld [vmem:[%s590 + $0x58] sm:$0xff]
      %v1019 = vld [vmem:[%s590 + $0x60] sm:$0xff]
      %v1020 = vld [vmem:[%s590 + $0x68] sm:$0xff]
      %v1021 = vld [vmem:[%s590 + $0x70] sm:$0xff]
      %v1022 = vld [vmem:[%s590 + $0x78] sm:$0xff]
      %v1023 = vld [vmem:[%s590 + $0x80] sm:$0xff]
      %v1024 = vld [vmem:[%s590 + $0x88] sm:$0xff]
      %v1025 = vld [vmem:[%s590 + $0x90] sm:$0xff]
      %v1026 = vld [vmem:[%s590 + $0x98] sm:$0xff]
      %v1027 = vld [vmem:[%s590 + $0xa0] sm:$0xff]
      %v1028 = vld [vmem:[%s590 + $0xa8] sm:$0xff]
      %v1029 = vld [vmem:[%s590 + $0xb0] sm:$0xff]
      %v1030 = vld [vmem:[%s590 + $0xb8] sm:$0xff]
      %v1031 = vld [vmem:[%s590 + $0xc0] sm:$0xff]
      %v1032 = vld [vmem:[%s590 + $0xc8] sm:$0xff]
      %v1033 = vld [vmem:[%s590 + $0xd0] sm:$0xff]
      %v1034 = vld [vmem:[%s590 + $0xd8] sm:$0xff]
      %v1035 = vld [vmem:[%s590 + $0xe0] sm:$0xff]
      %v1036 = vld [vmem:[%s590 + $0xe8] sm:$0xff]
      %v1037 = vld [vmem:[%s590 + $0xf0] sm:$0xff]
      %v1038 = vld [vmem:[%s590 + $0xf8] sm:$0xff]
      %v1039 = vld [vmem:[%s590 + $0x100] sm:$0xff]
      %v1040 = vld [vmem:[%s590 + $0x108] sm:$0xff]
      %v1041 = vld [vmem:[%s590 + $0x110] sm:$0xff]
      %v1042 = vld [vmem:[%s590 + $0x118] sm:$0xff]
      %1044 = vset.pattern.permute.xlu0 0
      %1045 = vperm.xlu0 %1044, %v1007
      %v1046 = vpop.permute.xlu0 %1045
      %1049 = vset.pattern.permute.xlu0 0
      %1050 = vperm.xlu0 %1049, %v1008
      %v1051 = vpop.permute.xlu0 %1050
      %1054 = vset.pattern.permute.xlu0 0
      %1055 = vperm.xlu0 %1054, %v1009
      %v1056 = vpop.permute.xlu0 %1055
      %1059 = vset.pattern.permute.xlu0 0
      %1060 = vperm.xlu0 %1059, %v1010
      %v1061 = vpop.permute.xlu0 %1060
      %1064 = vset.pattern.permute.xlu0 0
      %1065 = vperm.xlu0 %1064, %v1011
      %v1066 = vpop.permute.xlu0 %1065
      %1069 = vset.pattern.permute.xlu0 0
      %1070 = vperm.xlu0 %1069, %v1012
      %v1071 = vpop.permute.xlu0 %1070
      %1074 = vset.pattern.permute.xlu0 0
      %1075 = vperm.xlu0 %1074, %v1013
      %v1076 = vpop.permute.xlu0 %1075
      %1079 = vset.pattern.permute.xlu0 0
      %1080 = vperm.xlu0 %1079, %v1014
      %v1081 = vpop.permute.xlu0 %1080
      %1084 = vset.pattern.permute.xlu0 0
      %1085 = vperm.xlu0 %1084, %v1015
      %v1086 = vpop.permute.xlu0 %1085
      %1089 = vset.pattern.permute.xlu0 0
      %1090 = vperm.xlu0 %1089, %v1016
      %v1091 = vpop.permute.xlu0 %1090
      %1094 = vset.pattern.permute.xlu0 0
      %1095 = vperm.xlu0 %1094, %v1017
      %v1096 = vpop.permute.xlu0 %1095
      %1099 = vset.pattern.permute.xlu0 0
      %1100 = vperm.xlu0 %1099, %v1018
      %v1101 = vpop.permute.xlu0 %1100
      %1104 = vset.pattern.permute.xlu0 0
      %1105 = vperm.xlu0 %1104, %v1019
      %v1106 = vpop.permute.xlu0 %1105
      %1109 = vset.pattern.permute.xlu0 0
      %1110 = vperm.xlu0 %1109, %v1020
      %v1111 = vpop.permute.xlu0 %1110
      %1114 = vset.pattern.permute.xlu0 0
      %1115 = vperm.xlu0 %1114, %v1021
      %v1116 = vpop.permute.xlu0 %1115
      %1119 = vset.pattern.permute.xlu0 0
      %1120 = vperm.xlu0 %1119, %v1022
      %v1121 = vpop.permute.xlu0 %1120
      %1124 = vset.pattern.permute.xlu0 0
      %1125 = vperm.xlu0 %1124, %v1023
      %v1126 = vpop.permute.xlu0 %1125
      %1129 = vset.pattern.permute.xlu0 0
      %1130 = vperm.xlu0 %1129, %v1024
      %v1131 = vpop.permute.xlu0 %1130
      %1134 = vset.pattern.permute.xlu0 0
      %1135 = vperm.xlu0 %1134, %v1025
      %v1136 = vpop.permute.xlu0 %1135
      %1139 = vset.pattern.permute.xlu0 0
      %1140 = vperm.xlu0 %1139, %v1026
      %v1141 = vpop.permute.xlu0 %1140
      %1144 = vset.pattern.permute.xlu0 0
      %1145 = vperm.xlu0 %1144, %v1027
      %v1146 = vpop.permute.xlu0 %1145
      %1149 = vset.pattern.permute.xlu0 0
      %1150 = vperm.xlu0 %1149, %v1028
      %v1151 = vpop.permute.xlu0 %1150
      %1154 = vset.pattern.permute.xlu0 0
      %1155 = vperm.xlu0 %1154, %v1029
      %v1156 = vpop.permute.xlu0 %1155
      %1159 = vset.pattern.permute.xlu0 0
      %1160 = vperm.xlu0 %1159, %v1030
      %v1161 = vpop.permute.xlu0 %1160
      %1164 = vset.pattern.permute.xlu0 0
      %1165 = vperm.xlu0 %1164, %v1031
      %v1166 = vpop.permute.xlu0 %1165
      %1169 = vset.pattern.permute.xlu0 0
      %1170 = vperm.xlu0 %1169, %v1032
      %v1171 = vpop.permute.xlu0 %1170
      %1174 = vset.pattern.permute.xlu0 0
      %1175 = vperm.xlu0 %1174, %v1033
      %v1176 = vpop.permute.xlu0 %1175
      %1179 = vset.pattern.permute.xlu0 0
      %1180 = vperm.xlu0 %1179, %v1034
      %v1181 = vpop.permute.xlu0 %1180
      %1184 = vset.pattern.permute.xlu0 0
      %1185 = vperm.xlu0 %1184, %v1035
      %v1186 = vpop.permute.xlu0 %1185
      %1189 = vset.pattern.permute.xlu0 0
      %1190 = vperm.xlu0 %1189, %v1036
      %v1191 = vpop.permute.xlu0 %1190
      %1194 = vset.pattern.permute.xlu0 0
      %1195 = vperm.xlu0 %1194, %v1037
      %v1196 = vpop.permute.xlu0 %1195
      %1199 = vset.pattern.permute.xlu0 0
      %1200 = vperm.xlu0 %1199, %v1038
      %v1201 = vpop.permute.xlu0 %1200
      %1204 = vset.pattern.permute.xlu0 0
      %1205 = vperm.xlu0 %1204, %v1039
      %v1206 = vpop.permute.xlu0 %1205
      %1209 = vset.pattern.permute.xlu0 0
      %1210 = vperm.xlu0 %1209, %v1040
      %v1211 = vpop.permute.xlu0 %1210
      %1214 = vset.pattern.permute.xlu0 0
      %1215 = vperm.xlu0 %1214, %v1041
      %v1216 = vpop.permute.xlu0 %1215
      %1219 = vset.pattern.permute.xlu0 0
      %1220 = vperm.xlu0 %1219, %v1042
      %v1221 = vpop.permute.xlu0 %1220
      %v1223 = vmul.f32 %v971, %v1046
      %v1224 = vmul.f32 %v972, %v1051
      %v1225 = vmul.f32 %v973, %v1056
      %v1226 = vmul.f32 %v974, %v1061
      %v1227 = vmul.f32 %v975, %v1066
      %v1228 = vmul.f32 %v976, %v1071
      %v1229 = vmul.f32 %v977, %v1076
      %v1230 = vmul.f32 %v978, %v1081
      %v1231 = vmul.f32 %v979, %v1086
      %v1232 = vmul.f32 %v980, %v1091
      %v1233 = vmul.f32 %v981, %v1096
      %v1234 = vmul.f32 %v982, %v1101
      %v1235 = vmul.f32 %v983, %v1106
      %v1236 = vmul.f32 %v984, %v1111
      %v1237 = vmul.f32 %v985, %v1116
      %v1238 = vmul.f32 %v986, %v1121
      %v1239 = vmul.f32 %v987, %v1126
      %v1240 = vmul.f32 %v988, %v1131
      %v1241 = vmul.f32 %v989, %v1136
      %v1242 = vmul.f32 %v990, %v1141
      %v1243 = vmul.f32 %v991, %v1146
      %v1244 = vmul.f32 %v992, %v1151
      %v1245 = vmul.f32 %v993, %v1156
      %v1246 = vmul.f32 %v994, %v1161
      %v1247 = vmul.f32 %v995, %v1166
      %v1248 = vmul.f32 %v996, %v1171
      %v1249 = vmul.f32 %v997, %v1176
      %v1250 = vmul.f32 %v998, %v1181
      %v1251 = vmul.f32 %v999, %v1186
      %v1252 = vmul.f32 %v1000, %v1191
      %v1253 = vmul.f32 %v1001, %v1196
      %v1254 = vmul.f32 %v1002, %v1201
      %v1255 = vmul.f32 %v1003, %v1206
      %v1256 = vmul.f32 %v1004, %v1211
      %v1257 = vmul.f32 %v1005, %v1216
      %v1258 = vmul.f32 %v1006, %v1221
      %v1259 = vrot.slane %v1223, 7
      %v1260 = vrot.slane %v1224, 7
      %v1261 = vrot.slane %v1225, 7
      %v1262 = vrot.slane %v1226, 7
      %v1263 = vrot.slane %v1227, 7
      %v1264 = vrot.slane %v1228, 7
      %v1265 = vrot.slane %v1229, 7
      %v1266 = vrot.slane %v1230, 7
      %v1267 = vrot.slane %v1231, 7
      %v1268 = vrot.slane %v1232, 7
      %v1269 = vrot.slane %v1233, 7
      %v1270 = vrot.slane %v1234, 7
      %v1271 = vrot.slane %v1235, 7
      %v1272 = vrot.slane %v1236, 7
      %v1273 = vrot.slane %v1237, 7
      %v1274 = vrot.slane %v1238, 7
      %v1275 = vrot.slane %v1239, 7
      %v1276 = vrot.slane %v1240, 7
      %v1277 = vrot.slane %v1241, 7
      %v1278 = vrot.slane %v1242, 7
      %v1279 = vrot.slane %v1243, 7
      %v1280 = vrot.slane %v1244, 7
      %v1281 = vrot.slane %v1245, 7
      %v1282 = vrot.slane %v1246, 7
      %v1283 = vrot.slane %v1247, 7
      %v1284 = vrot.slane %v1248, 7
      %v1285 = vrot.slane %v1249, 7
      %v1286 = vrot.slane %v1250, 7
      %v1287 = vrot.slane %v1251, 7
      %v1288 = vrot.slane %v1252, 7
      %v1289 = vrot.slane %v1253, 7
      %v1290 = vrot.slane %v1254, 7
      %v1291 = vrot.slane %v1255, 7
      %v1292 = vrot.slane %v1256, 7
      %v1293 = vrot.slane %v1257, 7
      %v1294 = vrot.slane %v1258, 7
      %v1295 = vlaneseq
      %v1296 = vshrl.u32 %v1295, 7
      %vm1297 = vcmp.lt.s32.totalorder %v1296, 1
      %v1298 = vsel %vm1297, %v1293, %v1294
      %v1299 = vsel %vm1297, %v1292, %v1293
      %v1300 = vsel %vm1297, %v1291, %v1292
      %v1301 = vsel %vm1297, %v1290, %v1291
      %v1302 = vsel %vm1297, %v1289, %v1290
      %v1303 = vsel %vm1297, %v1288, %v1289
      %v1304 = vsel %vm1297, %v1287, %v1288
      %v1305 = vsel %vm1297, %v1286, %v1287
      %v1306 = vsel %vm1297, %v1285, %v1286
      %v1307 = vsel %vm1297, %v1284, %v1285
      %v1308 = vsel %vm1297, %v1283, %v1284
      %v1309 = vsel %vm1297, %v1282, %v1283
      %v1310 = vsel %vm1297, %v1281, %v1282
      %v1311 = vsel %vm1297, %v1280, %v1281
      %v1312 = vsel %vm1297, %v1279, %v1280
      %v1313 = vsel %vm1297, %v1278, %v1279
      %v1314 = vsel %vm1297, %v1277, %v1278
      %v1315 = vsel %vm1297, %v1276, %v1277
      %v1316 = vsel %vm1297, %v1275, %v1276
      %v1317 = vsel %vm1297, %v1274, %v1275
      %v1318 = vsel %vm1297, %v1273, %v1274
      %v1319 = vsel %vm1297, %v1272, %v1273
      %v1320 = vsel %vm1297, %v1271, %v1272
      %v1321 = vsel %vm1297, %v1270, %v1271
      %v1322 = vsel %vm1297, %v1269, %v1270
      %v1323 = vsel %vm1297, %v1268, %v1269
      %v1324 = vsel %vm1297, %v1267, %v1268
      %v1325 = vsel %vm1297, %v1266, %v1267
      %v1326 = vsel %vm1297, %v1265, %v1266
      %v1327 = vsel %vm1297, %v1264, %v1265
      %v1328 = vsel %vm1297, %v1263, %v1264
      %v1329 = vsel %vm1297, %v1262, %v1263
      %v1330 = vsel %vm1297, %v1261, %v1262
      %v1331 = vsel %vm1297, %v1260, %v1261
      %v1332 = vsel %vm1297, %v1259, %v1260
      %v1333 = vsel %vm1297, %v1294, %v1259
      %v1334 = vld [vmem:[%s9] sm:$0xff]
      %v1335 = vld [vmem:[%s9 + $0x8] sm:$0xff]
      %v1336 = vld [vmem:[%s9 + $0x10] sm:$0xff]
      %v1337 = vld [vmem:[%s9 + $0x18] sm:$0xff]
      %v1338 = vld [vmem:[%s9 + $0x20] sm:$0xff]
      %v1339 = vld [vmem:[%s9 + $0x28] sm:$0xff]
      %v1340 = vld [vmem:[%s9 + $0x30] sm:$0xff]
      %v1341 = vld [vmem:[%s9 + $0x38] sm:$0xff]
      %v1342 = vld [vmem:[%s9 + $0x40] sm:$0xff]
      %v1343 = vld [vmem:[%s9 + $0x48] sm:$0xff]
      %v1344 = vld [vmem:[%s9 + $0x50] sm:$0xff]
      %v1345 = vld [vmem:[%s9 + $0x58] sm:$0xff]
      %v1346 = vld [vmem:[%s9 + $0x60] sm:$0xff]
      %v1347 = vld [vmem:[%s9 + $0x68] sm:$0xff]
      %v1348 = vld [vmem:[%s9 + $0x70] sm:$0xff]
      %v1349 = vld [vmem:[%s9 + $0x78] sm:$0xff]
      %v1350 = vld [vmem:[%s9 + $0x80] sm:$0xff]
      %v1351 = vld [vmem:[%s9 + $0x88] sm:$0xff]
      %v1352 = vld [vmem:[%s9 + $0x90] sm:$0xff]
      %v1353 = vld [vmem:[%s9 + $0x98] sm:$0xff]
      %v1354 = vld [vmem:[%s9 + $0xa0] sm:$0xff]
      %v1355 = vld [vmem:[%s9 + $0xa8] sm:$0xff]
      %v1356 = vld [vmem:[%s9 + $0xb0] sm:$0xff]
      %v1357 = vld [vmem:[%s9 + $0xb8] sm:$0xff]
      %v1358 = vld [vmem:[%s9 + $0xc0] sm:$0xff]
      %v1359 = vld [vmem:[%s9 + $0xc8] sm:$0xff]
      %v1360 = vld [vmem:[%s9 + $0xd0] sm:$0xff]
      %v1361 = vld [vmem:[%s9 + $0xd8] sm:$0xff]
      %v1362 = vld [vmem:[%s9 + $0xe0] sm:$0xff]
      %v1363 = vld [vmem:[%s9 + $0xe8] sm:$0xff]
      %v1364 = vld [vmem:[%s9 + $0xf0] sm:$0xff]
      %v1365 = vld [vmem:[%s9 + $0xf8] sm:$0xff]
      %v1366 = vld [vmem:[%s9 + $0x100] sm:$0xff]
      %v1367 = vld [vmem:[%s9 + $0x108] sm:$0xff]
      %v1368 = vld [vmem:[%s9 + $0x110] sm:$0xff]
      %v1369 = vld [vmem:[%s9 + $0x118] sm:$0xff]
      %1371 = vset.pattern.permute.xlu0 0
      %1372 = vperm.xlu0 %1371, %v1334
      %v1373 = vpop.permute.xlu0 %1372
      %1376 = vset.pattern.permute.xlu0 0
      %1377 = vperm.xlu0 %1376, %v1335
      %v1378 = vpop.permute.xlu0 %1377
      %1381 = vset.pattern.permute.xlu0 0
      %1382 = vperm.xlu0 %1381, %v1336
      %v1383 = vpop.permute.xlu0 %1382
      %1386 = vset.pattern.permute.xlu0 0
      %1387 = vperm.xlu0 %1386, %v1337
      %v1388 = vpop.permute.xlu0 %1387
      %1391 = vset.pattern.permute.xlu0 0
      %1392 = vperm.xlu0 %1391, %v1338
      %v1393 = vpop.permute.xlu0 %1392
      %1396 = vset.pattern.permute.xlu0 0
      %1397 = vperm.xlu0 %1396, %v1339
      %v1398 = vpop.permute.xlu0 %1397
      %1401 = vset.pattern.permute.xlu0 0
      %1402 = vperm.xlu0 %1401, %v1340
      %v1403 = vpop.permute.xlu0 %1402
      %1406 = vset.pattern.permute.xlu0 0
      %1407 = vperm.xlu0 %1406, %v1341
      %v1408 = vpop.permute.xlu0 %1407
      %1411 = vset.pattern.permute.xlu0 0
      %1412 = vperm.xlu0 %1411, %v1342
      %v1413 = vpop.permute.xlu0 %1412
      %1416 = vset.pattern.permute.xlu0 0
      %1417 = vperm.xlu0 %1416, %v1343
      %v1418 = vpop.permute.xlu0 %1417
      %1421 = vset.pattern.permute.xlu0 0
      %1422 = vperm.xlu0 %1421, %v1344
      %v1423 = vpop.permute.xlu0 %1422
      %1426 = vset.pattern.permute.xlu0 0
      %1427 = vperm.xlu0 %1426, %v1345
      %v1428 = vpop.permute.xlu0 %1427
      %1431 = vset.pattern.permute.xlu0 0
      %1432 = vperm.xlu0 %1431, %v1346
      %v1433 = vpop.permute.xlu0 %1432
      %1436 = vset.pattern.permute.xlu0 0
      %1437 = vperm.xlu0 %1436, %v1347
      %v1438 = vpop.permute.xlu0 %1437
      %1441 = vset.pattern.permute.xlu0 0
      %1442 = vperm.xlu0 %1441, %v1348
      %v1443 = vpop.permute.xlu0 %1442
      %1446 = vset.pattern.permute.xlu0 0
      %1447 = vperm.xlu0 %1446, %v1349
      %v1448 = vpop.permute.xlu0 %1447
      %1451 = vset.pattern.permute.xlu0 0
      %1452 = vperm.xlu0 %1451, %v1350
      %v1453 = vpop.permute.xlu0 %1452
      %1456 = vset.pattern.permute.xlu0 0
      %1457 = vperm.xlu0 %1456, %v1351
      %v1458 = vpop.permute.xlu0 %1457
      %1461 = vset.pattern.permute.xlu0 0
      %1462 = vperm.xlu0 %1461, %v1352
      %v1463 = vpop.permute.xlu0 %1462
      %1466 = vset.pattern.permute.xlu0 0
      %1467 = vperm.xlu0 %1466, %v1353
      %v1468 = vpop.permute.xlu0 %1467
      %1471 = vset.pattern.permute.xlu0 0
      %1472 = vperm.xlu0 %1471, %v1354
      %v1473 = vpop.permute.xlu0 %1472
      %1476 = vset.pattern.permute.xlu0 0
      %1477 = vperm.xlu0 %1476, %v1355
      %v1478 = vpop.permute.xlu0 %1477
      %1481 = vset.pattern.permute.xlu0 0
      %1482 = vperm.xlu0 %1481, %v1356
      %v1483 = vpop.permute.xlu0 %1482
      %1486 = vset.pattern.permute.xlu0 0
      %1487 = vperm.xlu0 %1486, %v1357
      %v1488 = vpop.permute.xlu0 %1487
      %1491 = vset.pattern.permute.xlu0 0
      %1492 = vperm.xlu0 %1491, %v1358
      %v1493 = vpop.permute.xlu0 %1492
      %1496 = vset.pattern.permute.xlu0 0
      %1497 = vperm.xlu0 %1496, %v1359
      %v1498 = vpop.permute.xlu0 %1497
      %1501 = vset.pattern.permute.xlu0 0
      %1502 = vperm.xlu0 %1501, %v1360
      %v1503 = vpop.permute.xlu0 %1502
      %1506 = vset.pattern.permute.xlu0 0
      %1507 = vperm.xlu0 %1506, %v1361
      %v1508 = vpop.permute.xlu0 %1507
      %1511 = vset.pattern.permute.xlu0 0
      %1512 = vperm.xlu0 %1511, %v1362
      %v1513 = vpop.permute.xlu0 %1512
      %1516 = vset.pattern.permute.xlu0 0
      %1517 = vperm.xlu0 %1516, %v1363
      %v1518 = vpop.permute.xlu0 %1517
      %1521 = vset.pattern.permute.xlu0 0
      %1522 = vperm.xlu0 %1521, %v1364
      %v1523 = vpop.permute.xlu0 %1522
      %1526 = vset.pattern.permute.xlu0 0
      %1527 = vperm.xlu0 %1526, %v1365
      %v1528 = vpop.permute.xlu0 %1527
      %1531 = vset.pattern.permute.xlu0 0
      %1532 = vperm.xlu0 %1531, %v1366
      %v1533 = vpop.permute.xlu0 %1532
      %1536 = vset.pattern.permute.xlu0 0
      %1537 = vperm.xlu0 %1536, %v1367
      %v1538 = vpop.permute.xlu0 %1537
      %1541 = vset.pattern.permute.xlu0 0
      %1542 = vperm.xlu0 %1541, %v1368
      %v1543 = vpop.permute.xlu0 %1542
      %1546 = vset.pattern.permute.xlu0 0
      %1547 = vperm.xlu0 %1546, %v1369
      %v1548 = vpop.permute.xlu0 %1547
      %v1550 = vmul.f32 %v1333, %v1373
      %v1551 = vmul.f32 %v1332, %v1378
      %v1552 = vmul.f32 %v1331, %v1383
      %v1553 = vmul.f32 %v1330, %v1388
      %v1554 = vmul.f32 %v1329, %v1393
      %v1555 = vmul.f32 %v1328, %v1398
      %v1556 = vmul.f32 %v1327, %v1403
      %v1557 = vmul.f32 %v1326, %v1408
      %v1558 = vmul.f32 %v1325, %v1413
      %v1559 = vmul.f32 %v1324, %v1418
      %v1560 = vmul.f32 %v1323, %v1423
      %v1561 = vmul.f32 %v1322, %v1428
      %v1562 = vmul.f32 %v1321, %v1433
      %v1563 = vmul.f32 %v1320, %v1438
      %v1564 = vmul.f32 %v1319, %v1443
      %v1565 = vmul.f32 %v1318, %v1448
      %v1566 = vmul.f32 %v1317, %v1453
      %v1567 = vmul.f32 %v1316, %v1458
      %v1568 = vmul.f32 %v1315, %v1463
      %v1569 = vmul.f32 %v1314, %v1468
      %v1570 = vmul.f32 %v1313, %v1473
      %v1571 = vmul.f32 %v1312, %v1478
      %v1572 = vmul.f32 %v1311, %v1483
      %v1573 = vmul.f32 %v1310, %v1488
      %v1574 = vmul.f32 %v1309, %v1493
      %v1575 = vmul.f32 %v1308, %v1498
      %v1576 = vmul.f32 %v1307, %v1503
      %v1577 = vmul.f32 %v1306, %v1508
      %v1578 = vmul.f32 %v1305, %v1513
      %v1579 = vmul.f32 %v1304, %v1518
      %v1580 = vmul.f32 %v1303, %v1523
      %v1581 = vmul.f32 %v1302, %v1528
      %v1582 = vmul.f32 %v1301, %v1533
      %v1583 = vmul.f32 %v1300, %v1538
      %v1584 = vmul.f32 %v1299, %v1543
      %v1585 = vmul.f32 %v1298, %v1548
      %v1586 = vrot.slane %v1223, 1
      %v1587 = vrot.slane %v1224, 1
      %v1588 = vrot.slane %v1225, 1
      %v1589 = vrot.slane %v1226, 1
      %v1590 = vrot.slane %v1227, 1
      %v1591 = vrot.slane %v1228, 1
      %v1592 = vrot.slane %v1229, 1
      %v1593 = vrot.slane %v1230, 1
      %v1594 = vrot.slane %v1231, 1
      %v1595 = vrot.slane %v1232, 1
      %v1596 = vrot.slane %v1233, 1
      %v1597 = vrot.slane %v1234, 1
      %v1598 = vrot.slane %v1235, 1
      %v1599 = vrot.slane %v1236, 1
      %v1600 = vrot.slane %v1237, 1
      %v1601 = vrot.slane %v1238, 1
      %v1602 = vrot.slane %v1239, 1
      %v1603 = vrot.slane %v1240, 1
      %v1604 = vrot.slane %v1241, 1
      %v1605 = vrot.slane %v1242, 1
      %v1606 = vrot.slane %v1243, 1
      %v1607 = vrot.slane %v1244, 1
      %v1608 = vrot.slane %v1245, 1
      %v1609 = vrot.slane %v1246, 1
      %v1610 = vrot.slane %v1247, 1
      %v1611 = vrot.slane %v1248, 1
      %v1612 = vrot.slane %v1249, 1
      %v1613 = vrot.slane %v1250, 1
      %v1614 = vrot.slane %v1251, 1
      %v1615 = vrot.slane %v1252, 1
      %v1616 = vrot.slane %v1253, 1
      %v1617 = vrot.slane %v1254, 1
      %v1618 = vrot.slane %v1255, 1
      %v1619 = vrot.slane %v1256, 1
      %v1620 = vrot.slane %v1257, 1
      %v1621 = vrot.slane %v1258, 1
      %vm1622 = vcmp.lt.s32.totalorder %v1296, 7
      %v1623 = vsel %vm1622, %v1620, %v1621
      %v1624 = vsel %vm1622, %v1619, %v1620
      %v1625 = vsel %vm1622, %v1618, %v1619
      %v1626 = vsel %vm1622, %v1617, %v1618
      %v1627 = vsel %vm1622, %v1616, %v1617
      %v1628 = vsel %vm1622, %v1615, %v1616
      %v1629 = vsel %vm1622, %v1614, %v1615
      %v1630 = vsel %vm1622, %v1613, %v1614
      %v1631 = vsel %vm1622, %v1612, %v1613
      %v1632 = vsel %vm1622, %v1611, %v1612
      %v1633 = vsel %vm1622, %v1610, %v1611
      %v1634 = vsel %vm1622, %v1609, %v1610
      %v1635 = vsel %vm1622, %v1608, %v1609
      %v1636 = vsel %vm1622, %v1607, %v1608
      %v1637 = vsel %vm1622, %v1606, %v1607
      %v1638 = vsel %vm1622, %v1605, %v1606
      %v1639 = vsel %vm1622, %v1604, %v1605
      %v1640 = vsel %vm1622, %v1603, %v1604
      %v1641 = vsel %vm1622, %v1602, %v1603
      %v1642 = vsel %vm1622, %v1601, %v1602
      %v1643 = vsel %vm1622, %v1600, %v1601
      %v1644 = vsel %vm1622, %v1599, %v1600
      %v1645 = vsel %vm1622, %v1598, %v1599
      %v1646 = vsel %vm1622, %v1597, %v1598
      %v1647 = vsel %vm1622, %v1596, %v1597
      %v1648 = vsel %vm1622, %v1595, %v1596
      %v1649 = vsel %vm1622, %v1594, %v1595
      %v1650 = vsel %vm1622, %v1593, %v1594
      %v1651 = vsel %vm1622, %v1592, %v1593
      %v1652 = vsel %vm1622, %v1591, %v1592
      %v1653 = vsel %vm1622, %v1590, %v1591
      %v1654 = vsel %vm1622, %v1589, %v1590
      %v1655 = vsel %vm1622, %v1588, %v1589
      %v1656 = vsel %vm1622, %v1587, %v1588
      %v1657 = vsel %vm1622, %v1586, %v1587
      %v1658 = vsel %vm1622, %v1621, %v1586
      %v1659 = vld [vmem:[%s10] sm:$0xff]
      %v1660 = vld [vmem:[%s10 + $0x8] sm:$0xff]
      %v1661 = vld [vmem:[%s10 + $0x10] sm:$0xff]
      %v1662 = vld [vmem:[%s10 + $0x18] sm:$0xff]
      %v1663 = vld [vmem:[%s10 + $0x20] sm:$0xff]
      %v1664 = vld [vmem:[%s10 + $0x28] sm:$0xff]
      %v1665 = vld [vmem:[%s10 + $0x30] sm:$0xff]
      %v1666 = vld [vmem:[%s10 + $0x38] sm:$0xff]
      %v1667 = vld [vmem:[%s10 + $0x40] sm:$0xff]
      %v1668 = vld [vmem:[%s10 + $0x48] sm:$0xff]
      %v1669 = vld [vmem:[%s10 + $0x50] sm:$0xff]
      %v1670 = vld [vmem:[%s10 + $0x58] sm:$0xff]
      %v1671 = vld [vmem:[%s10 + $0x60] sm:$0xff]
      %v1672 = vld [vmem:[%s10 + $0x68] sm:$0xff]
      %v1673 = vld [vmem:[%s10 + $0x70] sm:$0xff]
      %v1674 = vld [vmem:[%s10 + $0x78] sm:$0xff]
      %v1675 = vld [vmem:[%s10 + $0x80] sm:$0xff]
      %v1676 = vld [vmem:[%s10 + $0x88] sm:$0xff]
      %v1677 = vld [vmem:[%s10 + $0x90] sm:$0xff]
      %v1678 = vld [vmem:[%s10 + $0x98] sm:$0xff]
      %v1679 = vld [vmem:[%s10 + $0xa0] sm:$0xff]
      %v1680 = vld [vmem:[%s10 + $0xa8] sm:$0xff]
      %v1681 = vld [vmem:[%s10 + $0xb0] sm:$0xff]
      %v1682 = vld [vmem:[%s10 + $0xb8] sm:$0xff]
      %v1683 = vld [vmem:[%s10 + $0xc0] sm:$0xff]
      %v1684 = vld [vmem:[%s10 + $0xc8] sm:$0xff]
      %v1685 = vld [vmem:[%s10 + $0xd0] sm:$0xff]
      %v1686 = vld [vmem:[%s10 + $0xd8] sm:$0xff]
      %v1687 = vld [vmem:[%s10 + $0xe0] sm:$0xff]
      %v1688 = vld [vmem:[%s10 + $0xe8] sm:$0xff]
      %v1689 = vld [vmem:[%s10 + $0xf0] sm:$0xff]
      %v1690 = vld [vmem:[%s10 + $0xf8] sm:$0xff]
      %v1691 = vld [vmem:[%s10 + $0x100] sm:$0xff]
      %v1692 = vld [vmem:[%s10 + $0x108] sm:$0xff]
      %v1693 = vld [vmem:[%s10 + $0x110] sm:$0xff]
      %v1694 = vld [vmem:[%s10 + $0x118] sm:$0xff]
      %1696 = vset.pattern.permute.xlu0 0
      %1697 = vperm.xlu0 %1696, %v1659
      %v1698 = vpop.permute.xlu0 %1697
      %1701 = vset.pattern.permute.xlu0 0
      %1702 = vperm.xlu0 %1701, %v1660
      %v1703 = vpop.permute.xlu0 %1702
      %1706 = vset.pattern.permute.xlu0 0
      %1707 = vperm.xlu0 %1706, %v1661
      %v1708 = vpop.permute.xlu0 %1707
      %1711 = vset.pattern.permute.xlu0 0
      %1712 = vperm.xlu0 %1711, %v1662
      %v1713 = vpop.permute.xlu0 %1712
      %1716 = vset.pattern.permute.xlu0 0
      %1717 = vperm.xlu0 %1716, %v1663
      %v1718 = vpop.permute.xlu0 %1717
      %1721 = vset.pattern.permute.xlu0 0
      %1722 = vperm.xlu0 %1721, %v1664
      %v1723 = vpop.permute.xlu0 %1722
      %1726 = vset.pattern.permute.xlu0 0
      %1727 = vperm.xlu0 %1726, %v1665
      %v1728 = vpop.permute.xlu0 %1727
      %1731 = vset.pattern.permute.xlu0 0
      %1732 = vperm.xlu0 %1731, %v1666
      %v1733 = vpop.permute.xlu0 %1732
      %1736 = vset.pattern.permute.xlu0 0
      %1737 = vperm.xlu0 %1736, %v1667
      %v1738 = vpop.permute.xlu0 %1737
      %1741 = vset.pattern.permute.xlu0 0
      %1742 = vperm.xlu0 %1741, %v1668
      %v1743 = vpop.permute.xlu0 %1742
      %1746 = vset.pattern.permute.xlu0 0
      %1747 = vperm.xlu0 %1746, %v1669
      %v1748 = vpop.permute.xlu0 %1747
      %1751 = vset.pattern.permute.xlu0 0
      %1752 = vperm.xlu0 %1751, %v1670
      %v1753 = vpop.permute.xlu0 %1752
      %1756 = vset.pattern.permute.xlu0 0
      %1757 = vperm.xlu0 %1756, %v1671
      %v1758 = vpop.permute.xlu0 %1757
      %1761 = vset.pattern.permute.xlu0 0
      %1762 = vperm.xlu0 %1761, %v1672
      %v1763 = vpop.permute.xlu0 %1762
      %1766 = vset.pattern.permute.xlu0 0
      %1767 = vperm.xlu0 %1766, %v1673
      %v1768 = vpop.permute.xlu0 %1767
      %1771 = vset.pattern.permute.xlu0 0
      %1772 = vperm.xlu0 %1771, %v1674
      %v1773 = vpop.permute.xlu0 %1772
      %1776 = vset.pattern.permute.xlu0 0
      %1777 = vperm.xlu0 %1776, %v1675
      %v1778 = vpop.permute.xlu0 %1777
      %1781 = vset.pattern.permute.xlu0 0
      %1782 = vperm.xlu0 %1781, %v1676
      %v1783 = vpop.permute.xlu0 %1782
      %1786 = vset.pattern.permute.xlu0 0
      %1787 = vperm.xlu0 %1786, %v1677
      %v1788 = vpop.permute.xlu0 %1787
      %1791 = vset.pattern.permute.xlu0 0
      %1792 = vperm.xlu0 %1791, %v1678
      %v1793 = vpop.permute.xlu0 %1792
      %1796 = vset.pattern.permute.xlu0 0
      %1797 = vperm.xlu0 %1796, %v1679
      %v1798 = vpop.permute.xlu0 %1797
      %1801 = vset.pattern.permute.xlu0 0
      %1802 = vperm.xlu0 %1801, %v1680
      %v1803 = vpop.permute.xlu0 %1802
      %1806 = vset.pattern.permute.xlu0 0
      %1807 = vperm.xlu0 %1806, %v1681
      %v1808 = vpop.permute.xlu0 %1807
      %1811 = vset.pattern.permute.xlu0 0
      %1812 = vperm.xlu0 %1811, %v1682
      %v1813 = vpop.permute.xlu0 %1812
      %1816 = vset.pattern.permute.xlu0 0
      %1817 = vperm.xlu0 %1816, %v1683
      %v1818 = vpop.permute.xlu0 %1817
      %1821 = vset.pattern.permute.xlu0 0
      %1822 = vperm.xlu0 %1821, %v1684
      %v1823 = vpop.permute.xlu0 %1822
      %1826 = vset.pattern.permute.xlu0 0
      %1827 = vperm.xlu0 %1826, %v1685
      %v1828 = vpop.permute.xlu0 %1827
      %1831 = vset.pattern.permute.xlu0 0
      %1832 = vperm.xlu0 %1831, %v1686
      %v1833 = vpop.permute.xlu0 %1832
      %1836 = vset.pattern.permute.xlu0 0
      %1837 = vperm.xlu0 %1836, %v1687
      %v1838 = vpop.permute.xlu0 %1837
      %1841 = vset.pattern.permute.xlu0 0
      %1842 = vperm.xlu0 %1841, %v1688
      %v1843 = vpop.permute.xlu0 %1842
      %1846 = vset.pattern.permute.xlu0 0
      %1847 = vperm.xlu0 %1846, %v1689
      %v1848 = vpop.permute.xlu0 %1847
      %1851 = vset.pattern.permute.xlu0 0
      %1852 = vperm.xlu0 %1851, %v1690
      %v1853 = vpop.permute.xlu0 %1852
      %1856 = vset.pattern.permute.xlu0 0
      %1857 = vperm.xlu0 %1856, %v1691
      %v1858 = vpop.permute.xlu0 %1857
      %1861 = vset.pattern.permute.xlu0 0
      %1862 = vperm.xlu0 %1861, %v1692
      %v1863 = vpop.permute.xlu0 %1862
      %1866 = vset.pattern.permute.xlu0 0
      %1867 = vperm.xlu0 %1866, %v1693
      %v1868 = vpop.permute.xlu0 %1867
      %1871 = vset.pattern.permute.xlu0 0
      %1872 = vperm.xlu0 %1871, %v1694
      %v1873 = vpop.permute.xlu0 %1872
      %v1875 = vmul.f32 %v1657, %v1698
      %v1876 = vmul.f32 %v1656, %v1703
      %v1877 = vmul.f32 %v1655, %v1708
      %v1878 = vmul.f32 %v1654, %v1713
      %v1879 = vmul.f32 %v1653, %v1718
      %v1880 = vmul.f32 %v1652, %v1723
      %v1881 = vmul.f32 %v1651, %v1728
      %v1882 = vmul.f32 %v1650, %v1733
      %v1883 = vmul.f32 %v1649, %v1738
      %v1884 = vmul.f32 %v1648, %v1743
      %v1885 = vmul.f32 %v1647, %v1748
      %v1886 = vmul.f32 %v1646, %v1753
      %v1887 = vmul.f32 %v1645, %v1758
      %v1888 = vmul.f32 %v1644, %v1763
      %v1889 = vmul.f32 %v1643, %v1768
      %v1890 = vmul.f32 %v1642, %v1773
      %v1891 = vmul.f32 %v1641, %v1778
      %v1892 = vmul.f32 %v1640, %v1783
      %v1893 = vmul.f32 %v1639, %v1788
      %v1894 = vmul.f32 %v1638, %v1793
      %v1895 = vmul.f32 %v1637, %v1798
      %v1896 = vmul.f32 %v1636, %v1803
      %v1897 = vmul.f32 %v1635, %v1808
      %v1898 = vmul.f32 %v1634, %v1813
      %v1899 = vmul.f32 %v1633, %v1818
      %v1900 = vmul.f32 %v1632, %v1823
      %v1901 = vmul.f32 %v1631, %v1828
      %v1902 = vmul.f32 %v1630, %v1833
      %v1903 = vmul.f32 %v1629, %v1838
      %v1904 = vmul.f32 %v1628, %v1843
      %v1905 = vmul.f32 %v1627, %v1848
      %v1906 = vmul.f32 %v1626, %v1853
      %v1907 = vmul.f32 %v1625, %v1858
      %v1908 = vmul.f32 %v1624, %v1863
      %v1909 = vmul.f32 %v1623, %v1868
      %v1910 = vmul.f32 %v1658, %v1873
      %v1911 = vpack.c.bf16 %v1223, %v1550
      %v1912 = vpack.c.bf16 %v1875, %v1875
      %v1913 = vpack.c.bf16 %v1224, %v1551
      %v1914 = vpack.c.bf16 %v1876, %v1876
      %v1915 = vpack.c.bf16 %v1225, %v1552
      %v1916 = vpack.c.bf16 %v1877, %v1877
      %v1917 = vpack.c.bf16 %v1226, %v1553
      %v1918 = vpack.c.bf16 %v1878, %v1878
      %v1919 = vpack.c.bf16 %v1227, %v1554
      %v1920 = vpack.c.bf16 %v1879, %v1879
      %v1921 = vpack.c.bf16 %v1228, %v1555
      %v1922 = vpack.c.bf16 %v1880, %v1880
      %v1923 = vpack.c.bf16 %v1229, %v1556
      %v1924 = vpack.c.bf16 %v1881, %v1881
      %v1925 = vpack.c.bf16 %v1230, %v1557
      %v1926 = vpack.c.bf16 %v1882, %v1882
      %v1927 = vpack.c.bf16 %v1231, %v1558
      %v1928 = vpack.c.bf16 %v1883, %v1883
      %v1929 = vpack.c.bf16 %v1232, %v1559
      %v1930 = vpack.c.bf16 %v1884, %v1884
      %v1931 = vpack.c.bf16 %v1233, %v1560
      %v1932 = vpack.c.bf16 %v1885, %v1885
      %v1933 = vpack.c.bf16 %v1234, %v1561
      %v1934 = vpack.c.bf16 %v1886, %v1886
      %v1935 = vpack.c.bf16 %v1235, %v1562
      %v1936 = vpack.c.bf16 %v1887, %v1887
      %v1937 = vpack.c.bf16 %v1236, %v1563
      %v1938 = vpack.c.bf16 %v1888, %v1888
      %v1939 = vpack.c.bf16 %v1237, %v1564
      %v1940 = vpack.c.bf16 %v1889, %v1889
      %v1941 = vpack.c.bf16 %v1238, %v1565
      %v1942 = vpack.c.bf16 %v1890, %v1890
      %v1943 = vpack.c.bf16 %v1239, %v1566
      %v1944 = vpack.c.bf16 %v1891, %v1891
      %v1945 = vpack.c.bf16 %v1240, %v1567
      %v1946 = vpack.c.bf16 %v1892, %v1892
      %v1947 = vpack.c.bf16 %v1241, %v1568
      %v1948 = vpack.c.bf16 %v1893, %v1893
      %v1949 = vpack.c.bf16 %v1242, %v1569
      %v1950 = vpack.c.bf16 %v1894, %v1894
      %v1951 = vpack.c.bf16 %v1243, %v1570
      %v1952 = vpack.c.bf16 %v1895, %v1895
      %v1953 = vpack.c.bf16 %v1244, %v1571
      %v1954 = vpack.c.bf16 %v1896, %v1896
      %v1955 = vpack.c.bf16 %v1245, %v1572
      %v1956 = vpack.c.bf16 %v1897, %v1897
      %v1957 = vpack.c.bf16 %v1246, %v1573
      %v1958 = vpack.c.bf16 %v1898, %v1898
      %v1959 = vpack.c.bf16 %v1247, %v1574
      %v1960 = vpack.c.bf16 %v1899, %v1899
      %v1961 = vpack.c.bf16 %v1248, %v1575
      %v1962 = vpack.c.bf16 %v1900, %v1900
      %v1963 = vpack.c.bf16 %v1249, %v1576
      %v1964 = vpack.c.bf16 %v1901, %v1901
      %v1965 = vpack.c.bf16 %v1250, %v1577
      %v1966 = vpack.c.bf16 %v1902, %v1902
      %v1967 = vpack.c.bf16 %v1251, %v1578
      %v1968 = vpack.c.bf16 %v1903, %v1903
      %v1969 = vpack.c.bf16 %v1252, %v1579
      %v1970 = vpack.c.bf16 %v1904, %v1904
      %v1971 = vpack.c.bf16 %v1253, %v1580
      %v1972 = vpack.c.bf16 %v1905, %v1905
      %v1973 = vpack.c.bf16 %v1254, %v1581
      %v1974 = vpack.c.bf16 %v1906, %v1906
      %v1975 = vpack.c.bf16 %v1255, %v1582
      %v1976 = vpack.c.bf16 %v1907, %v1907
      %v1977 = vpack.c.bf16 %v1256, %v1583
      %v1978 = vpack.c.bf16 %v1908, %v1908
      %v1979 = vpack.c.bf16 %v1257, %v1584
      %v1980 = vpack.c.bf16 %v1909, %v1909
      %v1981 = vpack.c.bf16 %v1258, %v1585
      %v1982 = vpack.c.bf16 %v1910, %v1910
      %v1983 = vld [vmem:[%s6] sm:$0xf]
      %v1984 = vld [vmem:[%s6 + $0x4] sm:$0xf]
      %v1985 = vld [vmem:[%s6 + $0x8] sm:$0xf]
      %v1986 = vld [vmem:[%s6 + $0xc] sm:$0xf]
      %v1987 = vld [vmem:[%s6 + $0x10] sm:$0xf]
      %v1988 = vld [vmem:[%s6 + $0x14] sm:$0xf]
      %v1989 = vld [vmem:[%s6 + $0x18] sm:$0xf]
      %v1990 = vld [vmem:[%s6 + $0x1c] sm:$0xf]
      %v1991 = vld [vmem:[%s6 + $0x20] sm:$0xf]
      %v1992 = vld [vmem:[%s6 + $0x24] sm:$0xf]
      %v1993 = vld [vmem:[%s6 + $0x28] sm:$0xf]
      %v1994 = vld [vmem:[%s6 + $0x2c] sm:$0xf]
      %v1995 = vld [vmem:[%s6 + $0x30] sm:$0xf]
      %v1996 = vld [vmem:[%s6 + $0x34] sm:$0xf]
      %v1997 = vld [vmem:[%s6 + $0x38] sm:$0xf]
      %v1998 = vld [vmem:[%s6 + $0x3c] sm:$0xf]
      %v1999 = vld [vmem:[%s6 + $0x40] sm:$0xf]
      %v2000 = vld [vmem:[%s6 + $0x44] sm:$0xf]
      %v2001 = vld [vmem:[%s6 + $0x48] sm:$0xf]
      %v2002 = vld [vmem:[%s6 + $0x4c] sm:$0xf]
      %v2003 = vld [vmem:[%s6 + $0x50] sm:$0xf]
      %v2004 = vld [vmem:[%s6 + $0x54] sm:$0xf]
      %v2005 = vld [vmem:[%s6 + $0x58] sm:$0xf]
      %v2006 = vld [vmem:[%s6 + $0x5c] sm:$0xf]
      %v2007 = vld [vmem:[%s6 + $0x60] sm:$0xf]
      %v2008 = vld [vmem:[%s6 + $0x64] sm:$0xf]
      %v2009 = vld [vmem:[%s6 + $0x68] sm:$0xf]
      %v2010 = vld [vmem:[%s6 + $0x6c] sm:$0xf]
      %v2011 = vld [vmem:[%s6 + $0x70] sm:$0xf]
      %v2012 = vld [vmem:[%s6 + $0x74] sm:$0xf]
      %v2013 = vld [vmem:[%s6 + $0x78] sm:$0xf]
      %v2014 = vld [vmem:[%s6 + $0x7c] sm:$0xf]
      %v2015 = vld [vmem:[%s6 + $0x80] sm:$0xf]
      %v2016 = vld [vmem:[%s6 + $0x84] sm:$0xf]
      %v2017 = vld [vmem:[%s6 + $0x88] sm:$0xf]
      %v2018 = vld [vmem:[%s6 + $0x8c] sm:$0xf]
      %v2019 = vld [vmem:[%s6 + $0x90] sm:$0xf]
      %v2020 = vld [vmem:[%s6 + $0x94] sm:$0xf]
      %v2021 = vld [vmem:[%s6 + $0x98] sm:$0xf]
      %v2022 = vld [vmem:[%s6 + $0x9c] sm:$0xf]
      %v2023 = vld [vmem:[%s6 + $0xa0] sm:$0xf]
      %v2024 = vld [vmem:[%s6 + $0xa4] sm:$0xf]
      %v2025 = vld [vmem:[%s6 + $0xa8] sm:$0xf]
      %v2026 = vld [vmem:[%s6 + $0xac] sm:$0xf]
      %v2027 = vld [vmem:[%s6 + $0xb0] sm:$0xf]
      %v2028 = vld [vmem:[%s6 + $0xb4] sm:$0xf]
      %v2029 = vld [vmem:[%s6 + $0xb8] sm:$0xf]
      %v2030 = vld [vmem:[%s6 + $0xbc] sm:$0xf]
      %s2031 = scalar_lea.vmem %s6, 192
      %v2032 = vld [vmem:[%s2031] sm:$0xf]
      %v2033 = vld [vmem:[%s2031 + $0x4] sm:$0xf]
      %v2034 = vld [vmem:[%s2031 + $0x8] sm:$0xf]
      %v2035 = vld [vmem:[%s2031 + $0xc] sm:$0xf]
      %v2036 = vld [vmem:[%s2031 + $0x10] sm:$0xf]
      %v2037 = vld [vmem:[%s2031 + $0x14] sm:$0xf]
      %v2038 = vld [vmem:[%s2031 + $0x18] sm:$0xf]
      %v2039 = vld [vmem:[%s2031 + $0x1c] sm:$0xf]
      %v2040 = vld [vmem:[%s2031 + $0x20] sm:$0xf]
      %v2041 = vld [vmem:[%s2031 + $0x24] sm:$0xf]
      %v2042 = vld [vmem:[%s2031 + $0x28] sm:$0xf]
      %v2043 = vld [vmem:[%s2031 + $0x2c] sm:$0xf]
      %v2044 = vld [vmem:[%s2031 + $0x30] sm:$0xf]
      %v2045 = vld [vmem:[%s2031 + $0x34] sm:$0xf]
      %v2046 = vld [vmem:[%s2031 + $0x38] sm:$0xf]
      %v2047 = vld [vmem:[%s2031 + $0x3c] sm:$0xf]
      %v2048 = vld [vmem:[%s2031 + $0x40] sm:$0xf]
      %v2049 = vld [vmem:[%s2031 + $0x44] sm:$0xf]
      %v2050 = vld [vmem:[%s2031 + $0x48] sm:$0xf]
      %v2051 = vld [vmem:[%s2031 + $0x4c] sm:$0xf]
      %v2052 = vld [vmem:[%s2031 + $0x50] sm:$0xf]
      %v2053 = vld [vmem:[%s2031 + $0x54] sm:$0xf]
      %v2054 = vld [vmem:[%s2031 + $0x58] sm:$0xf]
      %v2055 = vld [vmem:[%s2031 + $0x5c] sm:$0xf]
      %v2056 = vld [vmem:[%s2031 + $0x60] sm:$0xf]
      %v2057 = vld [vmem:[%s2031 + $0x64] sm:$0xf]
      %v2058 = vld [vmem:[%s2031 + $0x68] sm:$0xf]
      %v2059 = vld [vmem:[%s2031 + $0x6c] sm:$0xf]
      %v2060 = vld [vmem:[%s2031 + $0x70] sm:$0xf]
      %v2061 = vld [vmem:[%s2031 + $0x74] sm:$0xf]
      %v2062 = vld [vmem:[%s2031 + $0x78] sm:$0xf]
      %v2063 = vld [vmem:[%s2031 + $0x7c] sm:$0xf]
      %v2064 = vld [vmem:[%s2031 + $0x80] sm:$0xf]
      %v2065 = vld [vmem:[%s2031 + $0x84] sm:$0xf]
      %v2066 = vld [vmem:[%s2031 + $0x88] sm:$0xf]
      %v2067 = vld [vmem:[%s2031 + $0x8c] sm:$0xf]
      %v2068 = vld [vmem:[%s2031 + $0x90] sm:$0xf]
      %v2069 = vld [vmem:[%s2031 + $0x94] sm:$0xf]
      %v2070 = vld [vmem:[%s2031 + $0x98] sm:$0xf]
      %v2071 = vld [vmem:[%s2031 + $0x9c] sm:$0xf]
      %v2072 = vld [vmem:[%s2031 + $0xa0] sm:$0xf]
      %v2073 = vld [vmem:[%s2031 + $0xa4] sm:$0xf]
      %v2074 = vld [vmem:[%s2031 + $0xa8] sm:$0xf]
      %v2075 = vld [vmem:[%s2031 + $0xac] sm:$0xf]
      %v2076 = vld [vmem:[%s2031 + $0xb0] sm:$0xf]
      %v2077 = vld [vmem:[%s2031 + $0xb4] sm:$0xf]
      %v2078 = vld [vmem:[%s2031 + $0xb8] sm:$0xf]
      %v2079 = vld [vmem:[%s2031 + $0xbc] sm:$0xf]
      %v2144 = vunpack.c.l.b16 %v1915
      %v2145 = vunpack.c.h.b16 %v1915
      %v2146 = vunpack.c.l.b16 %v1916
      %v2147 = vunpack.c.l.b16 %v1917
      %v2148 = vunpack.c.h.b16 %v1917
      %v2149 = vunpack.c.l.b16 %v1918
      %v2150 = vunpack.c.l.b16 %v1919
      %v2151 = vunpack.c.h.b16 %v1919
      %v2152 = vunpack.c.l.b16 %v1920
      %v2153 = vunpack.c.l.b16 %v1921
      %v2154 = vunpack.c.h.b16 %v1921
      %v2155 = vunpack.c.l.b16 %v1922
      %v2156 = vunpack.c.l.b16 %v1923
      %v2157 = vunpack.c.h.b16 %v1923
      %v2158 = vunpack.c.l.b16 %v1924
      %v2159 = vunpack.c.l.b16 %v1925
      %v2160 = vunpack.c.h.b16 %v1925
      %v2161 = vunpack.c.l.b16 %v1926
      %v2162 = vunpack.c.l.b16 %v1927
      %v2163 = vunpack.c.h.b16 %v1927
      %v2164 = vunpack.c.l.b16 %v1928
      %v2165 = vunpack.c.l.b16 %v1929
      %v2166 = vunpack.c.h.b16 %v1929
      %v2167 = vunpack.c.l.b16 %v1930
      %v2168 = vunpack.c.l.b16 %v1931
      %v2169 = vunpack.c.h.b16 %v1931
      %v2170 = vunpack.c.l.b16 %v1932
      %v2171 = vunpack.c.l.b16 %v1933
      %v2172 = vunpack.c.h.b16 %v1933
      %v2173 = vunpack.c.l.b16 %v1934
      %v2174 = vunpack.c.l.b16 %v1935
      %v2175 = vunpack.c.h.b16 %v1935
      %v2176 = vunpack.c.l.b16 %v1936
      %v2177 = vunpack.c.l.b16 %v1937
      %v2178 = vunpack.c.h.b16 %v1937
      %v2179 = vunpack.c.l.b16 %v1938
      %v2180 = vunpack.c.l.b16 %v1939
      %v2181 = vunpack.c.h.b16 %v1939
      %v2182 = vunpack.c.l.b16 %v1940
      %v2183 = vunpack.c.l.b16 %v1941
      %v2184 = vunpack.c.h.b16 %v1941
      %v2185 = vunpack.c.l.b16 %v1942
      %v2186 = vunpack.c.l.b16 %v1943
      %v2187 = vunpack.c.h.b16 %v1943
      %v2188 = vunpack.c.l.b16 %v1944
      %v2189 = vunpack.c.l.b16 %v1945
      %v2190 = vunpack.c.h.b16 %v1945
      %v2191 = vunpack.c.l.b16 %v1946
      %v2192 = vunpack.c.l.b16 %v1947
      %v2193 = vunpack.c.h.b16 %v1947
      %v2194 = vunpack.c.l.b16 %v1948
      %v2195 = vunpack.c.l.b16 %v1949
      %v2196 = vunpack.c.h.b16 %v1949
      %v2197 = vunpack.c.l.b16 %v1950
      %v2198 = vunpack.c.l.b16 %v1951
      %v2199 = vunpack.c.h.b16 %v1951
      %v2200 = vunpack.c.l.b16 %v1952
      %v2201 = vunpack.c.l.b16 %v1953
      %v2202 = vunpack.c.h.b16 %v1953
      %v2203 = vunpack.c.l.b16 %v1954
      %v2204 = vunpack.c.l.b16 %v1955
      %v2205 = vunpack.c.h.b16 %v1955
      %v2206 = vunpack.c.l.b16 %v1956
      %v2207 = vunpack.c.l.b16 %v1957
      %v2208 = vunpack.c.h.b16 %v1957
      %v2209 = vunpack.c.l.b16 %v1958
      %v2210 = vunpack.c.l.b16 %v1959
      %v2211 = vunpack.c.h.b16 %v1959
      %v2212 = vunpack.c.l.b16 %v1960
      %v2213 = vunpack.c.l.b16 %v1961
      %v2214 = vunpack.c.h.b16 %v1961
      %v2215 = vunpack.c.l.b16 %v1962
      %v2216 = vunpack.c.l.b16 %v1963
      %v2217 = vunpack.c.h.b16 %v1963
      %v2218 = vunpack.c.l.b16 %v1964
      %v2219 = vunpack.c.l.b16 %v1965
      %v2220 = vunpack.c.h.b16 %v1965
      %v2221 = vunpack.c.l.b16 %v1966
      %v2222 = vunpack.c.l.b16 %v1967
      %v2223 = vunpack.c.h.b16 %v1967
      %v2224 = vunpack.c.l.b16 %v1968
      %v2225 = vunpack.c.l.b16 %v1969
      %v2226 = vunpack.c.h.b16 %v1969
      %v2227 = vunpack.c.l.b16 %v1970
      %v2228 = vunpack.c.l.b16 %v1971
      %v2229 = vunpack.c.h.b16 %v1971
      %v2230 = vunpack.c.l.b16 %v1972
      %v2231 = vunpack.c.l.b16 %v1973
      %v2232 = vunpack.c.h.b16 %v1973
      %v2233 = vunpack.c.l.b16 %v1974
      %v2234 = vunpack.c.l.b16 %v1975
      %v2235 = vunpack.c.h.b16 %v1975
      %v2236 = vunpack.c.l.b16 %v1976
      %v2237 = vunpack.c.l.b16 %v1977
      %v2238 = vunpack.c.h.b16 %v1977
      %v2239 = vunpack.c.l.b16 %v1978
      %v2240 = vpack.c.b16 %v2147, %v2144
      %v2241 = vpack.c.b16 %v2148, %v2145
      %v2242 = vpack.c.b16 %v2149, %v2146
      %v2243 = vpack.c.b16 %v2153, %v2150
      %v2244 = vpack.c.b16 %v2154, %v2151
      %v2245 = vpack.c.b16 %v2155, %v2152
      %v2246 = vpack.c.b16 %v2159, %v2156
      %v2247 = vpack.c.b16 %v2160, %v2157
      %v2248 = vpack.c.b16 %v2161, %v2158
      %v2249 = vpack.c.b16 %v2165, %v2162
      %v2250 = vpack.c.b16 %v2166, %v2163
      %v2251 = vpack.c.b16 %v2167, %v2164
      %v2252 = vpack.c.b16 %v2171, %v2168
      %v2253 = vpack.c.b16 %v2172, %v2169
      %v2254 = vpack.c.b16 %v2173, %v2170
      %v2255 = vpack.c.b16 %v2177, %v2174
      %v2256 = vpack.c.b16 %v2178, %v2175
      %v2257 = vpack.c.b16 %v2179, %v2176
      %v2258 = vpack.c.b16 %v2183, %v2180
      %v2259 = vpack.c.b16 %v2184, %v2181
      %v2260 = vpack.c.b16 %v2185, %v2182
      %v2261 = vpack.c.b16 %v2189, %v2186
      %v2262 = vpack.c.b16 %v2190, %v2187
      %v2263 = vpack.c.b16 %v2191, %v2188
      %v2264 = vpack.c.b16 %v2195, %v2192
      %v2265 = vpack.c.b16 %v2196, %v2193
      %v2266 = vpack.c.b16 %v2197, %v2194
      %v2267 = vpack.c.b16 %v2201, %v2198
      %v2268 = vpack.c.b16 %v2202, %v2199
      %v2269 = vpack.c.b16 %v2203, %v2200
      %v2270 = vpack.c.b16 %v2207, %v2204
      %v2271 = vpack.c.b16 %v2208, %v2205
      %v2272 = vpack.c.b16 %v2209, %v2206
      %v2273 = vpack.c.b16 %v2213, %v2210
      %v2274 = vpack.c.b16 %v2214, %v2211
      %v2275 = vpack.c.b16 %v2215, %v2212
      %v2276 = vpack.c.b16 %v2219, %v2216
      %v2277 = vpack.c.b16 %v2220, %v2217
      %v2278 = vpack.c.b16 %v2221, %v2218
      %v2279 = vpack.c.b16 %v2225, %v2222
      %v2280 = vpack.c.b16 %v2226, %v2223
      %v2281 = vpack.c.b16 %v2227, %v2224
      %v2282 = vpack.c.b16 %v2231, %v2228
      %v2283 = vpack.c.b16 %v2232, %v2229
      %v2284 = vpack.c.b16 %v2233, %v2230
      %v2285 = vpack.c.b16 %v2237, %v2234
      %v2286 = vpack.c.b16 %v2238, %v2235
      %v2287 = vpack.c.b16 %v2239, %v2236
      %v2384 = vunpack.c.l.b16 %v2032
      %v2385 = vunpack.c.l.b16 %v2033
      %v2386 = vunpack.c.l.b16 %v2034
      %v2387 = vunpack.c.l.b16 %v2035
      %v2388 = vunpack.c.l.b16 %v2036
      %v2389 = vunpack.c.l.b16 %v2037
      %v2390 = vunpack.c.l.b16 %v2038
      %v2391 = vunpack.c.l.b16 %v2039
      %v2392 = vunpack.c.l.b16 %v2040
      %v2393 = vunpack.c.l.b16 %v2041
      %v2394 = vunpack.c.l.b16 %v2042
      %v2395 = vunpack.c.l.b16 %v2043
      %v2396 = vunpack.c.l.b16 %v2044
      %v2397 = vunpack.c.l.b16 %v2045
      %v2398 = vunpack.c.l.b16 %v2046
      %v2399 = vunpack.c.l.b16 %v2047
      %v2400 = vunpack.c.l.b16 %v2048
      %v2401 = vunpack.c.l.b16 %v2049
      %v2402 = vunpack.c.l.b16 %v2050
      %v2403 = vunpack.c.l.b16 %v2051
      %v2404 = vunpack.c.l.b16 %v2052
      %v2405 = vunpack.c.l.b16 %v2053
      %v2406 = vunpack.c.l.b16 %v2054
      %v2407 = vunpack.c.l.b16 %v2055
      %v2408 = vunpack.c.l.b16 %v2056
      %v2409 = vunpack.c.l.b16 %v2057
      %v2410 = vunpack.c.l.b16 %v2058
      %v2411 = vunpack.c.l.b16 %v2059
      %v2412 = vunpack.c.l.b16 %v2060
      %v2413 = vunpack.c.l.b16 %v2061
      %v2414 = vunpack.c.l.b16 %v2062
      %v2415 = vunpack.c.l.b16 %v2063
      %v2416 = vunpack.c.l.b16 %v2064
      %v2417 = vunpack.c.l.b16 %v2065
      %v2418 = vunpack.c.l.b16 %v2066
      %v2419 = vunpack.c.l.b16 %v2067
      %v2420 = vunpack.c.l.b16 %v2068
      %v2421 = vunpack.c.l.b16 %v2069
      %v2422 = vunpack.c.l.b16 %v2070
      %v2423 = vunpack.c.l.b16 %v2071
      %v2424 = vunpack.c.l.b16 %v2072
      %v2425 = vunpack.c.l.b16 %v2073
      %v2426 = vunpack.c.l.b16 %v2074
      %v2427 = vunpack.c.l.b16 %v2075
      %v2428 = vunpack.c.l.b16 %v2076
      %v2429 = vunpack.c.l.b16 %v2077
      %v2430 = vunpack.c.l.b16 %v2078
      %v2431 = vunpack.c.l.b16 %v2079
      %v2432 = vpack.c.b16 %v2385, %v2384
      %v2433 = vpack.c.b16 %v2387, %v2386
      %v2434 = vpack.c.b16 %v2389, %v2388
      %v2435 = vpack.c.b16 %v2391, %v2390
      %v2436 = vpack.c.b16 %v2393, %v2392
      %v2437 = vpack.c.b16 %v2395, %v2394
      %v2438 = vpack.c.b16 %v2397, %v2396
      %v2439 = vpack.c.b16 %v2399, %v2398
      %v2440 = vpack.c.b16 %v2401, %v2400
      %v2441 = vpack.c.b16 %v2403, %v2402
      %v2442 = vpack.c.b16 %v2405, %v2404
      %v2443 = vpack.c.b16 %v2407, %v2406
      %v2444 = vpack.c.b16 %v2409, %v2408
      %v2445 = vpack.c.b16 %v2411, %v2410
      %v2446 = vpack.c.b16 %v2413, %v2412
      %v2447 = vpack.c.b16 %v2415, %v2414
      %v2448 = vpack.c.b16 %v2417, %v2416
      %v2449 = vpack.c.b16 %v2419, %v2418
      %v2450 = vpack.c.b16 %v2421, %v2420
      %v2451 = vpack.c.b16 %v2423, %v2422
      %v2452 = vpack.c.b16 %v2425, %v2424
      %v2453 = vpack.c.b16 %v2427, %v2426
      %v2454 = vpack.c.b16 %v2429, %v2428
      %v2455 = vpack.c.b16 %v2431, %v2430
      %2480 = vmatpush.bf16.msra.mxu0 %v2439
      %2481 = vmatpush.bf16.msra.mxu0 %v2438
      %2482 = vmatpush.bf16.msra.mxu0 %v2437
      %2483 = vmatpush.bf16.msra.mxu0 %v2436
      %2484 = vmatpush.bf16.msra.mxu0 %v2435
      %2485 = vmatpush.bf16.msra.mxu0 %v2434
      %2486 = vmatpush.bf16.msra.mxu0 %v2433
      %2487 = vmatpush.bf16.msra.mxu0 %v2432
      %2488 = vmatmul.bf16.gmra.mxu0 %v2240
      %v2489 = vpop.f32.mrf.mxu0
      %v2490 = vadd.f32 0.0, %v2489
      %v2491 = vpop.f32.mrf.mxu0
      %v2492 = vadd.f32 0.0, %v2491
      %2493 = vmatmul.bf16.gmra.mxu0 %v2243
      %v2494 = vpop.f32.mrf.mxu0
      %v2495 = vadd.f32 0.0, %v2494
      %v2496 = vpop.f32.mrf.mxu0
      %v2497 = vadd.f32 0.0, %v2496
      %2498 = vmatmul.bf16.gmra.mxu0 %v2246
      %v2499 = vpop.f32.mrf.mxu0
      %v2500 = vadd.f32 0.0, %v2499
      %v2501 = vpop.f32.mrf.mxu0
      %v2502 = vadd.f32 0.0, %v2501
      %2503 = vmatmul.bf16.gmra.mxu0 %v2249
      %v2504 = vpop.f32.mrf.mxu0
      %v2505 = vadd.f32 0.0, %v2504
      %v2506 = vpop.f32.mrf.mxu0
      %v2507 = vadd.f32 0.0, %v2506
      %2508 = vmatmul.bf16.gmra.mxu0 %v2252
      %v2509 = vpop.f32.mrf.mxu0
      %v2510 = vadd.f32 0.0, %v2509
      %v2511 = vpop.f32.mrf.mxu0
      %v2512 = vadd.f32 0.0, %v2511
      %2513 = vmatmul.bf16.gmra.mxu0 %v2255
      %v2514 = vpop.f32.mrf.mxu0
      %v2515 = vadd.f32 0.0, %v2514
      %v2516 = vpop.f32.mrf.mxu0
      %v2517 = vadd.f32 0.0, %v2516
      %2518 = vmatmul.bf16.gmra.mxu0 %v2258
      %v2519 = vpop.f32.mrf.mxu0
      %v2520 = vadd.f32 0.0, %v2519
      %v2521 = vpop.f32.mrf.mxu0
      %v2522 = vadd.f32 0.0, %v2521
      %2523 = vmatmul.bf16.gmra.mxu0 %v2261
      %v2524 = vpop.f32.mrf.mxu0
      %v2525 = vadd.f32 0.0, %v2524
      %v2526 = vpop.f32.mrf.mxu0
      %v2527 = vadd.f32 0.0, %v2526
      %2528 = vmatmul.bf16.gmra.mxu0 %v2264
      %v2529 = vpop.f32.mrf.mxu0
      %v2530 = vadd.f32 0.0, %v2529
      %v2531 = vpop.f32.mrf.mxu0
      %v2532 = vadd.f32 0.0, %v2531
      %2533 = vmatmul.bf16.gmra.mxu0 %v2267
      %v2534 = vpop.f32.mrf.mxu0
      %v2535 = vadd.f32 0.0, %v2534
      %v2536 = vpop.f32.mrf.mxu0
      %v2537 = vadd.f32 0.0, %v2536
      %2538 = vmatmul.bf16.gmra.mxu0 %v2270
      %v2539 = vpop.f32.mrf.mxu0
      %v2540 = vadd.f32 0.0, %v2539
      %v2541 = vpop.f32.mrf.mxu0
      %v2542 = vadd.f32 0.0, %v2541
      %2543 = vmatmul.bf16.gmra.mxu0 %v2273
      %v2544 = vpop.f32.mrf.mxu0
      %v2545 = vadd.f32 0.0, %v2544
      %v2546 = vpop.f32.mrf.mxu0
      %v2547 = vadd.f32 0.0, %v2546
      %2548 = vmatmul.bf16.gmra.mxu0 %v2276
      %v2549 = vpop.f32.mrf.mxu0
      %v2550 = vadd.f32 0.0, %v2549
      %v2551 = vpop.f32.mrf.mxu0
      %v2552 = vadd.f32 0.0, %v2551
      %2553 = vmatmul.bf16.gmra.mxu0 %v2279
      %v2554 = vpop.f32.mrf.mxu0
      %v2555 = vadd.f32 0.0, %v2554
      %v2556 = vpop.f32.mrf.mxu0
      %v2557 = vadd.f32 0.0, %v2556
      %2558 = vmatmul.bf16.gmra.mxu0 %v2282
      %v2559 = vpop.f32.mrf.mxu0
      %v2560 = vadd.f32 0.0, %v2559
      %v2561 = vpop.f32.mrf.mxu0
      %v2562 = vadd.f32 0.0, %v2561
      %2563 = vmatmul.bf16.gmra.mxu0 %v2285
      %v2564 = vpop.f32.mrf.mxu0
      %v2565 = vadd.f32 0.0, %v2564
      %v2566 = vpop.f32.mrf.mxu0
      %v2567 = vadd.f32 0.0, %v2566
      %2568 = vdwg.mxu0
      %2569 = vmatpush.bf16.msra.mxu0 %v2447
      %2570 = vmatpush.bf16.msra.mxu0 %v2446
      %2571 = vmatpush.bf16.msra.mxu0 %v2445
      %2572 = vmatpush.bf16.msra.mxu0 %v2444
      %2573 = vmatpush.bf16.msra.mxu0 %v2443
      %2574 = vmatpush.bf16.msra.mxu0 %v2442
      %2575 = vmatpush.bf16.msra.mxu0 %v2441
      %2576 = vmatpush.bf16.msra.mxu0 %v2440
      %2577 = vmatmul.bf16.gmra.mxu0 %v2241
      %v2578 = vpop.f32.mrf.mxu0
      %v2579 = vadd.f32 %v2490, %v2578
      %v2580 = vpop.f32.mrf.mxu0
      %v2581 = vadd.f32 %v2492, %v2580
      %2582 = vmatmul.bf16.gmra.mxu0 %v2244
      %v2583 = vpop.f32.mrf.mxu0
      %v2584 = vadd.f32 %v2495, %v2583
      %v2585 = vpop.f32.mrf.mxu0
      %v2586 = vadd.f32 %v2497, %v2585
      %2587 = vmatmul.bf16.gmra.mxu0 %v2247
      %v2588 = vpop.f32.mrf.mxu0
      %v2589 = vadd.f32 %v2500, %v2588
      %v2590 = vpop.f32.mrf.mxu0
      %v2591 = vadd.f32 %v2502, %v2590
      %2592 = vmatmul.bf16.gmra.mxu0 %v2250
      %v2593 = vpop.f32.mrf.mxu0
      %v2594 = vadd.f32 %v2505, %v2593
      %v2595 = vpop.f32.mrf.mxu0
      %v2596 = vadd.f32 %v2507, %v2595
      %2597 = vmatmul.bf16.gmra.mxu0 %v2253
      %v2598 = vpop.f32.mrf.mxu0
      %v2599 = vadd.f32 %v2510, %v2598
      %v2600 = vpop.f32.mrf.mxu0
      %v2601 = vadd.f32 %v2512, %v2600
      %2602 = vmatmul.bf16.gmra.mxu0 %v2256
      %v2603 = vpop.f32.mrf.mxu0
      %v2604 = vadd.f32 %v2515, %v2603
      %v2605 = vpop.f32.mrf.mxu0
      %v2606 = vadd.f32 %v2517, %v2605
      %2607 = vmatmul.bf16.gmra.mxu0 %v2259
      %v2608 = vpop.f32.mrf.mxu0
      %v2609 = vadd.f32 %v2520, %v2608
      %v2610 = vpop.f32.mrf.mxu0
      %v2611 = vadd.f32 %v2522, %v2610
      %2612 = vmatmul.bf16.gmra.mxu0 %v2262
      %v2613 = vpop.f32.mrf.mxu0
      %v2614 = vadd.f32 %v2525, %v2613
      %v2615 = vpop.f32.mrf.mxu0
      %v2616 = vadd.f32 %v2527, %v2615
      %2617 = vmatmul.bf16.gmra.mxu0 %v2265
      %v2618 = vpop.f32.mrf.mxu0
      %v2619 = vadd.f32 %v2530, %v2618
      %v2620 = vpop.f32.mrf.mxu0
      %v2621 = vadd.f32 %v2532, %v2620
      %2622 = vmatmul.bf16.gmra.mxu0 %v2268
      %v2623 = vpop.f32.mrf.mxu0
      %v2624 = vadd.f32 %v2535, %v2623
      %v2625 = vpop.f32.mrf.mxu0
      %v2626 = vadd.f32 %v2537, %v2625
      %2627 = vmatmul.bf16.gmra.mxu0 %v2271
      %v2628 = vpop.f32.mrf.mxu0
      %v2629 = vadd.f32 %v2540, %v2628
      %v2630 = vpop.f32.mrf.mxu0
      %v2631 = vadd.f32 %v2542, %v2630
      %2632 = vmatmul.bf16.gmra.mxu0 %v2274
      %v2633 = vpop.f32.mrf.mxu0
      %v2634 = vadd.f32 %v2545, %v2633
      %v2635 = vpop.f32.mrf.mxu0
      %v2636 = vadd.f32 %v2547, %v2635
      %2637 = vmatmul.bf16.gmra.mxu0 %v2277
      %v2638 = vpop.f32.mrf.mxu0
      %v2639 = vadd.f32 %v2550, %v2638
      %v2640 = vpop.f32.mrf.mxu0
      %v2641 = vadd.f32 %v2552, %v2640
      %2642 = vmatmul.bf16.gmra.mxu0 %v2280
      %v2643 = vpop.f32.mrf.mxu0
      %v2644 = vadd.f32 %v2555, %v2643
      %v2645 = vpop.f32.mrf.mxu0
      %v2646 = vadd.f32 %v2557, %v2645
      %2647 = vmatmul.bf16.gmra.mxu0 %v2283
      %v2648 = vpop.f32.mrf.mxu0
      %v2649 = vadd.f32 %v2560, %v2648
      %v2650 = vpop.f32.mrf.mxu0
      %v2651 = vadd.f32 %v2562, %v2650
      %2652 = vmatmul.bf16.gmra.mxu0 %v2286
      %v2653 = vpop.f32.mrf.mxu0
      %v2654 = vadd.f32 %v2565, %v2653
      %v2655 = vpop.f32.mrf.mxu0
      %v2656 = vadd.f32 %v2567, %v2655
      %2657 = vdwg.mxu0
      %2658 = vmatpush.bf16.msra.mxu0 %v2455
      %2659 = vmatpush.bf16.msra.mxu0 %v2454
      %2660 = vmatpush.bf16.msra.mxu0 %v2453
      %2661 = vmatpush.bf16.msra.mxu0 %v2452
      %2662 = vmatpush.bf16.msra.mxu0 %v2451
      %2663 = vmatpush.bf16.msra.mxu0 %v2450
      %2664 = vmatpush.bf16.msra.mxu0 %v2449
      %2665 = vmatpush.bf16.msra.mxu0 %v2448
      %2666 = vmatmul.bf16.gmra.mxu0 %v2242
      %v2667 = vpop.f32.mrf.mxu0
      %v2668 = vadd.f32 %v2579, %v2667
      %v2669 = vpop.f32.mrf.mxu0
      %v2670 = vadd.f32 %v2581, %v2669
      %2671 = vmatmul.bf16.gmra.mxu0 %v2245
      %v2672 = vpop.f32.mrf.mxu0
      %v2673 = vadd.f32 %v2584, %v2672
      %v2674 = vpop.f32.mrf.mxu0
      %v2675 = vadd.f32 %v2586, %v2674
      %2676 = vmatmul.bf16.gmra.mxu0 %v2248
      %v2677 = vpop.f32.mrf.mxu0
      %v2678 = vadd.f32 %v2589, %v2677
      %v2679 = vpop.f32.mrf.mxu0
      %v2680 = vadd.f32 %v2591, %v2679
      %2681 = vmatmul.bf16.gmra.mxu0 %v2251
      %v2682 = vpop.f32.mrf.mxu0
      %v2683 = vadd.f32 %v2594, %v2682
      %v2684 = vpop.f32.mrf.mxu0
      %v2685 = vadd.f32 %v2596, %v2684
      %2686 = vmatmul.bf16.gmra.mxu0 %v2254
      %v2687 = vpop.f32.mrf.mxu0
      %v2688 = vadd.f32 %v2599, %v2687
      %v2689 = vpop.f32.mrf.mxu0
      %v2690 = vadd.f32 %v2601, %v2689
      %2691 = vmatmul.bf16.gmra.mxu0 %v2257
      %v2692 = vpop.f32.mrf.mxu0
      %v2693 = vadd.f32 %v2604, %v2692
      %v2694 = vpop.f32.mrf.mxu0
      %v2695 = vadd.f32 %v2606, %v2694
      %2696 = vmatmul.bf16.gmra.mxu0 %v2260
      %v2697 = vpop.f32.mrf.mxu0
      %v2698 = vadd.f32 %v2609, %v2697
      %v2699 = vpop.f32.mrf.mxu0
      %v2700 = vadd.f32 %v2611, %v2699
      %2701 = vmatmul.bf16.gmra.mxu0 %v2263
      %v2702 = vpop.f32.mrf.mxu0
      %v2703 = vadd.f32 %v2614, %v2702
      %v2704 = vpop.f32.mrf.mxu0
      %v2705 = vadd.f32 %v2616, %v2704
      %2706 = vmatmul.bf16.gmra.mxu0 %v2266
      %v2707 = vpop.f32.mrf.mxu0
      %v2708 = vadd.f32 %v2619, %v2707
      %v2709 = vpop.f32.mrf.mxu0
      %v2710 = vadd.f32 %v2621, %v2709
      %2711 = vmatmul.bf16.gmra.mxu0 %v2269
      %v2712 = vpop.f32.mrf.mxu0
      %v2713 = vadd.f32 %v2624, %v2712
      %v2714 = vpop.f32.mrf.mxu0
      %v2715 = vadd.f32 %v2626, %v2714
      %2716 = vmatmul.bf16.gmra.mxu0 %v2272
      %v2717 = vpop.f32.mrf.mxu0
      %v2718 = vadd.f32 %v2629, %v2717
      %v2719 = vpop.f32.mrf.mxu0
      %v2720 = vadd.f32 %v2631, %v2719
      %2721 = vmatmul.bf16.gmra.mxu0 %v2275
      %v2722 = vpop.f32.mrf.mxu0
      %v2723 = vadd.f32 %v2634, %v2722
      %v2724 = vpop.f32.mrf.mxu0
      %v2725 = vadd.f32 %v2636, %v2724
      %2726 = vmatmul.bf16.gmra.mxu0 %v2278
      %v2727 = vpop.f32.mrf.mxu0
      %v2728 = vadd.f32 %v2639, %v2727
      %v2729 = vpop.f32.mrf.mxu0
      %v2730 = vadd.f32 %v2641, %v2729
      %2731 = vmatmul.bf16.gmra.mxu0 %v2281
      %v2732 = vpop.f32.mrf.mxu0
      %v2733 = vadd.f32 %v2644, %v2732
      %v2734 = vpop.f32.mrf.mxu0
      %v2735 = vadd.f32 %v2646, %v2734
      %2736 = vmatmul.bf16.gmra.mxu0 %v2284
      %v2737 = vpop.f32.mrf.mxu0
      %v2738 = vadd.f32 %v2649, %v2737
      %v2739 = vpop.f32.mrf.mxu0
      %v2740 = vadd.f32 %v2651, %v2739
      %2741 = vmatmul.bf16.gmra.mxu0 %v2287
      %v2742 = vpop.f32.mrf.mxu0
      %v2743 = vadd.f32 %v2654, %v2742
      %v2744 = vpop.f32.mrf.mxu0
      %v2745 = vadd.f32 %v2656, %v2744
      %2746 = vdwg.mxu0
      %v2751 = vunpack.c.l.b16 %v1911
      %v2752 = vunpack.c.h.b16 %v1911
      %v2753 = vunpack.c.l.b16 %v1912
      %v2754 = vunpack.c.l.b16 %v1913
      %v2755 = vunpack.c.h.b16 %v1913
      %v2756 = vunpack.c.l.b16 %v1914
      %v2757 = vpack.c.b16 %v2754, %v2751
      %v2758 = vpack.c.b16 %v2755, %v2752
      %v2759 = vpack.c.b16 %v2756, %v2753
      %v2811 = vunpack.c.l.b16 %v1983
      %v2812 = vunpack.c.l.b16 %v1984
      %v2813 = vunpack.c.l.b16 %v1985
      %v2814 = vunpack.c.l.b16 %v1986
      %v2815 = vunpack.c.l.b16 %v1987
      %v2816 = vunpack.c.l.b16 %v1988
      %v2817 = vunpack.c.l.b16 %v1989
      %v2818 = vunpack.c.l.b16 %v1990
      %v2819 = vunpack.c.l.b16 %v1991
      %v2820 = vunpack.c.l.b16 %v1992
      %v2821 = vunpack.c.l.b16 %v1993
      %v2822 = vunpack.c.l.b16 %v1994
      %v2823 = vunpack.c.l.b16 %v1995
      %v2824 = vunpack.c.l.b16 %v1996
      %v2825 = vunpack.c.l.b16 %v1997
      %v2826 = vunpack.c.l.b16 %v1998
      %v2827 = vunpack.c.l.b16 %v1999
      %v2828 = vunpack.c.l.b16 %v2000
      %v2829 = vunpack.c.l.b16 %v2001
      %v2830 = vunpack.c.l.b16 %v2002
      %v2831 = vunpack.c.l.b16 %v2003
      %v2832 = vunpack.c.l.b16 %v2004
      %v2833 = vunpack.c.l.b16 %v2005
      %v2834 = vunpack.c.l.b16 %v2006
      %v2835 = vunpack.c.l.b16 %v2007
      %v2836 = vunpack.c.l.b16 %v2008
      %v2837 = vunpack.c.l.b16 %v2009
      %v2838 = vunpack.c.l.b16 %v2010
      %v2839 = vunpack.c.l.b16 %v2011
      %v2840 = vunpack.c.l.b16 %v2012
      %v2841 = vunpack.c.l.b16 %v2013
      %v2842 = vunpack.c.l.b16 %v2014
      %v2843 = vunpack.c.l.b16 %v2015
      %v2844 = vunpack.c.l.b16 %v2016
      %v2845 = vunpack.c.l.b16 %v2017
      %v2846 = vunpack.c.l.b16 %v2018
      %v2847 = vunpack.c.l.b16 %v2019
      %v2848 = vunpack.c.l.b16 %v2020
      %v2849 = vunpack.c.l.b16 %v2021
      %v2850 = vunpack.c.l.b16 %v2022
      %v2851 = vunpack.c.l.b16 %v2023
      %v2852 = vunpack.c.l.b16 %v2024
      %v2853 = vunpack.c.l.b16 %v2025
      %v2854 = vunpack.c.l.b16 %v2026
      %v2855 = vunpack.c.l.b16 %v2027
      %v2856 = vunpack.c.l.b16 %v2028
      %v2857 = vunpack.c.l.b16 %v2029
      %v2858 = vunpack.c.l.b16 %v2030
      %v2859 = vpack.c.b16 %v2812, %v2811
      %v2860 = vpack.c.b16 %v2814, %v2813
      %v2861 = vpack.c.b16 %v2816, %v2815
      %v2862 = vpack.c.b16 %v2818, %v2817
      %v2863 = vpack.c.b16 %v2820, %v2819
      %v2864 = vpack.c.b16 %v2822, %v2821
      %v2865 = vpack.c.b16 %v2824, %v2823
      %v2866 = vpack.c.b16 %v2826, %v2825
      %v2867 = vpack.c.b16 %v2828, %v2827
      %v2868 = vpack.c.b16 %v2830, %v2829
      %v2869 = vpack.c.b16 %v2832, %v2831
      %v2870 = vpack.c.b16 %v2834, %v2833
      %v2871 = vpack.c.b16 %v2836, %v2835
      %v2872 = vpack.c.b16 %v2838, %v2837
      %v2873 = vpack.c.b16 %v2840, %v2839
      %v2874 = vpack.c.b16 %v2842, %v2841
      %v2875 = vpack.c.b16 %v2844, %v2843
      %v2876 = vpack.c.b16 %v2846, %v2845
      %v2877 = vpack.c.b16 %v2848, %v2847
      %v2878 = vpack.c.b16 %v2850, %v2849
      %v2879 = vpack.c.b16 %v2852, %v2851
      %v2880 = vpack.c.b16 %v2854, %v2853
      %v2881 = vpack.c.b16 %v2856, %v2855
      %v2882 = vpack.c.b16 %v2858, %v2857
      %2907 = vmatpush.bf16.msra.mxu0 %v2866
      %2908 = vmatpush.bf16.msra.mxu0 %v2865
      %2909 = vmatpush.bf16.msra.mxu0 %v2864
      %2910 = vmatpush.bf16.msra.mxu0 %v2863
      %2911 = vmatpush.bf16.msra.mxu0 %v2862
      %2912 = vmatpush.bf16.msra.mxu0 %v2861
      %2913 = vmatpush.bf16.msra.mxu0 %v2860
      %2914 = vmatpush.bf16.msra.mxu0 %v2859
      %2915 = vmatmul.bf16.gmra.mxu0 %v2757
      %v2916 = vpop.f32.mrf.mxu0
      %v2917 = vadd.f32 %v2668, %v2916
      %v2918 = vpop.f32.mrf.mxu0
      %v2919 = vadd.f32 %v2670, %v2918
      %2920 = vmatmul.bf16.gmra.mxu0 %v2240
      %v2921 = vpop.f32.mrf.mxu0
      %v2922 = vadd.f32 %v2673, %v2921
      %v2923 = vpop.f32.mrf.mxu0
      %v2924 = vadd.f32 %v2675, %v2923
      %2925 = vmatmul.bf16.gmra.mxu0 %v2243
      %v2926 = vpop.f32.mrf.mxu0
      %v2927 = vadd.f32 %v2678, %v2926
      %v2928 = vpop.f32.mrf.mxu0
      %v2929 = vadd.f32 %v2680, %v2928
      %2930 = vmatmul.bf16.gmra.mxu0 %v2246
      %v2931 = vpop.f32.mrf.mxu0
      %v2932 = vadd.f32 %v2683, %v2931
      %v2933 = vpop.f32.mrf.mxu0
      %v2934 = vadd.f32 %v2685, %v2933
      %2935 = vmatmul.bf16.gmra.mxu0 %v2249
      %v2936 = vpop.f32.mrf.mxu0
      %v2937 = vadd.f32 %v2688, %v2936
      %v2938 = vpop.f32.mrf.mxu0
      %v2939 = vadd.f32 %v2690, %v2938
      %2940 = vmatmul.bf16.gmra.mxu0 %v2252
      %v2941 = vpop.f32.mrf.mxu0
      %v2942 = vadd.f32 %v2693, %v2941
      %v2943 = vpop.f32.mrf.mxu0
      %v2944 = vadd.f32 %v2695, %v2943
      %2945 = vmatmul.bf16.gmra.mxu0 %v2255
      %v2946 = vpop.f32.mrf.mxu0
      %v2947 = vadd.f32 %v2698, %v2946
      %v2948 = vpop.f32.mrf.mxu0
      %v2949 = vadd.f32 %v2700, %v2948
      %2950 = vmatmul.bf16.gmra.mxu0 %v2258
      %v2951 = vpop.f32.mrf.mxu0
      %v2952 = vadd.f32 %v2703, %v2951
      %v2953 = vpop.f32.mrf.mxu0
      %v2954 = vadd.f32 %v2705, %v2953
      %2955 = vmatmul.bf16.gmra.mxu0 %v2261
      %v2956 = vpop.f32.mrf.mxu0
      %v2957 = vadd.f32 %v2708, %v2956
      %v2958 = vpop.f32.mrf.mxu0
      %v2959 = vadd.f32 %v2710, %v2958
      %2960 = vmatmul.bf16.gmra.mxu0 %v2264
      %v2961 = vpop.f32.mrf.mxu0
      %v2962 = vadd.f32 %v2713, %v2961
      %v2963 = vpop.f32.mrf.mxu0
      %v2964 = vadd.f32 %v2715, %v2963
      %2965 = vmatmul.bf16.gmra.mxu0 %v2267
      %v2966 = vpop.f32.mrf.mxu0
      %v2967 = vadd.f32 %v2718, %v2966
      %v2968 = vpop.f32.mrf.mxu0
      %v2969 = vadd.f32 %v2720, %v2968
      %2970 = vmatmul.bf16.gmra.mxu0 %v2270
      %v2971 = vpop.f32.mrf.mxu0
      %v2972 = vadd.f32 %v2723, %v2971
      %v2973 = vpop.f32.mrf.mxu0
      %v2974 = vadd.f32 %v2725, %v2973
      %2975 = vmatmul.bf16.gmra.mxu0 %v2273
      %v2976 = vpop.f32.mrf.mxu0
      %v2977 = vadd.f32 %v2728, %v2976
      %v2978 = vpop.f32.mrf.mxu0
      %v2979 = vadd.f32 %v2730, %v2978
      %2980 = vmatmul.bf16.gmra.mxu0 %v2276
      %v2981 = vpop.f32.mrf.mxu0
      %v2982 = vadd.f32 %v2733, %v2981
      %v2983 = vpop.f32.mrf.mxu0
      %v2984 = vadd.f32 %v2735, %v2983
      %2985 = vmatmul.bf16.gmra.mxu0 %v2279
      %v2986 = vpop.f32.mrf.mxu0
      %v2987 = vadd.f32 %v2738, %v2986
      %v2988 = vpop.f32.mrf.mxu0
      %v2989 = vadd.f32 %v2740, %v2988
      %2990 = vmatmul.bf16.gmra.mxu0 %v2282
      %v2991 = vpop.f32.mrf.mxu0
      %v2992 = vadd.f32 %v2743, %v2991
      %v2993 = vpop.f32.mrf.mxu0
      %v2994 = vadd.f32 %v2745, %v2993
      %2995 = vdwg.mxu0
      %2996 = vmatpush.bf16.msra.mxu0 %v2874
      %2997 = vmatpush.bf16.msra.mxu0 %v2873
      %2998 = vmatpush.bf16.msra.mxu0 %v2872
      %2999 = vmatpush.bf16.msra.mxu0 %v2871
      %3000 = vmatpush.bf16.msra.mxu0 %v2870
      %3001 = vmatpush.bf16.msra.mxu0 %v2869
      %3002 = vmatpush.bf16.msra.mxu0 %v2868
      %3003 = vmatpush.bf16.msra.mxu0 %v2867
      %3004 = vmatmul.bf16.gmra.mxu0 %v2758
      %v3005 = vpop.f32.mrf.mxu0
      %v3006 = vadd.f32 %v2917, %v3005
      %v3007 = vpop.f32.mrf.mxu0
      %v3008 = vadd.f32 %v2919, %v3007
      %3009 = vmatmul.bf16.gmra.mxu0 %v2241
      %v3010 = vpop.f32.mrf.mxu0
      %v3011 = vadd.f32 %v2922, %v3010
      %v3012 = vpop.f32.mrf.mxu0
      %v3013 = vadd.f32 %v2924, %v3012
      %3014 = vmatmul.bf16.gmra.mxu0 %v2244
      %v3015 = vpop.f32.mrf.mxu0
      %v3016 = vadd.f32 %v2927, %v3015
      %v3017 = vpop.f32.mrf.mxu0
      %v3018 = vadd.f32 %v2929, %v3017
      %3019 = vmatmul.bf16.gmra.mxu0 %v2247
      %v3020 = vpop.f32.mrf.mxu0
      %v3021 = vadd.f32 %v2932, %v3020
      %v3022 = vpop.f32.mrf.mxu0
      %v3023 = vadd.f32 %v2934, %v3022
      %3024 = vmatmul.bf16.gmra.mxu0 %v2250
      %v3025 = vpop.f32.mrf.mxu0
      %v3026 = vadd.f32 %v2937, %v3025
      %v3027 = vpop.f32.mrf.mxu0
      %v3028 = vadd.f32 %v2939, %v3027
      %3029 = vmatmul.bf16.gmra.mxu0 %v2253
      %v3030 = vpop.f32.mrf.mxu0
      %v3031 = vadd.f32 %v2942, %v3030
      %v3032 = vpop.f32.mrf.mxu0
      %v3033 = vadd.f32 %v2944, %v3032
      %3034 = vmatmul.bf16.gmra.mxu0 %v2256
      %v3035 = vpop.f32.mrf.mxu0
      %v3036 = vadd.f32 %v2947, %v3035
      %v3037 = vpop.f32.mrf.mxu0
      %v3038 = vadd.f32 %v2949, %v3037
      %3039 = vmatmul.bf16.gmra.mxu0 %v2259
      %v3040 = vpop.f32.mrf.mxu0
      %v3041 = vadd.f32 %v2952, %v3040
      %v3042 = vpop.f32.mrf.mxu0
      %v3043 = vadd.f32 %v2954, %v3042
      %3044 = vmatmul.bf16.gmra.mxu0 %v2262
      %v3045 = vpop.f32.mrf.mxu0
      %v3046 = vadd.f32 %v2957, %v3045
      %v3047 = vpop.f32.mrf.mxu0
      %v3048 = vadd.f32 %v2959, %v3047
      %3049 = vmatmul.bf16.gmra.mxu0 %v2265
      %v3050 = vpop.f32.mrf.mxu0
      %v3051 = vadd.f32 %v2962, %v3050
      %v3052 = vpop.f32.mrf.mxu0
      %v3053 = vadd.f32 %v2964, %v3052
      %3054 = vmatmul.bf16.gmra.mxu0 %v2268
      %v3055 = vpop.f32.mrf.mxu0
      %v3056 = vadd.f32 %v2967, %v3055
      %v3057 = vpop.f32.mrf.mxu0
      %v3058 = vadd.f32 %v2969, %v3057
      %3059 = vmatmul.bf16.gmra.mxu0 %v2271
      %v3060 = vpop.f32.mrf.mxu0
      %v3061 = vadd.f32 %v2972, %v3060
      %v3062 = vpop.f32.mrf.mxu0
      %v3063 = vadd.f32 %v2974, %v3062
      %3064 = vmatmul.bf16.gmra.mxu0 %v2274
      %v3065 = vpop.f32.mrf.mxu0
      %v3066 = vadd.f32 %v2977, %v3065
      %v3067 = vpop.f32.mrf.mxu0
      %v3068 = vadd.f32 %v2979, %v3067
      %3069 = vmatmul.bf16.gmra.mxu0 %v2277
      %v3070 = vpop.f32.mrf.mxu0
      %v3071 = vadd.f32 %v2982, %v3070
      %v3072 = vpop.f32.mrf.mxu0
      %v3073 = vadd.f32 %v2984, %v3072
      %3074 = vmatmul.bf16.gmra.mxu0 %v2280
      %v3075 = vpop.f32.mrf.mxu0
      %v3076 = vadd.f32 %v2987, %v3075
      %v3077 = vpop.f32.mrf.mxu0
      %v3078 = vadd.f32 %v2989, %v3077
      %3079 = vmatmul.bf16.gmra.mxu0 %v2283
      %v3080 = vpop.f32.mrf.mxu0
      %v3081 = vadd.f32 %v2992, %v3080
      %v3082 = vpop.f32.mrf.mxu0
      %v3083 = vadd.f32 %v2994, %v3082
      %3084 = vdwg.mxu0
      %3085 = vmatpush.bf16.msra.mxu0 %v2882
      %3086 = vmatpush.bf16.msra.mxu0 %v2881
      %3087 = vmatpush.bf16.msra.mxu0 %v2880
      %3088 = vmatpush.bf16.msra.mxu0 %v2879
      %3089 = vmatpush.bf16.msra.mxu0 %v2878
      %3090 = vmatpush.bf16.msra.mxu0 %v2877
      %3091 = vmatpush.bf16.msra.mxu0 %v2876
      %3092 = vmatpush.bf16.msra.mxu0 %v2875
      %3093 = vmatmul.bf16.gmra.mxu0 %v2759
      %v3094 = vpop.f32.mrf.mxu0
      %v3095 = vadd.f32 %v3006, %v3094
      %v3096 = vpop.f32.mrf.mxu0
      %v3097 = vadd.f32 %v3008, %v3096
      %3098 = vmatmul.bf16.gmra.mxu0 %v2242
      %v3099 = vpop.f32.mrf.mxu0
      %v3100 = vadd.f32 %v3011, %v3099
      %v3101 = vpop.f32.mrf.mxu0
      %v3102 = vadd.f32 %v3013, %v3101
      %3103 = vmatmul.bf16.gmra.mxu0 %v2245
      %v3104 = vpop.f32.mrf.mxu0
      %v3105 = vadd.f32 %v3016, %v3104
      %v3106 = vpop.f32.mrf.mxu0
      %v3107 = vadd.f32 %v3018, %v3106
      %3108 = vmatmul.bf16.gmra.mxu0 %v2248
      %v3109 = vpop.f32.mrf.mxu0
      %v3110 = vadd.f32 %v3021, %v3109
      %v3111 = vpop.f32.mrf.mxu0
      %v3112 = vadd.f32 %v3023, %v3111
      %3113 = vmatmul.bf16.gmra.mxu0 %v2251
      %v3114 = vpop.f32.mrf.mxu0
      %v3115 = vadd.f32 %v3026, %v3114
      %v3116 = vpop.f32.mrf.mxu0
      %v3117 = vadd.f32 %v3028, %v3116
      %3118 = vmatmul.bf16.gmra.mxu0 %v2254
      %v3119 = vpop.f32.mrf.mxu0
      %v3120 = vadd.f32 %v3031, %v3119
      %v3121 = vpop.f32.mrf.mxu0
      %v3122 = vadd.f32 %v3033, %v3121
      %3123 = vmatmul.bf16.gmra.mxu0 %v2257
      %v3124 = vpop.f32.mrf.mxu0
      %v3125 = vadd.f32 %v3036, %v3124
      %v3126 = vpop.f32.mrf.mxu0
      %v3127 = vadd.f32 %v3038, %v3126
      %3128 = vmatmul.bf16.gmra.mxu0 %v2260
      %v3129 = vpop.f32.mrf.mxu0
      %v3130 = vadd.f32 %v3041, %v3129
      %v3131 = vpop.f32.mrf.mxu0
      %v3132 = vadd.f32 %v3043, %v3131
      %3133 = vmatmul.bf16.gmra.mxu0 %v2263
      %v3134 = vpop.f32.mrf.mxu0
      %v3135 = vadd.f32 %v3046, %v3134
      %v3136 = vpop.f32.mrf.mxu0
      %v3137 = vadd.f32 %v3048, %v3136
      %3138 = vmatmul.bf16.gmra.mxu0 %v2266
      %v3139 = vpop.f32.mrf.mxu0
      %v3140 = vadd.f32 %v3051, %v3139
      %v3141 = vpop.f32.mrf.mxu0
      %v3142 = vadd.f32 %v3053, %v3141
      %3143 = vmatmul.bf16.gmra.mxu0 %v2269
      %v3144 = vpop.f32.mrf.mxu0
      %v3145 = vadd.f32 %v3056, %v3144
      %v3146 = vpop.f32.mrf.mxu0
      %v3147 = vadd.f32 %v3058, %v3146
      %3148 = vmatmul.bf16.gmra.mxu0 %v2272
      %v3149 = vpop.f32.mrf.mxu0
      %v3150 = vadd.f32 %v3061, %v3149
      %v3151 = vpop.f32.mrf.mxu0
      %v3152 = vadd.f32 %v3063, %v3151
      %3153 = vmatmul.bf16.gmra.mxu0 %v2275
      %v3154 = vpop.f32.mrf.mxu0
      %v3155 = vadd.f32 %v3066, %v3154
      %v3156 = vpop.f32.mrf.mxu0
      %v3157 = vadd.f32 %v3068, %v3156
      %3158 = vmatmul.bf16.gmra.mxu0 %v2278
      %v3159 = vpop.f32.mrf.mxu0
      %v3160 = vadd.f32 %v3071, %v3159
      %v3161 = vpop.f32.mrf.mxu0
      %v3162 = vadd.f32 %v3073, %v3161
      %3163 = vmatmul.bf16.gmra.mxu0 %v2281
      %v3164 = vpop.f32.mrf.mxu0
      %v3165 = vadd.f32 %v3076, %v3164
      %v3166 = vpop.f32.mrf.mxu0
      %v3167 = vadd.f32 %v3078, %v3166
      %3168 = vmatmul.bf16.gmra.mxu0 %v2284
      %v3169 = vpop.f32.mrf.mxu0
      %v3170 = vadd.f32 %v3081, %v3169
      %v3171 = vpop.f32.mrf.mxu0
      %v3172 = vadd.f32 %v3083, %v3171
      %3173 = vdwg.mxu0
      %s3174 = scalar_lea.vmem %s6, 384
      %v3175 = vld [vmem:[%s3174] sm:$0xf]
      %v3176 = vld [vmem:[%s3174 + $0x4] sm:$0xf]
      %v3177 = vld [vmem:[%s3174 + $0x8] sm:$0xf]
      %v3178 = vld [vmem:[%s3174 + $0xc] sm:$0xf]
      %v3179 = vld [vmem:[%s3174 + $0x10] sm:$0xf]
      %v3180 = vld [vmem:[%s3174 + $0x14] sm:$0xf]
      %v3181 = vld [vmem:[%s3174 + $0x18] sm:$0xf]
      %v3182 = vld [vmem:[%s3174 + $0x1c] sm:$0xf]
      %v3183 = vld [vmem:[%s3174 + $0x20] sm:$0xf]
      %v3184 = vld [vmem:[%s3174 + $0x24] sm:$0xf]
      %v3185 = vld [vmem:[%s3174 + $0x28] sm:$0xf]
      %v3186 = vld [vmem:[%s3174 + $0x2c] sm:$0xf]
      %v3187 = vld [vmem:[%s3174 + $0x30] sm:$0xf]
      %v3188 = vld [vmem:[%s3174 + $0x34] sm:$0xf]
      %v3189 = vld [vmem:[%s3174 + $0x38] sm:$0xf]
      %v3190 = vld [vmem:[%s3174 + $0x3c] sm:$0xf]
      %v3191 = vld [vmem:[%s3174 + $0x40] sm:$0xf]
      %v3192 = vld [vmem:[%s3174 + $0x44] sm:$0xf]
      %v3193 = vld [vmem:[%s3174 + $0x48] sm:$0xf]
      %v3194 = vld [vmem:[%s3174 + $0x4c] sm:$0xf]
      %v3195 = vld [vmem:[%s3174 + $0x50] sm:$0xf]
      %v3196 = vld [vmem:[%s3174 + $0x54] sm:$0xf]
      %v3197 = vld [vmem:[%s3174 + $0x58] sm:$0xf]
      %v3198 = vld [vmem:[%s3174 + $0x5c] sm:$0xf]
      %v3199 = vld [vmem:[%s3174 + $0x60] sm:$0xf]
      %v3200 = vld [vmem:[%s3174 + $0x64] sm:$0xf]
      %v3201 = vld [vmem:[%s3174 + $0x68] sm:$0xf]
      %v3202 = vld [vmem:[%s3174 + $0x6c] sm:$0xf]
      %v3203 = vld [vmem:[%s3174 + $0x70] sm:$0xf]
      %v3204 = vld [vmem:[%s3174 + $0x74] sm:$0xf]
      %v3205 = vld [vmem:[%s3174 + $0x78] sm:$0xf]
      %v3206 = vld [vmem:[%s3174 + $0x7c] sm:$0xf]
      %v3207 = vld [vmem:[%s3174 + $0x80] sm:$0xf]
      %v3208 = vld [vmem:[%s3174 + $0x84] sm:$0xf]
      %v3209 = vld [vmem:[%s3174 + $0x88] sm:$0xf]
      %v3210 = vld [vmem:[%s3174 + $0x8c] sm:$0xf]
      %v3211 = vld [vmem:[%s3174 + $0x90] sm:$0xf]
      %v3212 = vld [vmem:[%s3174 + $0x94] sm:$0xf]
      %v3213 = vld [vmem:[%s3174 + $0x98] sm:$0xf]
      %v3214 = vld [vmem:[%s3174 + $0x9c] sm:$0xf]
      %v3215 = vld [vmem:[%s3174 + $0xa0] sm:$0xf]
      %v3216 = vld [vmem:[%s3174 + $0xa4] sm:$0xf]
      %v3217 = vld [vmem:[%s3174 + $0xa8] sm:$0xf]
      %v3218 = vld [vmem:[%s3174 + $0xac] sm:$0xf]
      %v3219 = vld [vmem:[%s3174 + $0xb0] sm:$0xf]
      %v3220 = vld [vmem:[%s3174 + $0xb4] sm:$0xf]
      %v3221 = vld [vmem:[%s3174 + $0xb8] sm:$0xf]
      %v3222 = vld [vmem:[%s3174 + $0xbc] sm:$0xf]
      %v3227 = vunpack.c.l.b16 %v1979
      %v3228 = vunpack.c.h.b16 %v1979
      %v3229 = vunpack.c.l.b16 %v1980
      %v3230 = vunpack.c.l.b16 %v1981
      %v3231 = vunpack.c.h.b16 %v1981
      %v3232 = vunpack.c.l.b16 %v1982
      %v3233 = vpack.c.b16 %v3230, %v3227
      %v3234 = vpack.c.b16 %v3231, %v3228
      %v3235 = vpack.c.b16 %v3232, %v3229
      %v3287 = vunpack.c.l.b16 %v3175
      %v3288 = vunpack.c.l.b16 %v3176
      %v3289 = vunpack.c.l.b16 %v3177
      %v3290 = vunpack.c.l.b16 %v3178
      %v3291 = vunpack.c.l.b16 %v3179
      %v3292 = vunpack.c.l.b16 %v3180
      %v3293 = vunpack.c.l.b16 %v3181
      %v3294 = vunpack.c.l.b16 %v3182
      %v3295 = vunpack.c.l.b16 %v3183
      %v3296 = vunpack.c.l.b16 %v3184
      %v3297 = vunpack.c.l.b16 %v3185
      %v3298 = vunpack.c.l.b16 %v3186
      %v3299 = vunpack.c.l.b16 %v3187
      %v3300 = vunpack.c.l.b16 %v3188
      %v3301 = vunpack.c.l.b16 %v3189
      %v3302 = vunpack.c.l.b16 %v3190
      %v3303 = vunpack.c.l.b16 %v3191
      %v3304 = vunpack.c.l.b16 %v3192
      %v3305 = vunpack.c.l.b16 %v3193
      %v3306 = vunpack.c.l.b16 %v3194
      %v3307 = vunpack.c.l.b16 %v3195
      %v3308 = vunpack.c.l.b16 %v3196
      %v3309 = vunpack.c.l.b16 %v3197
      %v3310 = vunpack.c.l.b16 %v3198
      %v3311 = vunpack.c.l.b16 %v3199
      %v3312 = vunpack.c.l.b16 %v3200
      %v3313 = vunpack.c.l.b16 %v3201
      %v3314 = vunpack.c.l.b16 %v3202
      %v3315 = vunpack.c.l.b16 %v3203
      %v3316 = vunpack.c.l.b16 %v3204
      %v3317 = vunpack.c.l.b16 %v3205
      %v3318 = vunpack.c.l.b16 %v3206
      %v3319 = vunpack.c.l.b16 %v3207
      %v3320 = vunpack.c.l.b16 %v3208
      %v3321 = vunpack.c.l.b16 %v3209
      %v3322 = vunpack.c.l.b16 %v3210
      %v3323 = vunpack.c.l.b16 %v3211
      %v3324 = vunpack.c.l.b16 %v3212
      %v3325 = vunpack.c.l.b16 %v3213
      %v3326 = vunpack.c.l.b16 %v3214
      %v3327 = vunpack.c.l.b16 %v3215
      %v3328 = vunpack.c.l.b16 %v3216
      %v3329 = vunpack.c.l.b16 %v3217
      %v3330 = vunpack.c.l.b16 %v3218
      %v3331 = vunpack.c.l.b16 %v3219
      %v3332 = vunpack.c.l.b16 %v3220
      %v3333 = vunpack.c.l.b16 %v3221
      %v3334 = vunpack.c.l.b16 %v3222
      %v3335 = vpack.c.b16 %v3288, %v3287
      %v3336 = vpack.c.b16 %v3290, %v3289
      %v3337 = vpack.c.b16 %v3292, %v3291
      %v3338 = vpack.c.b16 %v3294, %v3293
      %v3339 = vpack.c.b16 %v3296, %v3295
      %v3340 = vpack.c.b16 %v3298, %v3297
      %v3341 = vpack.c.b16 %v3300, %v3299
      %v3342 = vpack.c.b16 %v3302, %v3301
      %v3343 = vpack.c.b16 %v3304, %v3303
      %v3344 = vpack.c.b16 %v3306, %v3305
      %v3345 = vpack.c.b16 %v3308, %v3307
      %v3346 = vpack.c.b16 %v3310, %v3309
      %v3347 = vpack.c.b16 %v3312, %v3311
      %v3348 = vpack.c.b16 %v3314, %v3313
      %v3349 = vpack.c.b16 %v3316, %v3315
      %v3350 = vpack.c.b16 %v3318, %v3317
      %v3351 = vpack.c.b16 %v3320, %v3319
      %v3352 = vpack.c.b16 %v3322, %v3321
      %v3353 = vpack.c.b16 %v3324, %v3323
      %v3354 = vpack.c.b16 %v3326, %v3325
      %v3355 = vpack.c.b16 %v3328, %v3327
      %v3356 = vpack.c.b16 %v3330, %v3329
      %v3357 = vpack.c.b16 %v3332, %v3331
      %v3358 = vpack.c.b16 %v3334, %v3333
      %3383 = vmatpush.bf16.msra.mxu0 %v3342
      %3384 = vmatpush.bf16.msra.mxu0 %v3341
      %3385 = vmatpush.bf16.msra.mxu0 %v3340
      %3386 = vmatpush.bf16.msra.mxu0 %v3339
      %3387 = vmatpush.bf16.msra.mxu0 %v3338
      %3388 = vmatpush.bf16.msra.mxu0 %v3337
      %3389 = vmatpush.bf16.msra.mxu0 %v3336
      %3390 = vmatpush.bf16.msra.mxu0 %v3335
      %3391 = vmatmul.bf16.gmra.mxu0 %v2243
      %v3392 = vpop.f32.mrf.mxu0
      %v3393 = vadd.f32 0.0, %v3392
      %v3394 = vpop.f32.mrf.mxu0
      %v3395 = vadd.f32 0.0, %v3394
      %3396 = vmatmul.bf16.gmra.mxu0 %v2246
      %v3397 = vpop.f32.mrf.mxu0
      %v3398 = vadd.f32 0.0, %v3397
      %v3399 = vpop.f32.mrf.mxu0
      %v3400 = vadd.f32 0.0, %v3399
      %3401 = vmatmul.bf16.gmra.mxu0 %v2249
      %v3402 = vpop.f32.mrf.mxu0
      %v3403 = vadd.f32 0.0, %v3402
      %v3404 = vpop.f32.mrf.mxu0
      %v3405 = vadd.f32 0.0, %v3404
      %3406 = vmatmul.bf16.gmra.mxu0 %v2252
      %v3407 = vpop.f32.mrf.mxu0
      %v3408 = vadd.f32 0.0, %v3407
      %v3409 = vpop.f32.mrf.mxu0
      %v3410 = vadd.f32 0.0, %v3409
      %3411 = vmatmul.bf16.gmra.mxu0 %v2255
      %v3412 = vpop.f32.mrf.mxu0
      %v3413 = vadd.f32 0.0, %v3412
      %v3414 = vpop.f32.mrf.mxu0
      %v3415 = vadd.f32 0.0, %v3414
      %3416 = vmatmul.bf16.gmra.mxu0 %v2258
      %v3417 = vpop.f32.mrf.mxu0
      %v3418 = vadd.f32 0.0, %v3417
      %v3419 = vpop.f32.mrf.mxu0
      %v3420 = vadd.f32 0.0, %v3419
      %3421 = vmatmul.bf16.gmra.mxu0 %v2261
      %v3422 = vpop.f32.mrf.mxu0
      %v3423 = vadd.f32 0.0, %v3422
      %v3424 = vpop.f32.mrf.mxu0
      %v3425 = vadd.f32 0.0, %v3424
      %3426 = vmatmul.bf16.gmra.mxu0 %v2264
      %v3427 = vpop.f32.mrf.mxu0
      %v3428 = vadd.f32 0.0, %v3427
      %v3429 = vpop.f32.mrf.mxu0
      %v3430 = vadd.f32 0.0, %v3429
      %3431 = vmatmul.bf16.gmra.mxu0 %v2267
      %v3432 = vpop.f32.mrf.mxu0
      %v3433 = vadd.f32 0.0, %v3432
      %v3434 = vpop.f32.mrf.mxu0
      %v3435 = vadd.f32 0.0, %v3434
      %3436 = vmatmul.bf16.gmra.mxu0 %v2270
      %v3437 = vpop.f32.mrf.mxu0
      %v3438 = vadd.f32 0.0, %v3437
      %v3439 = vpop.f32.mrf.mxu0
      %v3440 = vadd.f32 0.0, %v3439
      %3441 = vmatmul.bf16.gmra.mxu0 %v2273
      %v3442 = vpop.f32.mrf.mxu0
      %v3443 = vadd.f32 0.0, %v3442
      %v3444 = vpop.f32.mrf.mxu0
      %v3445 = vadd.f32 0.0, %v3444
      %3446 = vmatmul.bf16.gmra.mxu0 %v2276
      %v3447 = vpop.f32.mrf.mxu0
      %v3448 = vadd.f32 0.0, %v3447
      %v3449 = vpop.f32.mrf.mxu0
      %v3450 = vadd.f32 0.0, %v3449
      %3451 = vmatmul.bf16.gmra.mxu0 %v2279
      %v3452 = vpop.f32.mrf.mxu0
      %v3453 = vadd.f32 0.0, %v3452
      %v3454 = vpop.f32.mrf.mxu0
      %v3455 = vadd.f32 0.0, %v3454
      %3456 = vmatmul.bf16.gmra.mxu0 %v2282
      %v3457 = vpop.f32.mrf.mxu0
      %v3458 = vadd.f32 0.0, %v3457
      %v3459 = vpop.f32.mrf.mxu0
      %v3460 = vadd.f32 0.0, %v3459
      %3461 = vmatmul.bf16.gmra.mxu0 %v2285
      %v3462 = vpop.f32.mrf.mxu0
      %v3463 = vadd.f32 0.0, %v3462
      %v3464 = vpop.f32.mrf.mxu0
      %v3465 = vadd.f32 0.0, %v3464
      %3466 = vmatmul.bf16.gmra.mxu0 %v3233
      %v3467 = vpop.f32.mrf.mxu0
      %v3468 = vadd.f32 0.0, %v3467
      %v3469 = vpop.f32.mrf.mxu0
      %v3470 = vadd.f32 0.0, %v3469
      %3471 = vdwg.mxu0
      %3472 = vmatpush.bf16.msra.mxu0 %v3350
      %3473 = vmatpush.bf16.msra.mxu0 %v3349
      %3474 = vmatpush.bf16.msra.mxu0 %v3348
      %3475 = vmatpush.bf16.msra.mxu0 %v3347
      %3476 = vmatpush.bf16.msra.mxu0 %v3346
      %3477 = vmatpush.bf16.msra.mxu0 %v3345
      %3478 = vmatpush.bf16.msra.mxu0 %v3344
      %3479 = vmatpush.bf16.msra.mxu0 %v3343
      %3480 = vmatmul.bf16.gmra.mxu0 %v2244
      %v3481 = vpop.f32.mrf.mxu0
      %v3482 = vadd.f32 %v3393, %v3481
      %v3483 = vpop.f32.mrf.mxu0
      %v3484 = vadd.f32 %v3395, %v3483
      %3485 = vmatmul.bf16.gmra.mxu0 %v2247
      %v3486 = vpop.f32.mrf.mxu0
      %v3487 = vadd.f32 %v3398, %v3486
      %v3488 = vpop.f32.mrf.mxu0
      %v3489 = vadd.f32 %v3400, %v3488
      %3490 = vmatmul.bf16.gmra.mxu0 %v2250
      %v3491 = vpop.f32.mrf.mxu0
      %v3492 = vadd.f32 %v3403, %v3491
      %v3493 = vpop.f32.mrf.mxu0
      %v3494 = vadd.f32 %v3405, %v3493
      %3495 = vmatmul.bf16.gmra.mxu0 %v2253
      %v3496 = vpop.f32.mrf.mxu0
      %v3497 = vadd.f32 %v3408, %v3496
      %v3498 = vpop.f32.mrf.mxu0
      %v3499 = vadd.f32 %v3410, %v3498
      %3500 = vmatmul.bf16.gmra.mxu0 %v2256
      %v3501 = vpop.f32.mrf.mxu0
      %v3502 = vadd.f32 %v3413, %v3501
      %v3503 = vpop.f32.mrf.mxu0
      %v3504 = vadd.f32 %v3415, %v3503
      %3505 = vmatmul.bf16.gmra.mxu0 %v2259
      %v3506 = vpop.f32.mrf.mxu0
      %v3507 = vadd.f32 %v3418, %v3506
      %v3508 = vpop.f32.mrf.mxu0
      %v3509 = vadd.f32 %v3420, %v3508
      %3510 = vmatmul.bf16.gmra.mxu0 %v2262
      %v3511 = vpop.f32.mrf.mxu0
      %v3512 = vadd.f32 %v3423, %v3511
      %v3513 = vpop.f32.mrf.mxu0
      %v3514 = vadd.f32 %v3425, %v3513
      %3515 = vmatmul.bf16.gmra.mxu0 %v2265
      %v3516 = vpop.f32.mrf.mxu0
      %v3517 = vadd.f32 %v3428, %v3516
      %v3518 = vpop.f32.mrf.mxu0
      %v3519 = vadd.f32 %v3430, %v3518
      %3520 = vmatmul.bf16.gmra.mxu0 %v2268
      %v3521 = vpop.f32.mrf.mxu0
      %v3522 = vadd.f32 %v3433, %v3521
      %v3523 = vpop.f32.mrf.mxu0
      %v3524 = vadd.f32 %v3435, %v3523
      %3525 = vmatmul.bf16.gmra.mxu0 %v2271
      %v3526 = vpop.f32.mrf.mxu0
      %v3527 = vadd.f32 %v3438, %v3526
      %v3528 = vpop.f32.mrf.mxu0
      %v3529 = vadd.f32 %v3440, %v3528
      %3530 = vmatmul.bf16.gmra.mxu0 %v2274
      %v3531 = vpop.f32.mrf.mxu0
      %v3532 = vadd.f32 %v3443, %v3531
      %v3533 = vpop.f32.mrf.mxu0
      %v3534 = vadd.f32 %v3445, %v3533
      %3535 = vmatmul.bf16.gmra.mxu0 %v2277
      %v3536 = vpop.f32.mrf.mxu0
      %v3537 = vadd.f32 %v3448, %v3536
      %v3538 = vpop.f32.mrf.mxu0
      %v3539 = vadd.f32 %v3450, %v3538
      %3540 = vmatmul.bf16.gmra.mxu0 %v2280
      %v3541 = vpop.f32.mrf.mxu0
      %v3542 = vadd.f32 %v3453, %v3541
      %v3543 = vpop.f32.mrf.mxu0
      %v3544 = vadd.f32 %v3455, %v3543
      %3545 = vmatmul.bf16.gmra.mxu0 %v2283
      %v3546 = vpop.f32.mrf.mxu0
      %v3547 = vadd.f32 %v3458, %v3546
      %v3548 = vpop.f32.mrf.mxu0
      %v3549 = vadd.f32 %v3460, %v3548
      %3550 = vmatmul.bf16.gmra.mxu0 %v2286
      %v3551 = vpop.f32.mrf.mxu0
      %v3552 = vadd.f32 %v3463, %v3551
      %v3553 = vpop.f32.mrf.mxu0
      %v3554 = vadd.f32 %v3465, %v3553
      %3555 = vmatmul.bf16.gmra.mxu0 %v3234
      %v3556 = vpop.f32.mrf.mxu0
      %v3557 = vadd.f32 %v3468, %v3556
      %v3558 = vpop.f32.mrf.mxu0
      %v3559 = vadd.f32 %v3470, %v3558
      %3560 = vdwg.mxu0
      %3561 = vmatpush.bf16.msra.mxu0 %v3358
      %3562 = vmatpush.bf16.msra.mxu0 %v3357
      %3563 = vmatpush.bf16.msra.mxu0 %v3356
      %3564 = vmatpush.bf16.msra.mxu0 %v3355
      %3565 = vmatpush.bf16.msra.mxu0 %v3354
      %3566 = vmatpush.bf16.msra.mxu0 %v3353
      %3567 = vmatpush.bf16.msra.mxu0 %v3352
      %3568 = vmatpush.bf16.msra.mxu0 %v3351
      %3569 = vmatmul.bf16.gmra.mxu0 %v2245
      %v3570 = vpop.f32.mrf.mxu0
      %v3571 = vadd.f32 %v3482, %v3570
      %v3572 = vpop.f32.mrf.mxu0
      %v3573 = vadd.f32 %v3484, %v3572
      %3574 = vmatmul.bf16.gmra.mxu0 %v2248
      %v3575 = vpop.f32.mrf.mxu0
      %v3576 = vadd.f32 %v3487, %v3575
      %v3577 = vpop.f32.mrf.mxu0
      %v3578 = vadd.f32 %v3489, %v3577
      %3579 = vmatmul.bf16.gmra.mxu0 %v2251
      %v3580 = vpop.f32.mrf.mxu0
      %v3581 = vadd.f32 %v3492, %v3580
      %v3582 = vpop.f32.mrf.mxu0
      %v3583 = vadd.f32 %v3494, %v3582
      %3584 = vmatmul.bf16.gmra.mxu0 %v2254
      %v3585 = vpop.f32.mrf.mxu0
      %v3586 = vadd.f32 %v3497, %v3585
      %v3587 = vpop.f32.mrf.mxu0
      %v3588 = vadd.f32 %v3499, %v3587
      %3589 = vmatmul.bf16.gmra.mxu0 %v2257
      %v3590 = vpop.f32.mrf.mxu0
      %v3591 = vadd.f32 %v3502, %v3590
      %v3592 = vpop.f32.mrf.mxu0
      %v3593 = vadd.f32 %v3504, %v3592
      %3594 = vmatmul.bf16.gmra.mxu0 %v2260
      %v3595 = vpop.f32.mrf.mxu0
      %v3596 = vadd.f32 %v3507, %v3595
      %v3597 = vpop.f32.mrf.mxu0
      %v3598 = vadd.f32 %v3509, %v3597
      %3599 = vmatmul.bf16.gmra.mxu0 %v2263
      %v3600 = vpop.f32.mrf.mxu0
      %v3601 = vadd.f32 %v3512, %v3600
      %v3602 = vpop.f32.mrf.mxu0
      %v3603 = vadd.f32 %v3514, %v3602
      %3604 = vmatmul.bf16.gmra.mxu0 %v2266
      %v3605 = vpop.f32.mrf.mxu0
      %v3606 = vadd.f32 %v3517, %v3605
      %v3607 = vpop.f32.mrf.mxu0
      %v3608 = vadd.f32 %v3519, %v3607
      %3609 = vmatmul.bf16.gmra.mxu0 %v2269
      %v3610 = vpop.f32.mrf.mxu0
      %v3611 = vadd.f32 %v3522, %v3610
      %v3612 = vpop.f32.mrf.mxu0
      %v3613 = vadd.f32 %v3524, %v3612
      %3614 = vmatmul.bf16.gmra.mxu0 %v2272
      %v3615 = vpop.f32.mrf.mxu0
      %v3616 = vadd.f32 %v3527, %v3615
      %v3617 = vpop.f32.mrf.mxu0
      %v3618 = vadd.f32 %v3529, %v3617
      %3619 = vmatmul.bf16.gmra.mxu0 %v2275
      %v3620 = vpop.f32.mrf.mxu0
      %v3621 = vadd.f32 %v3532, %v3620
      %v3622 = vpop.f32.mrf.mxu0
      %v3623 = vadd.f32 %v3534, %v3622
      %3624 = vmatmul.bf16.gmra.mxu0 %v2278
      %v3625 = vpop.f32.mrf.mxu0
      %v3626 = vadd.f32 %v3537, %v3625
      %v3627 = vpop.f32.mrf.mxu0
      %v3628 = vadd.f32 %v3539, %v3627
      %3629 = vmatmul.bf16.gmra.mxu0 %v2281
      %v3630 = vpop.f32.mrf.mxu0
      %v3631 = vadd.f32 %v3542, %v3630
      %v3632 = vpop.f32.mrf.mxu0
      %v3633 = vadd.f32 %v3544, %v3632
      %3634 = vmatmul.bf16.gmra.mxu0 %v2284
      %v3635 = vpop.f32.mrf.mxu0
      %v3636 = vadd.f32 %v3547, %v3635
      %v3637 = vpop.f32.mrf.mxu0
      %v3638 = vadd.f32 %v3549, %v3637
      %3639 = vmatmul.bf16.gmra.mxu0 %v2287
      %v3640 = vpop.f32.mrf.mxu0
      %v3641 = vadd.f32 %v3552, %v3640
      %v3642 = vpop.f32.mrf.mxu0
      %v3643 = vadd.f32 %v3554, %v3642
      %3644 = vmatmul.bf16.gmra.mxu0 %v3235
      %v3645 = vpop.f32.mrf.mxu0
      %v3646 = vadd.f32 %v3557, %v3645
      %v3647 = vpop.f32.mrf.mxu0
      %v3648 = vadd.f32 %v3559, %v3647
      %3649 = vdwg.mxu0
      %v3650 = vadd.f32 %v3095, %v3571
      %v3651 = vadd.f32 %v3097, %v3573
      %v3652 = vadd.f32 %v3100, %v3576
      %v3653 = vadd.f32 %v3102, %v3578
      %v3654 = vadd.f32 %v3105, %v3581
      %v3655 = vadd.f32 %v3107, %v3583
      %v3656 = vadd.f32 %v3110, %v3586
      %v3657 = vadd.f32 %v3112, %v3588
      %v3658 = vadd.f32 %v3115, %v3591
      %v3659 = vadd.f32 %v3117, %v3593
      %v3660 = vadd.f32 %v3120, %v3596
      %v3661 = vadd.f32 %v3122, %v3598
      %v3662 = vadd.f32 %v3125, %v3601
      %v3663 = vadd.f32 %v3127, %v3603
      %v3664 = vadd.f32 %v3130, %v3606
      %v3665 = vadd.f32 %v3132, %v3608
      %v3666 = vadd.f32 %v3135, %v3611
      %v3667 = vadd.f32 %v3137, %v3613
      %v3668 = vadd.f32 %v3140, %v3616
      %v3669 = vadd.f32 %v3142, %v3618
      %v3670 = vadd.f32 %v3145, %v3621
      %v3671 = vadd.f32 %v3147, %v3623
      %v3672 = vadd.f32 %v3150, %v3626
      %v3673 = vadd.f32 %v3152, %v3628
      %v3674 = vadd.f32 %v3155, %v3631
      %v3675 = vadd.f32 %v3157, %v3633
      %v3676 = vadd.f32 %v3160, %v3636
      %v3677 = vadd.f32 %v3162, %v3638
      %v3678 = vadd.f32 %v3165, %v3641
      %v3679 = vadd.f32 %v3167, %v3643
      %v3680 = vadd.f32 %v3170, %v3646
      %v3681 = vadd.f32 %v3172, %v3648
      %v3682 = vld [vmem:[%s7] sm:$0x1]
      %v3684 = vperm.slane %v3682, 0
      %v3686 = vmul.f32 %v3650, %v3684
      %v3687 = vmul.f32 %v3651, %v3684
      %v3688 = vmul.f32 %v3652, %v3684
      %v3689 = vmul.f32 %v3653, %v3684
      %v3690 = vmul.f32 %v3654, %v3684
      %v3691 = vmul.f32 %v3655, %v3684
      %v3692 = vmul.f32 %v3656, %v3684
      %v3693 = vmul.f32 %v3657, %v3684
      %v3694 = vmul.f32 %v3658, %v3684
      %v3695 = vmul.f32 %v3659, %v3684
      %v3696 = vmul.f32 %v3660, %v3684
      %v3697 = vmul.f32 %v3661, %v3684
      %v3698 = vmul.f32 %v3662, %v3684
      %v3699 = vmul.f32 %v3663, %v3684
      %v3700 = vmul.f32 %v3664, %v3684
      %v3701 = vmul.f32 %v3665, %v3684
      %v3702 = vmul.f32 %v3666, %v3684
      %v3703 = vmul.f32 %v3667, %v3684
      %v3704 = vmul.f32 %v3668, %v3684
      %v3705 = vmul.f32 %v3669, %v3684
      %v3706 = vmul.f32 %v3670, %v3684
      %v3707 = vmul.f32 %v3671, %v3684
      %v3708 = vmul.f32 %v3672, %v3684
      %v3709 = vmul.f32 %v3673, %v3684
      %v3710 = vmul.f32 %v3674, %v3684
      %v3711 = vmul.f32 %v3675, %v3684
      %v3712 = vmul.f32 %v3676, %v3684
      %v3713 = vmul.f32 %v3677, %v3684
      %v3714 = vmul.f32 %v3678, %v3684
      %v3715 = vmul.f32 %v3679, %v3684
      %v3716 = vmul.f32 %v3680, %v3684
      %v3717 = vmul.f32 %v3681, %v3684
      %v3718 = vld [vmem:[%s8] sm:$0x1]
      %v3720 = vperm.slane %v3718, 0
      %v3722 = vadd.f32 %v3686, %v3720
      %v3723 = vadd.f32 %v3687, %v3720
      %v3724 = vadd.f32 %v3688, %v3720
      %v3725 = vadd.f32 %v3689, %v3720
      %v3726 = vadd.f32 %v3690, %v3720
      %v3727 = vadd.f32 %v3691, %v3720
      %v3728 = vadd.f32 %v3692, %v3720
      %v3729 = vadd.f32 %v3693, %v3720
      %v3730 = vadd.f32 %v3694, %v3720
      %v3731 = vadd.f32 %v3695, %v3720
      %v3732 = vadd.f32 %v3696, %v3720
      %v3733 = vadd.f32 %v3697, %v3720
      %v3734 = vadd.f32 %v3698, %v3720
      %v3735 = vadd.f32 %v3699, %v3720
      %v3736 = vadd.f32 %v3700, %v3720
      %v3737 = vadd.f32 %v3701, %v3720
      %v3738 = vadd.f32 %v3702, %v3720
      %v3739 = vadd.f32 %v3703, %v3720
      %v3740 = vadd.f32 %v3704, %v3720
      %v3741 = vadd.f32 %v3705, %v3720
      %v3742 = vadd.f32 %v3706, %v3720
      %v3743 = vadd.f32 %v3707, %v3720
      %v3744 = vadd.f32 %v3708, %v3720
      %v3745 = vadd.f32 %v3709, %v3720
      %v3746 = vadd.f32 %v3710, %v3720
      %v3747 = vadd.f32 %v3711, %v3720
      %v3748 = vadd.f32 %v3712, %v3720
      %v3749 = vadd.f32 %v3713, %v3720
      %v3750 = vadd.f32 %v3714, %v3720
      %v3751 = vadd.f32 %v3715, %v3720
      %v3752 = vadd.f32 %v3716, %v3720
      %v3753 = vadd.f32 %v3717, %v3720
      %vm3754 = vcmp.gt.f32.partialorder %v3722, 0.0
      %vm3755 = vcmp.gt.f32.partialorder %v3723, 0.0
      %vm3756 = vcmp.gt.f32.partialorder %v3724, 0.0
      %vm3757 = vcmp.gt.f32.partialorder %v3725, 0.0
      %vm3758 = vcmp.gt.f32.partialorder %v3726, 0.0
      %vm3759 = vcmp.gt.f32.partialorder %v3727, 0.0
      %vm3760 = vcmp.gt.f32.partialorder %v3728, 0.0
      %vm3761 = vcmp.gt.f32.partialorder %v3729, 0.0
      %vm3762 = vcmp.gt.f32.partialorder %v3730, 0.0
      %vm3763 = vcmp.gt.f32.partialorder %v3731, 0.0
      %vm3764 = vcmp.gt.f32.partialorder %v3732, 0.0
      %vm3765 = vcmp.gt.f32.partialorder %v3733, 0.0
      %vm3766 = vcmp.gt.f32.partialorder %v3734, 0.0
      %vm3767 = vcmp.gt.f32.partialorder %v3735, 0.0
      %vm3768 = vcmp.gt.f32.partialorder %v3736, 0.0
      %vm3769 = vcmp.gt.f32.partialorder %v3737, 0.0
      %vm3770 = vcmp.gt.f32.partialorder %v3738, 0.0
      %vm3771 = vcmp.gt.f32.partialorder %v3739, 0.0
      %vm3772 = vcmp.gt.f32.partialorder %v3740, 0.0
      %vm3773 = vcmp.gt.f32.partialorder %v3741, 0.0
      %vm3774 = vcmp.gt.f32.partialorder %v3742, 0.0
      %vm3775 = vcmp.gt.f32.partialorder %v3743, 0.0
      %vm3776 = vcmp.gt.f32.partialorder %v3744, 0.0
      %vm3777 = vcmp.gt.f32.partialorder %v3745, 0.0
      %vm3778 = vcmp.gt.f32.partialorder %v3746, 0.0
      %vm3779 = vcmp.gt.f32.partialorder %v3747, 0.0
      %vm3780 = vcmp.gt.f32.partialorder %v3748, 0.0
      %vm3781 = vcmp.gt.f32.partialorder %v3749, 0.0
      %vm3782 = vcmp.gt.f32.partialorder %v3750, 0.0
      %vm3783 = vcmp.gt.f32.partialorder %v3751, 0.0
      %vm3784 = vcmp.gt.f32.partialorder %v3752, 0.0
      %vm3785 = vcmp.gt.f32.partialorder %v3753, 0.0
      %v3786 = vmul.f32 %v3722, 0.1
      %v3787 = vmul.f32 %v3723, 0.1
      %v3788 = vmul.f32 %v3724, 0.1
      %v3789 = vmul.f32 %v3725, 0.1
      %v3790 = vmul.f32 %v3726, 0.1
      %v3791 = vmul.f32 %v3727, 0.1
      %v3792 = vmul.f32 %v3728, 0.1
      %v3793 = vmul.f32 %v3729, 0.1
      %v3794 = vmul.f32 %v3730, 0.1
      %v3795 = vmul.f32 %v3731, 0.1
      %v3796 = vmul.f32 %v3732, 0.1
      %v3797 = vmul.f32 %v3733, 0.1
      %v3798 = vmul.f32 %v3734, 0.1
      %v3799 = vmul.f32 %v3735, 0.1
      %v3800 = vmul.f32 %v3736, 0.1
      %v3801 = vmul.f32 %v3737, 0.1
      %v3802 = vmul.f32 %v3738, 0.1
      %v3803 = vmul.f32 %v3739, 0.1
      %v3804 = vmul.f32 %v3740, 0.1
      %v3805 = vmul.f32 %v3741, 0.1
      %v3806 = vmul.f32 %v3742, 0.1
      %v3807 = vmul.f32 %v3743, 0.1
      %v3808 = vmul.f32 %v3744, 0.1
      %v3809 = vmul.f32 %v3745, 0.1
      %v3810 = vmul.f32 %v3746, 0.1
      %v3811 = vmul.f32 %v3747, 0.1
      %v3812 = vmul.f32 %v3748, 0.1
      %v3813 = vmul.f32 %v3749, 0.1
      %v3814 = vmul.f32 %v3750, 0.1
      %v3815 = vmul.f32 %v3751, 0.1
      %v3816 = vmul.f32 %v3752, 0.1
      %v3817 = vmul.f32 %v3753, 0.1
      %v3818 = vsel %vm3754, %v3722, %v3786
      %v3819 = vsel %vm3755, %v3723, %v3787
      %v3820 = vsel %vm3756, %v3724, %v3788
      %v3821 = vsel %vm3757, %v3725, %v3789
      %v3822 = vsel %vm3758, %v3726, %v3790
      %v3823 = vsel %vm3759, %v3727, %v3791
      %v3824 = vsel %vm3760, %v3728, %v3792
      %v3825 = vsel %vm3761, %v3729, %v3793
      %v3826 = vsel %vm3762, %v3730, %v3794
      %v3827 = vsel %vm3763, %v3731, %v3795
      %v3828 = vsel %vm3764, %v3732, %v3796
      %v3829 = vsel %vm3765, %v3733, %v3797
      %v3830 = vsel %vm3766, %v3734, %v3798
      %v3831 = vsel %vm3767, %v3735, %v3799
      %v3832 = vsel %vm3768, %v3736, %v3800
      %v3833 = vsel %vm3769, %v3737, %v3801
      %v3834 = vsel %vm3770, %v3738, %v3802
      %v3835 = vsel %vm3771, %v3739, %v3803
      %v3836 = vsel %vm3772, %v3740, %v3804
      %v3837 = vsel %vm3773, %v3741, %v3805
      %v3838 = vsel %vm3774, %v3742, %v3806
      %v3839 = vsel %vm3775, %v3743, %v3807
      %v3840 = vsel %vm3776, %v3744, %v3808
      %v3841 = vsel %vm3777, %v3745, %v3809
      %v3842 = vsel %vm3778, %v3746, %v3810
      %v3843 = vsel %vm3779, %v3747, %v3811
      %v3844 = vsel %vm3780, %v3748, %v3812
      %v3845 = vsel %vm3781, %v3749, %v3813
      %v3846 = vsel %vm3782, %v3750, %v3814
      %v3847 = vsel %vm3783, %v3751, %v3815
      %v3848 = vsel %vm3784, %v3752, %v3816
      %v3849 = vsel %vm3785, %v3753, %v3817
      %v3850 = vadd.f32 %v3818, %v604
      %v3851 = vadd.f32 %v3819, %v605
      %v3852 = vadd.f32 %v3820, %v606
      %v3853 = vadd.f32 %v3821, %v607
      %v3854 = vadd.f32 %v3822, %v608
      %v3855 = vadd.f32 %v3823, %v609
      %v3856 = vadd.f32 %v3824, %v610
      %v3857 = vadd.f32 %v3825, %v611
      %v3858 = vadd.f32 %v3826, %v612
      %v3859 = vadd.f32 %v3827, %v613
      %v3860 = vadd.f32 %v3828, %v614
      %v3861 = vadd.f32 %v3829, %v615
      %v3862 = vadd.f32 %v3830, %v616
      %v3863 = vadd.f32 %v3831, %v617
      %v3864 = vadd.f32 %v3832, %v618
      %v3865 = vadd.f32 %v3833, %v619
      %v3866 = vadd.f32 %v3834, %v620
      %v3867 = vadd.f32 %v3835, %v621
      %v3868 = vadd.f32 %v3836, %v622
      %v3869 = vadd.f32 %v3837, %v623
      %v3870 = vadd.f32 %v3838, %v624
      %v3871 = vadd.f32 %v3839, %v625
      %v3872 = vadd.f32 %v3840, %v626
      %v3873 = vadd.f32 %v3841, %v627
      %v3874 = vadd.f32 %v3842, %v628
      %v3875 = vadd.f32 %v3843, %v629
      %v3876 = vadd.f32 %v3844, %v630
      %v3877 = vadd.f32 %v3845, %v631
      %v3878 = vadd.f32 %v3846, %v632
      %v3879 = vadd.f32 %v3847, %v633
      %v3880 = vadd.f32 %v3848, %v634
      %v3881 = vadd.f32 %v3849, %v635
      %3882 = vst [vmem:[%s600] sm:$0xff] %v3850
      %3883 = vst [vmem:[%s600 + $0x8] sm:$0xff] %v3851
      %3884 = vst [vmem:[%s600 + $0x10] sm:$0xff] %v3852
      %3885 = vst [vmem:[%s600 + $0x18] sm:$0xff] %v3853
      %3886 = vst [vmem:[%s600 + $0x20] sm:$0xff] %v3854
      %3887 = vst [vmem:[%s600 + $0x28] sm:$0xff] %v3855
      %3888 = vst [vmem:[%s600 + $0x30] sm:$0xff] %v3856
      %3889 = vst [vmem:[%s600 + $0x38] sm:$0xff] %v3857
      %3890 = vst [vmem:[%s600 + $0x40] sm:$0xff] %v3858
      %3891 = vst [vmem:[%s600 + $0x48] sm:$0xff] %v3859
      %3892 = vst [vmem:[%s600 + $0x50] sm:$0xff] %v3860
      %3893 = vst [vmem:[%s600 + $0x58] sm:$0xff] %v3861
      %3894 = vst [vmem:[%s600 + $0x60] sm:$0xff] %v3862
      %3895 = vst [vmem:[%s600 + $0x68] sm:$0xff] %v3863
      %3896 = vst [vmem:[%s600 + $0x70] sm:$0xff] %v3864
      %3897 = vst [vmem:[%s600 + $0x78] sm:$0xff] %v3865
      %3898 = vst [vmem:[%s600 + $0x80] sm:$0xff] %v3866
      %3899 = vst [vmem:[%s600 + $0x88] sm:$0xff] %v3867
      %3900 = vst [vmem:[%s600 + $0x90] sm:$0xff] %v3868
      %3901 = vst [vmem:[%s600 + $0x98] sm:$0xff] %v3869
      %3902 = vst [vmem:[%s600 + $0xa0] sm:$0xff] %v3870
      %3903 = vst [vmem:[%s600 + $0xa8] sm:$0xff] %v3871
      %3904 = vst [vmem:[%s600 + $0xb0] sm:$0xff] %v3872
      %3905 = vst [vmem:[%s600 + $0xb8] sm:$0xff] %v3873
      %3906 = vst [vmem:[%s600 + $0xc0] sm:$0xff] %v3874
      %3907 = vst [vmem:[%s600 + $0xc8] sm:$0xff] %v3875
      %3908 = vst [vmem:[%s600 + $0xd0] sm:$0xff] %v3876
      %3909 = vst [vmem:[%s600 + $0xd8] sm:$0xff] %v3877
      %3910 = vst [vmem:[%s600 + $0xe0] sm:$0xff] %v3878
      %3911 = vst [vmem:[%s600 + $0xe8] sm:$0xff] %v3879
      %3912 = vst [vmem:[%s600 + $0xf0] sm:$0xff] %v3880
      %3913 = vst [vmem:[%s600 + $0xf8] sm:$0xff] %v3881
      %s3914 = smul.u32 16, %s28
      %p3915 = scmp.lt.s32.totalorder %s27, 1
      %s3916 = scalar_select %p3915, %s27, 1
      %p3917 = scmp.lt.s32.totalorder %s3914, 15
      %s3918 = scalar_select %p3917, %s3914, 15
      %s3919 = smul.addr %s3918, 2
      %s3920 = smul.addr %s3916, 32
      %s3921 = sadd.s32 %s3919, %s3920
      %s3922 = smul.addr %s3921, 8
      %s3923 = scalar_lea.vmem %s12, %s3922
      // Predicated region
      $region69: #{darknet_block.1} parent=67 // pred_check
        %p3924 = pneg %p349
      $region70: #{darknet_block.1} parent=67 // pred_check_branch
        %3926 = sbr.rel (%p3924) target = $region72
      $region71: #{darknet_block.1} parent=67 // pred_region
        %s3927 = smul.u32 16, %s28
      $region72: #{darknet_block.1} parent=67 // pred_fallthru
        _
    $region68: #{darknet_block.1} parent=5 // pred_fallthru
      _
    %p3928 = scmp.le.s32.totalorder 2, %s18
    // Predicated region
    $region73: #{darknet_block.1} parent=5 // pred_check
      %p3929 = pneg %p3928
    $region74: #{darknet_block.1} parent=5 // pred_check_branch
      %3931 = sbr.rel (%p3929) target = $region76
    $region75: #{darknet_block.1} parent=5 // pred_region
      %s3932 = ssub.s32 %s18, 2
      // Predicated region
      $region77: #{darknet_block.1} parent=75 // pred_check
        %p3933 = pneg %p355
      $region78: #{darknet_block.1} parent=75 // pred_check_branch
        %3935 = sbr.rel (%p3933) target = $region80
      $region79: #{darknet_block.1} parent=75 // pred_region
        %s3936 = smul.u32 16, %s30
        %p3937 = scmp.lt.s32.totalorder %s29, 1
        %s3938 = scalar_select %p3937, %s29, 1
        %p3939 = scmp.lt.s32.totalorder %s3936, 15
        %s3940 = scalar_select %p3939, %s3936, 15
        %s3941 = smul.addr %s3940, 2
        %s3942 = smul.addr %s3938, 32
        %s3943 = sadd.s32 %s3941, %s3942
        %s3944 = smul.addr %s3943, 8
        %s3945 = scalar_lea.vmem %s12, %s3944
      $region80: #{darknet_block.1} parent=75 // pred_fallthru
        _
    $region76: #{darknet_block.1} parent=5 // pred_fallthru
      _
  $region6: #{darknet_block.1} parent=0 // loop_footer
    %s22 = sadd.s32 1, %s18
  $region7: #{darknet_block.1} parent=0 // loop_footer_branch
    %17 = sbr.rel target = $region3
  $region8: #{darknet_block.1} parent=0 // loop_exit
    _

</llo_original>
